<compile_context>
chip_gen: v7x
topology: tpu7x:2x2x1
jax: 0.10.0
libtpu: 0.0.40
codegen_flags: <defaults>
</compile_context>

<pallas_src>
import jax
import jax.numpy as jnp
from jax import lax
from jax.experimental import pallas as pl
from jax.experimental.pallas import tpu as pltpu

_INV_SQRT2 = 0.7071067811865476


def _gelu(x):
    # exact (erf-based) GELU, matching torch.nn.GELU() default; computed in f32
    return 0.5 * x * (1.0 + lax.erf(x * _INV_SQRT2))


def _compiler_params():
    return pltpu.CompilerParams(
        dimension_semantics=("parallel",),
        vmem_limit_bytes=32 * 1024 * 1024,   # safe ceiling for v7x (64 MiB physical)
    )


def _pad_last_to(x, length):
    """Zero-pad the last axis of x up to `length` (no-op if already long enough)."""
    pad = length - x.shape[-1]
    if pad <= 0:
        return x
    cfg = [(0, 0)] * (x.ndim - 1) + [(0, pad)]
    return jnp.pad(x, cfg)


def _nchw_to_padded_flat(x, dtype=jnp.bfloat16):
    """(N,C,H,W) -> (N, C, (H+2)*(W+2)) zero-padded-by-1 'wide' flat layout."""
    xp = jnp.pad(x, ((0, 0), (0, 0), (1, 1), (1, 1)))
    n, c, hp, wp = xp.shape
    return xp.reshape(n, c, hp * wp).astype(dtype)


# ----------------------------------------------------------------------------
# Fused conv1 + residual stack (one pallas_call, one batch image per grid step)
#
# Activation layout inside the kernel: (C, L) with L = flattened padded spatial
# (lane-dense).  Tap (kh, kw) of a 3x3 conv is the contiguous slice
# act[:, off : off + m_out] with off = kh * Wp + kw (the "wide" trick: the
# output keeps junk columns per row which are masked to zero before being
# written back into the padded layout, so the halo stays exactly zero).
# ----------------------------------------------------------------------------
def _fused_conv_res_kernel(offsets, m_out, res_off, l_buf, wout, wp, n_res):
    def kernel(x_ref, w0_ref, b0_ref, w3_ref, w1_ref, o_ref):
        # column-validity mask in the wide layout (junk cols & halo -> exact zero)
        col = lax.broadcasted_iota(jnp.int32, (1, m_out), 1)
        keep = (col % wp) < wout

        def place(v):
            # (C, m_out) f32 -> (C, l_buf) padded layout (zero halo, zero tail)
            c = v.shape[0]
            v = jnp.where(keep, v, 0.0)
            zpre = jnp.zeros((c, res_off), jnp.float32)
            zpost = jnp.zeros((c, l_buf - res_off - m_out), jnp.float32)
            return jnp.concatenate([zpre, v, zpost], axis=1)

        def conv3x3(src_bf16, w_stacked):
            # stack the 9 shifted tap slices along the contraction dim -> 1 dot
            rhs = jnp.concatenate(
                [src_bf16[:, off:off + m_out] for off in offsets], axis=0)
            return jnp.dot(w_stacked, rhs, preferred_element_type=jnp.float32)

        x = x_ref[0]                                         # (Cin, l_buf) bf16
        y = conv3x3(x, w0_ref[...]) + b0_ref[...]            # conv1 + bias, f32
        act = place(y)                                       # padded (nh, l_buf) f32

        for i in range(n_res):                               # static unrolled layers
            ag = _gelu(act).astype(jnp.bfloat16)             # GELU once per element
            h = conv3x3(ag, w3_ref[i])                       # (nrh, m_out) f32
            hg = _gelu(h).astype(jnp.bfloat16)               # h never leaves VMEM
            delta = jnp.dot(w1_ref[i], hg, preferred_element_type=jnp.float32)
            act = act + place(delta)                         # residual add (skip = act)

        o_ref[0] = act.astype(o_ref.dtype)                   # bf16, padded layout
    return kernel


def fused_conv1_res_stack(x, conv1_w, conv1_b, res_params):
    """x: (N, Cin, H, W).  Returns (N, nh, l_buf) bf16 activation in the
    zero-halo padded 'wide' flat layout ((H+2)*(W+2) interior + zero tail)."""
    n, cin, h, w = x.shape
    nh = conv1_w.shape[0]
    n_res = len(res_params)
    assert n_res >= 1
    nrh = res_params[0][0].shape[0]

    wp = w + 2
    m_out = h * wp
    offsets = tuple(kh * wp + kw for kh in range(3) for kw in range(3))
    res_off = wp + 1                      # interior of the padded layout
    assert res_off == wp + 1              # residual skip tied to the centre tap
    l_buf = m_out + max(offsets)          # read window for 3x3 taps

    x_flat = _pad_last_to(_nchw_to_padded_flat(x), l_buf)

    # tap-stacked weights: contraction K = 9 * Cin
    w0 = conv1_w.transpose(0, 2, 3, 1).reshape(nh, 9 * cin).astype(jnp.bfloat16)
    b0 = conv1_b.reshape(nh, 1).astype(jnp.float32)
    w3 = jnp.stack([w3i.transpose(0, 2, 3, 1).reshape(nrh, 9 * nh)
                    for w3i, _ in res_params]).astype(jnp.bfloat16)
    w1 = jnp.stack([w1i[:, :, 0, 0] for _, w1i in res_params]).astype(jnp.bfloat16)

    flops = int(n * (2 * nh * 9 * cin * m_out
                     + n_res * (2 * nrh * 9 * nh * m_out + 2 * nh * nrh * m_out)))
    trans = int(n * n_res * (nh * l_buf + nrh * m_out))
    bytes_acc = int(x_flat.size * 2 + w0.size * 2 + b0.size * 4
                    + w3.size * 2 + w1.size * 2 + n * nh * l_buf * 2)

    out = pl.pallas_call(
        _fused_conv_res_kernel(offsets, m_out, res_off, l_buf, w, wp, n_res),
        out_shape=jax.ShapeDtypeStruct((n, nh, l_buf), jnp.bfloat16),
        grid=(n,),
        in_specs=[
            pl.BlockSpec((1, cin, l_buf), lambda i: (i, 0, 0)),
            pl.BlockSpec((nh, 9 * cin), lambda i: (0, 0)),       # resident weights
            pl.BlockSpec((nh, 1), lambda i: (0, 0)),
            pl.BlockSpec((n_res, nrh, 9 * nh), lambda i: (0, 0, 0)),
            pl.BlockSpec((n_res, nh, nrh), lambda i: (0, 0, 0)),
        ],
        out_specs=pl.BlockSpec((1, nh, l_buf), lambda i: (i, 0, 0)),
        compiler_params=_compiler_params(),
        cost_estimate=pl.CostEstimate(flops=flops, transcendentals=trans,
                                      bytes_accessed=bytes_acc),
    )(x_flat, w0, b0, w3, w1)
    return out, (h, w)


# ----------------------------------------------------------------------------
# ConvTranspose2d (k=4, stride=2) as one block-diagonal MXU dot per image
# ----------------------------------------------------------------------------
def _transpose_conv_kernel(offsets16, m_out, gelu_in):
    def kernel(x_ref, w_ref, b_ref, o_ref):
        x = x_ref[0].astype(jnp.float32)
        if gelu_in:
            x = _gelu(x)                                     # GELU(0)=0 keeps halo exact
        xg = x.astype(jnp.bfloat16)
        # stack all 16 (phase, tap) shifted slices along the contraction dim
        rhs = jnp.concatenate([xg[:, off:off + m_out] for off in offsets16], axis=0)
        acc = jnp.dot(w_ref[...], rhs, preferred_element_type=jnp.float32)  # (4*Cout, m_out)
        o_ref[0] = (acc + b_ref[...]).astype(o_ref.dtype)
    return kernel


def conv_transpose2d_flat(x_flat, hin, win, w_t, b, *, padding, gelu_in=True,
                          out_dtype=jnp.bfloat16):
    """PyTorch ConvTranspose2d(k=4, stride=2, padding).
    x_flat: (N, Cin, L) bf16 -- input in the zero-padded-by-1 'wide' flat layout
    ((hin+2)*(win+2) interior, zero tail).  w_t: (Cin, Cout, 4, 4) PyTorch layout.
    Returns NCHW (N, Cout, 2*hin+2-2p, 2*win+2-2p)."""
    n, cin, _ = x_flat.shape
    cout = w_t.shape[1]
    pc = 3 - padding                        # equivalent-direct-conv pad
    nh, nw = hin + pc - 2, win + pc - 2     # per-phase output size
    wc = win + 2
    m_out = nh * wc

    offsets16, blocks = [], []
    for rh in range(2):
        qh = (rh + pc) % 2
        dh = (rh + qh - pc) // 2
        for rw in range(2):
            qw = (rw + pc) % 2
            dw = (rw + qw - pc) // 2
            taps = []
            for a in range(2):
                for bb in range(2):
                    offsets16.append((dh + a + 1) * wc + (dw + bb + 1))
                    # flipped conv-equivalent weight tap, transposed to (Cout, Cin)
                    taps.append(jnp.transpose(
                        w_t[:, :, 3 - (qh + 2 * a), 3 - (qw + 2 * bb)], (1, 0)))
            blocks.append(jnp.concatenate(taps, axis=1))     # (Cout, 4*Cin)
    offsets16 = tuple(offsets16)

    # block-diagonal weight: all 4 phases in ONE dot, 4*Cout stacked output rows
    w_bd = jnp.zeros((4 * cout, 16 * cin), jnp.float32)
    for ph, blk in enumerate(blocks):
        w_bd = w_bd.at[ph * cout:(ph + 1) * cout,
                       ph * 4 * cin:(ph + 1) * 4 * cin].set(blk)
    w_bd = w_bd.astype(jnp.bfloat16)
    b4 = jnp.tile(b.reshape(1, cout), (4, 1)).reshape(4 * cout, 1).astype(jnp.float32)

    l_need = m_out + max(offsets16)
    x_flat = _pad_last_to(x_flat, l_need)
    l_in = x_flat.shape[-1]

    flops = int(n * 2 * (4 * cout) * (16 * cin) * m_out)
    trans = int(n * cin * l_in) if gelu_in else 0
    bytes_acc = int(n * cin * l_in * 2 + w_bd.size * 2 + b4.size * 4
                    + n * 4 * cout * m_out * jnp.dtype(out_dtype).itemsize)

    out = pl.pallas_call(
        _transpose_conv_kernel(offsets16, m_out, gelu_in),
        out_shape=jax.ShapeDtypeStruct((n, 4 * cout, m_out), out_dtype),
        grid=(n,),
        in_specs=[
            pl.BlockSpec((1, cin, l_in), lambda i: (i, 0, 0)),
            pl.BlockSpec((4 * cout, 16 * cin), lambda i: (0, 0)),   # resident weight
            pl.BlockSpec((4 * cout, 1), lambda i: (0, 0)),
        ],
        out_specs=pl.BlockSpec((1, 4 * cout, m_out), lambda i: (i, 0, 0)),
        compiler_params=_compiler_params(),
        cost_estimate=pl.CostEstimate(flops=flops, transcendentals=trans,
                                      bytes_accessed=bytes_acc),
    )(x_flat, w_bd, b4)

    # crop junk cols and interleave phases: y[2i+rh, 2j+rw] = phase[rh,rw][i,j]
    # TODO(synk): keep the phase-separated layout between consecutive transpose
    # convs and interleave only once at the very end (removes two HBM relayouts).
    out = out.reshape(n, 2, 2, cout, nh, wc)[:, :, :, :, :, :nw]
    out = out.transpose(0, 3, 4, 1, 5, 2).reshape(n, cout, 2 * nh, 2 * nw)
    return out


# ----------------------------------------------------------------------------
# Decoder forward (matches the PyTorch module; NCHW just like PyTorch)
# ----------------------------------------------------------------------------
def decoder_forward(params, x):
    # conv1 + residual stack fused into one kernel; output is already in the
    # padded 'wide' flat layout that conv_trans_1 consumes (no XLA glue).
    y, (h1, w1) = fused_conv1_res_stack(x, params["conv1_w"], params["conv1_b"],
                                        params["res"])
    # the res-stack's final GELU and the GELUs after conv_trans_1/2 are fused
    # as the (single, per-element) input-GELU of the consuming transpose kernel.
    y = conv_transpose2d_flat(y, h1, w1, params["t1_w"], params["t1_b"],
                              padding=0, gelu_in=True)
    h2, w2 = y.shape[2], y.shape[3]
    y = conv_transpose2d_flat(_nchw_to_padded_flat(y), h2, w2,
                              params["t2_w"], params["t2_b"],
                              padding=1, gelu_in=True)
    h3, w3 = y.shape[2], y.shape[3]
    y = conv_transpose2d_flat(_nchw_to_padded_flat(y), h3, w3,
                              params["t3_w"], params["t3_b"],
                              padding=3, gelu_in=True, out_dtype=jnp.float32)
    return y  # NCHW f32


# ----------------------------------------------------------------------------
# Pure-XLA f32 reference (structural correctness check) + params init
# ----------------------------------------------------------------------------
def decoder_reference(params, x):
    dn = ("NCHW", "OIHW", "NCHW")
    hi = lax.Precision.HIGHEST

    def conv(v, w, pad):
        return lax.conv_general_dilated(v, w, (1, 1), ((pad, pad), (pad, pad)),
                                        dimension_numbers=dn, precision=hi)

    def convT(v, wt, b, pad):
        w = jnp.flip(wt, (2, 3)).transpose(1, 0, 2, 3)
        pc = 3 - pad
        y = lax.conv_general_dilated(v, w, (1, 1), ((pc, pc), (pc, pc)),
                                     lhs_dilation=(2, 2), dimension_numbers=dn,
                                     precision=hi)
        return y + b[None, :, None, None]

    x = conv(x, params["conv1_w"], 1) + params["conv1_b"][None, :, None, None]
    for w3, w1 in params["res"]:
        x = x + conv(_gelu(conv(_gelu(x), w3, 1)), w1, 0)
    x = _gelu(x)
    x = _gelu(convT(x, params["t1_w"], params["t1_b"], 0))
    x = _gelu(convT(x, params["t2_w"], params["t2_b"], 1))
    return convT(x, params["t3_w"], params["t3_b"], 3)


def init_decoder_params(key, in_ch, out_ch, num_hiddens, num_res_layers, num_res_hiddens):
    keys = iter(jax.random.split(key, 8 + 2 * num_res_layers))

    def w(shape, fan_in):
        return jax.random.normal(next(keys), shape, jnp.float32) / jnp.sqrt(float(fan_in))

    nh, nrh = num_hiddens, num_res_hiddens
    return {
        # PyTorch layouts: Conv2d (Cout, Cin, K, K), ConvTranspose2d (Cin, Cout, K, K)
        "conv1_w": w((nh, in_ch, 3, 3), 9 * in_ch),
        "conv1_b": w((nh,), nh),
        "res": [(w((nrh, nh, 3, 3), 9 * nh), w((nh, nrh, 1, 1), nrh))
                for _ in range(num_res_layers)],
        "t1_w": w((nh, nh // 2, 4, 4), 16 * nh),
        "t1_b": w((nh // 2,), nh),
        "t2_w": w((nh // 2, nh // 2, 4, 4), 16 * (nh // 2)),
        "t2_b": w((nh // 2,), nh),
        "t3_w": w((nh // 2, out_ch, 4, 4), 16 * (nh // 2)),
        "t3_b": w((out_ch,), nh),
    }


if __name__ == "__main__":
    in_channels, out_channels = 4, 3
    num_hiddens, num_residual_layers, num_residual_hiddens = 32, 2, 16
    n, h, w = 2, 8, 8

    key = jax.random.PRNGKey(0)
    kp, kx = jax.random.split(key)
    params = init_decoder_params(kp, in_channels, out_channels,
                                 num_hiddens, num_residual_layers,
                                 num_residual_hiddens)
    x = jax.random.normal(kx, (n, in_channels, h, w), jnp.float32)  # NCHW like PyTorch

    out = jax.block_until_ready(jax.jit(decoder_forward)(params, x))
    # spatial: 8 -> 18 (k4 s2 p0) -> 36 (k4 s2 p1) -> 68 (k4 s2 p3)
    assert out.shape == (n, out_channels, 68, 68), out.shape
    assert bool(jnp.all(jnp.isfinite(out)))

    # structural check vs. an f32 XLA reference (Pallas path uses bf16 MXU
    # operands and bf16 inter-layer activations -> loose scale-relative tol).
    ref = jax.block_until_ready(jax.jit(decoder_reference)(params, x))
    rel = float(jnp.max(jnp.abs(out - ref)) / (jnp.max(jnp.abs(ref)) + 1e-6))
    assert rel < 5e-2, rel

    print("KERNEL_OK")
</pallas_src>

<mosaic_0001>
module attributes {stable_mosaic.version = 11 : i64} {
  func.func @kernel(%arg0: i32, %arg1: memref<1x4x102xbf16, #tpu.memory_space<vmem>>, %arg2: memref<32x36xbf16, #tpu.memory_space<vmem>>, %arg3: memref<32x1xf32, #tpu.memory_space<vmem>>, %arg4: memref<2x16x288xbf16, #tpu.memory_space<vmem>>, %arg5: memref<2x32x16xbf16, #tpu.memory_space<vmem>>, %arg6: memref<1x32x102xbf16, #tpu.memory_space<vmem>>) attributes {dimension_semantics = [#tpu.dimension_semantics<parallel>], iteration_bounds = array<i64: 2>, scalar_prefetch = 0 : i64, scratch_operands = 0 : i64, tpu.core_type = #tpu.core_type<tc>, window_params = [{transform_indices = @transform_0, window_bounds = array<i64: 1, 4, 102>}, {pipeline_mode = #tpu.pipeline_mode<synchronous>, transform_indices = @transform_1, window_bounds = array<i64: 32, 36>}, {pipeline_mode = #tpu.pipeline_mode<synchronous>, transform_indices = @transform_2, window_bounds = array<i64: 32, 1>}, {pipeline_mode = #tpu.pipeline_mode<synchronous>, transform_indices = @transform_3, window_bounds = array<i64: 2, 16, 288>}, {pipeline_mode = #tpu.pipeline_mode<synchronous>, transform_indices = @transform_4, window_bounds = array<i64: 2, 32, 16>}, {transform_indices = @transform_5, window_bounds = array<i64: 1, 32, 102>}]} {
    %0 = tpu.iota {dimensions = array<i32: 1>} : vector<1x80xi32>
    %c10_i32 = arith.constant 10 : i32
    %c0_i32 = arith.constant 0 : i32
    %1 = arith.cmpi eq, %c10_i32, %c0_i32 : i32
    %c1_i32 = arith.constant 1 : i32
    %2 = arith.select %1, %c1_i32, %c10_i32 : i32
    %3 = vector.broadcast %2 : i32 to vector<1x80xi32>
    %4 = arith.remsi %0, %3 : vector<1x80xi32>
    %c0_i32_0 = arith.constant 0 : i32
    %5 = vector.broadcast %c0_i32_0 : i32 to vector<1x80xi32>
    %6 = arith.cmpi ne, %4, %5 : vector<1x80xi32>
    %c0_i32_1 = arith.constant 0 : i32
    %7 = vector.broadcast %c0_i32_1 : i32 to vector<1x80xi32>
    %8 = arith.cmpi slt, %4, %7 : vector<1x80xi32>
    %c0_i32_2 = arith.constant 0 : i32
    %9 = arith.cmpi slt, %2, %c0_i32_2 : i32
    %10 = vector.broadcast %9 : i1 to vector<1x80xi1>
    %11 = vector.broadcast %10 : vector<1x80xi1> to vector<1x80xi1>
    %12 = arith.xori %8, %11 : vector<1x80xi1>
    %13 = arith.andi %12, %6 : vector<1x80xi1>
    %14 = vector.broadcast %2 : i32 to vector<1x80xi32>
    %15 = arith.addi %4, %14 : vector<1x80xi32>
    %16 = arith.select %13, %15, %4 : vector<1x80xi1>, vector<1x80xi32>
    %c8_i32 = arith.constant 8 : i32
    %17 = vector.broadcast %c8_i32 : i32 to vector<1x80xi32>
    %18 = arith.cmpi slt, %16, %17 : vector<1x80xi32>
    %c0 = arith.constant 0 : index
    %c0_3 = arith.constant 0 : index
    %c0_4 = arith.constant 0 : index
    %19 = vector.load %arg1[%c0, %c0_3, %c0_4] : memref<1x4x102xbf16, #tpu.memory_space<vmem>>, vector<1x4x102xbf16>
    %20 = vector.shape_cast %19 : vector<1x4x102xbf16> to vector<4x102xbf16>
    %c0_5 = arith.constant 0 : index
    %c0_6 = arith.constant 0 : index
    %21 = vector.load %arg2[%c0_5, %c0_6] : memref<32x36xbf16, #tpu.memory_space<vmem>>, vector<32x36xbf16>
    %22 = vector.extract_strided_slice %20 {offsets = [0, 0], sizes = [4, 80], strides = [1, 1]} : vector<4x102xbf16> to vector<4x80xbf16>
    %23 = vector.extract_strided_slice %20 {offsets = [0, 1], sizes = [4, 80], strides = [1, 1]} : vector<4x102xbf16> to vector<4x80xbf16>
    %24 = vector.extract_strided_slice %20 {offsets = [0, 2], sizes = [4, 80], strides = [1, 1]} : vector<4x102xbf16> to vector<4x80xbf16>
    %25 = vector.extract_strided_slice %20 {offsets = [0, 10], sizes = [4, 80], strides = [1, 1]} : vector<4x102xbf16> to vector<4x80xbf16>
    %26 = vector.extract_strided_slice %20 {offsets = [0, 11], sizes = [4, 80], strides = [1, 1]} : vector<4x102xbf16> to vector<4x80xbf16>
    %27 = vector.extract_strided_slice %20 {offsets = [0, 12], sizes = [4, 80], strides = [1, 1]} : vector<4x102xbf16> to vector<4x80xbf16>
    %28 = vector.extract_strided_slice %20 {offsets = [0, 20], sizes = [4, 80], strides = [1, 1]} : vector<4x102xbf16> to vector<4x80xbf16>
    %29 = vector.extract_strided_slice %20 {offsets = [0, 21], sizes = [4, 80], strides = [1, 1]} : vector<4x102xbf16> to vector<4x80xbf16>
    %30 = vector.extract_strided_slice %20 {offsets = [0, 22], sizes = [4, 80], strides = [1, 1]} : vector<4x102xbf16> to vector<4x80xbf16>
    %31 = tpu.concatenate %22, %23, %24, %25, %26, %27, %28, %29, %30 in 0 : vector<4x80xbf16>, vector<4x80xbf16>, vector<4x80xbf16>, vector<4x80xbf16>, vector<4x80xbf16>, vector<4x80xbf16>, vector<4x80xbf16>, vector<4x80xbf16>, vector<4x80xbf16> -> vector<36x80xbf16>
    %cst = arith.constant dense<0.000000e+00> : vector<32x80xf32>
    %32 = tpu.matmul %21, %31, %cst {dimension_numbers = #tpu.dot_dimension_numbers<[1], [0], [0], [1], [0, 0, 1, 1], [], []>} : vector<32x36xbf16>, vector<36x80xbf16>, vector<32x80xf32> -> vector<32x80xf32>
    %c0_7 = arith.constant 0 : index
    %c0_8 = arith.constant 0 : index
    %33 = vector.load %arg3[%c0_7, %c0_8] : memref<32x1xf32, #tpu.memory_space<vmem>>, vector<32x1xf32>
    %34 = vector.broadcast %33 : vector<32x1xf32> to vector<32x80xf32>
    %35 = arith.addf %32, %34 : vector<32x80xf32>
    %cst_9 = arith.constant 0.000000e+00 : f32
    %36 = vector.shape_cast %18 : vector<1x80xi1> to vector<1x80xi1>
    %37 = vector.broadcast %36 : vector<1x80xi1> to vector<32x80xi1>
    %38 = vector.broadcast %cst_9 : f32 to vector<32x80xf32>
    %39 = arith.select %37, %35, %38 : vector<32x80xi1>, vector<32x80xf32>
    %cst_10 = arith.constant 0.000000e+00 : f32
    %40 = vector.broadcast %cst_10 : f32 to vector<32x11xf32>
    %cst_11 = arith.constant 0.000000e+00 : f32
    %41 = vector.broadcast %cst_11 : f32 to vector<32x11xf32>
    %42 = tpu.concatenate %40, %39, %41 in 1 : vector<32x11xf32>, vector<32x80xf32>, vector<32x11xf32> -> vector<32x102xf32>
    %cst_12 = arith.constant 5.000000e-01 : f32
    %43 = vector.broadcast %cst_12 : f32 to vector<32x102xf32>
    %44 = arith.mulf %43, %42 : vector<32x102xf32>
    %cst_13 = arith.constant 0.707106769 : f32
    %45 = vector.broadcast %cst_13 : f32 to vector<32x102xf32>
    %46 = arith.mulf %42, %45 : vector<32x102xf32>
    %47 = math.erf %46 : vector<32x102xf32>
    %cst_14 = arith.constant 1.000000e+00 : f32
    %48 = vector.broadcast %cst_14 : f32 to vector<32x102xf32>
    %49 = arith.addf %48, %47 : vector<32x102xf32>
    %50 = arith.mulf %44, %49 : vector<32x102xf32>
    %51 = arith.truncf %50 : vector<32x102xf32> to vector<32x102xbf16>
    %c0_15 = arith.constant 0 : index
    %c0_16 = arith.constant 0 : index
    %c0_17 = arith.constant 0 : index
    %52 = vector.load %arg4[%c0_15, %c0_16, %c0_17] : memref<2x16x288xbf16, #tpu.memory_space<vmem>>, vector<1x16x288xbf16>
    %53 = vector.shape_cast %52 : vector<1x16x288xbf16> to vector<16x288xbf16>
    %54 = vector.extract_strided_slice %51 {offsets = [0, 0], sizes = [32, 80], strides = [1, 1]} : vector<32x102xbf16> to vector<32x80xbf16>
    %55 = vector.extract_strided_slice %51 {offsets = [0, 1], sizes = [32, 80], strides = [1, 1]} : vector<32x102xbf16> to vector<32x80xbf16>
    %56 = vector.extract_strided_slice %51 {offsets = [0, 2], sizes = [32, 80], strides = [1, 1]} : vector<32x102xbf16> to vector<32x80xbf16>
    %57 = vector.extract_strided_slice %51 {offsets = [0, 10], sizes = [32, 80], strides = [1, 1]} : vector<32x102xbf16> to vector<32x80xbf16>
    %58 = vector.extract_strided_slice %51 {offsets = [0, 11], sizes = [32, 80], strides = [1, 1]} : vector<32x102xbf16> to vector<32x80xbf16>
    %59 = vector.extract_strided_slice %51 {offsets = [0, 12], sizes = [32, 80], strides = [1, 1]} : vector<32x102xbf16> to vector<32x80xbf16>
    %60 = vector.extract_strided_slice %51 {offsets = [0, 20], sizes = [32, 80], strides = [1, 1]} : vector<32x102xbf16> to vector<32x80xbf16>
    %61 = vector.extract_strided_slice %51 {offsets = [0, 21], sizes = [32, 80], strides = [1, 1]} : vector<32x102xbf16> to vector<32x80xbf16>
    %62 = vector.extract_strided_slice %51 {offsets = [0, 22], sizes = [32, 80], strides = [1, 1]} : vector<32x102xbf16> to vector<32x80xbf16>
    %63 = tpu.concatenate %54, %55, %56, %57, %58, %59, %60, %61, %62 in 0 : vector<32x80xbf16>, vector<32x80xbf16>, vector<32x80xbf16>, vector<32x80xbf16>, vector<32x80xbf16>, vector<32x80xbf16>, vector<32x80xbf16>, vector<32x80xbf16>, vector<32x80xbf16> -> vector<288x80xbf16>
    %cst_18 = arith.constant dense<0.000000e+00> : vector<16x80xf32>
    %64 = tpu.matmul %53, %63, %cst_18 {dimension_numbers = #tpu.dot_dimension_numbers<[1], [0], [0], [1], [0, 0, 1, 1], [], []>} : vector<16x288xbf16>, vector<288x80xbf16>, vector<16x80xf32> -> vector<16x80xf32>
    %cst_19 = arith.constant 5.000000e-01 : f32
    %65 = vector.broadcast %cst_19 : f32 to vector<16x80xf32>
    %66 = arith.mulf %65, %64 : vector<16x80xf32>
    %cst_20 = arith.constant 0.707106769 : f32
    %67 = vector.broadcast %cst_20 : f32 to vector<16x80xf32>
    %68 = arith.mulf %64, %67 : vector<16x80xf32>
    %69 = math.erf %68 : vector<16x80xf32>
    %cst_21 = arith.constant 1.000000e+00 : f32
    %70 = vector.broadcast %cst_21 : f32 to vector<16x80xf32>
    %71 = arith.addf %70, %69 : vector<16x80xf32>
    %72 = arith.mulf %66, %71 : vector<16x80xf32>
    %73 = arith.truncf %72 : vector<16x80xf32> to vector<16x80xbf16>
    %c0_22 = arith.constant 0 : index
    %c0_23 = arith.constant 0 : index
    %c0_24 = arith.constant 0 : index
    %74 = vector.load %arg5[%c0_22, %c0_23, %c0_24] : memref<2x32x16xbf16, #tpu.memory_space<vmem>>, vector<1x32x16xbf16>
    %75 = vector.shape_cast %74 : vector<1x32x16xbf16> to vector<32x16xbf16>
    %cst_25 = arith.constant dense<0.000000e+00> : vector<32x80xf32>
    %76 = tpu.matmul %75, %73, %cst_25 {dimension_numbers = #tpu.dot_dimension_numbers<[1], [0], [0], [1], [0, 0, 1, 1], [], []>} : vector<32x16xbf16>, vector<16x80xbf16>, vector<32x80xf32> -> vector<32x80xf32>
    %cst_26 = arith.constant 0.000000e+00 : f32
    %77 = vector.shape_cast %18 : vector<1x80xi1> to vector<1x80xi1>
    %78 = vector.broadcast %77 : vector<1x80xi1> to vector<32x80xi1>
    %79 = vector.broadcast %cst_26 : f32 to vector<32x80xf32>
    %80 = arith.select %78, %76, %79 : vector<32x80xi1>, vector<32x80xf32>
    %cst_27 = arith.constant 0.000000e+00 : f32
    %81 = vector.broadcast %cst_27 : f32 to vector<32x11xf32>
    %cst_28 = arith.constant 0.000000e+00 : f32
    %82 = vector.broadcast %cst_28 : f32 to vector<32x11xf32>
    %83 = tpu.concatenate %81, %80, %82 in 1 : vector<32x11xf32>, vector<32x80xf32>, vector<32x11xf32> -> vector<32x102xf32>
    %84 = arith.addf %42, %83 : vector<32x102xf32>
    %cst_29 = arith.constant 5.000000e-01 : f32
    %85 = vector.broadcast %cst_29 : f32 to vector<32x102xf32>
    %86 = arith.mulf %85, %84 : vector<32x102xf32>
    %cst_30 = arith.constant 0.707106769 : f32
    %87 = vector.broadcast %cst_30 : f32 to vector<32x102xf32>
    %88 = arith.mulf %84, %87 : vector<32x102xf32>
    %89 = math.erf %88 : vector<32x102xf32>
    %cst_31 = arith.constant 1.000000e+00 : f32
    %90 = vector.broadcast %cst_31 : f32 to vector<32x102xf32>
    %91 = arith.addf %90, %89 : vector<32x102xf32>
    %92 = arith.mulf %86, %91 : vector<32x102xf32>
    %93 = arith.truncf %92 : vector<32x102xf32> to vector<32x102xbf16>
    %c1 = arith.constant 1 : index
    %c0_32 = arith.constant 0 : index
    %c0_33 = arith.constant 0 : index
    %94 = vector.load %arg4[%c1, %c0_32, %c0_33] : memref<2x16x288xbf16, #tpu.memory_space<vmem>>, vector<1x16x288xbf16>
    %95 = vector.shape_cast %94 : vector<1x16x288xbf16> to vector<16x288xbf16>
    %96 = vector.extract_strided_slice %93 {offsets = [0, 0], sizes = [32, 80], strides = [1, 1]} : vector<32x102xbf16> to vector<32x80xbf16>
    %97 = vector.extract_strided_slice %93 {offsets = [0, 1], sizes = [32, 80], strides = [1, 1]} : vector<32x102xbf16> to vector<32x80xbf16>
    %98 = vector.extract_strided_slice %93 {offsets = [0, 2], sizes = [32, 80], strides = [1, 1]} : vector<32x102xbf16> to vector<32x80xbf16>
    %99 = vector.extract_strided_slice %93 {offsets = [0, 10], sizes = [32, 80], strides = [1, 1]} : vector<32x102xbf16> to vector<32x80xbf16>
    %100 = vector.extract_strided_slice %93 {offsets = [0, 11], sizes = [32, 80], strides = [1, 1]} : vector<32x102xbf16> to vector<32x80xbf16>
    %101 = vector.extract_strided_slice %93 {offsets = [0, 12], sizes = [32, 80], strides = [1, 1]} : vector<32x102xbf16> to vector<32x80xbf16>
    %102 = vector.extract_strided_slice %93 {offsets = [0, 20], sizes = [32, 80], strides = [1, 1]} : vector<32x102xbf16> to vector<32x80xbf16>
    %103 = vector.extract_strided_slice %93 {offsets = [0, 21], sizes = [32, 80], strides = [1, 1]} : vector<32x102xbf16> to vector<32x80xbf16>
    %104 = vector.extract_strided_slice %93 {offsets = [0, 22], sizes = [32, 80], strides = [1, 1]} : vector<32x102xbf16> to vector<32x80xbf16>
    %105 = tpu.concatenate %96, %97, %98, %99, %100, %101, %102, %103, %104 in 0 : vector<32x80xbf16>, vector<32x80xbf16>, vector<32x80xbf16>, vector<32x80xbf16>, vector<32x80xbf16>, vector<32x80xbf16>, vector<32x80xbf16>, vector<32x80xbf16>, vector<32x80xbf16> -> vector<288x80xbf16>
    %cst_34 = arith.constant dense<0.000000e+00> : vector<16x80xf32>
    %106 = tpu.matmul %95, %105, %cst_34 {dimension_numbers = #tpu.dot_dimension_numbers<[1], [0], [0], [1], [0, 0, 1, 1], [], []>} : vector<16x288xbf16>, vector<288x80xbf16>, vector<16x80xf32> -> vector<16x80xf32>
    %cst_35 = arith.constant 5.000000e-01 : f32
    %107 = vector.broadcast %cst_35 : f32 to vector<16x80xf32>
    %108 = arith.mulf %107, %106 : vector<16x80xf32>
    %cst_36 = arith.constant 0.707106769 : f32
    %109 = vector.broadcast %cst_36 : f32 to vector<16x80xf32>
    %110 = arith.mulf %106, %109 : vector<16x80xf32>
    %111 = math.erf %110 : vector<16x80xf32>
    %cst_37 = arith.constant 1.000000e+00 : f32
    %112 = vector.broadcast %cst_37 : f32 to vector<16x80xf32>
    %113 = arith.addf %112, %111 : vector<16x80xf32>
    %114 = arith.mulf %108, %113 : vector<16x80xf32>
    %115 = arith.truncf %114 : vector<16x80xf32> to vector<16x80xbf16>
    %c1_38 = arith.constant 1 : index
    %c0_39 = arith.constant 0 : index
    %c0_40 = arith.constant 0 : index
    %116 = vector.load %arg5[%c1_38, %c0_39, %c0_40] : memref<2x32x16xbf16, #tpu.memory_space<vmem>>, vector<1x32x16xbf16>
    %117 = vector.shape_cast %116 : vector<1x32x16xbf16> to vector<32x16xbf16>
    %cst_41 = arith.constant dense<0.000000e+00> : vector<32x80xf32>
    %118 = tpu.matmul %117, %115, %cst_41 {dimension_numbers = #tpu.dot_dimension_numbers<[1], [0], [0], [1], [0, 0, 1, 1], [], []>} : vector<32x16xbf16>, vector<16x80xbf16>, vector<32x80xf32> -> vector<32x80xf32>
    %cst_42 = arith.constant 0.000000e+00 : f32
    %119 = vector.shape_cast %18 : vector<1x80xi1> to vector<1x80xi1>
    %120 = vector.broadcast %119 : vector<1x80xi1> to vector<32x80xi1>
    %121 = vector.broadcast %cst_42 : f32 to vector<32x80xf32>
    %122 = arith.select %120, %118, %121 : vector<32x80xi1>, vector<32x80xf32>
    %cst_43 = arith.constant 0.000000e+00 : f32
    %123 = vector.broadcast %cst_43 : f32 to vector<32x11xf32>
    %cst_44 = arith.constant 0.000000e+00 : f32
    %124 = vector.broadcast %cst_44 : f32 to vector<32x11xf32>
    %125 = tpu.concatenate %123, %122, %124 in 1 : vector<32x11xf32>, vector<32x80xf32>, vector<32x11xf32> -> vector<32x102xf32>
    %126 = arith.addf %84, %125 : vector<32x102xf32>
    %127 = arith.truncf %126 : vector<32x102xf32> to vector<32x102xbf16>
    %c0_45 = arith.constant 0 : index
    %c0_46 = arith.constant 0 : index
    %c0_47 = arith.constant 0 : index
    %128 = vector.load %arg6[%c0_45, %c0_46, %c0_47] : memref<1x32x102xbf16, #tpu.memory_space<vmem>>, vector<1x32x102xbf16>
    %129 = vector.shape_cast %128 : vector<1x32x102xbf16> to vector<32x102xbf16>
    %130 = vector.shape_cast %127 : vector<32x102xbf16> to vector<1x32x102xbf16>
    tpu.vector_store %arg6[%c0_45, %c0_46, %c0_47], %130 {strides = array<i32>} : memref<1x32x102xbf16, #tpu.memory_space<vmem>>, vector<1x32x102xbf16>,
    return
  }
  func.func @transform_0(%arg0: i32) -> (i32, i32, i32) {
    %c0_i32 = arith.constant 0 : i32
    %c0_i32_0 = arith.constant 0 : i32
    %c0_i32_1 = arith.constant 0 : i32
    return %arg0, %c0_i32, %c0_i32_0 : i32, i32, i32
  }
  func.func @transform_1(%arg0: i32) -> (i32, i32) {
    %c0_i32 = arith.constant 0 : i32
    %c0_i32_0 = arith.constant 0 : i32
    %c0_i32_1 = arith.constant 0 : i32
    return %c0_i32, %c0_i32_0 : i32, i32
  }
  func.func @transform_2(%arg0: i32) -> (i32, i32) {
    %c0_i32 = arith.constant 0 : i32
    %c0_i32_0 = arith.constant 0 : i32
    %c0_i32_1 = arith.constant 0 : i32
    return %c0_i32, %c0_i32_0 : i32, i32
  }
  func.func @transform_3(%arg0: i32) -> (i32, i32, i32) {
    %c0_i32 = arith.constant 0 : i32
    %c0_i32_0 = arith.constant 0 : i32
    %c0_i32_1 = arith.constant 0 : i32
    %c0_i32_2 = arith.constant 0 : i32
    return %c0_i32, %c0_i32_0, %c0_i32_1 : i32, i32, i32
  }
  func.func @transform_4(%arg0: i32) -> (i32, i32, i32) {
    %c0_i32 = arith.constant 0 : i32
    %c0_i32_0 = arith.constant 0 : i32
    %c0_i32_1 = arith.constant 0 : i32
    %c0_i32_2 = arith.constant 0 : i32
    return %c0_i32, %c0_i32_0, %c0_i32_1 : i32, i32, i32
  }
  func.func @transform_5(%arg0: i32) -> (i32, i32, i32) {
    %c0_i32 = arith.constant 0 : i32
    %c0_i32_0 = arith.constant 0 : i32
    %c0_i32_1 = arith.constant 0 : i32
    return %arg0, %c0_i32, %c0_i32_0 : i32, i32, i32
  }
}

module attributes {stable_mosaic.version = 11 : i64} {
  func.func @kernel(%arg0: i32, %arg1: memref<1x32x102xbf16, #tpu.memory_space<vmem>>, %arg2: memref<64x512xbf16, #tpu.memory_space<vmem>>, %arg3: memref<64x1xf32, #tpu.memory_space<vmem>>, %arg4: memref<1x64x90xbf16, #tpu.memory_space<vmem>>) attributes {dimension_semantics = [#tpu.dimension_semantics<parallel>], iteration_bounds = array<i64: 2>, scalar_prefetch = 0 : i64, scratch_operands = 0 : i64, tpu.core_type = #tpu.core_type<tc>, window_params = [{transform_indices = @transform_0, window_bounds = array<i64: 1, 32, 102>}, {pipeline_mode = #tpu.pipeline_mode<synchronous>, transform_indices = @transform_1, window_bounds = array<i64: 64, 512>}, {pipeline_mode = #tpu.pipeline_mode<synchronous>, transform_indices = @transform_2, window_bounds = array<i64: 64, 1>}, {transform_indices = @transform_3, window_bounds = array<i64: 1, 64, 90>}]} {
    %c0 = arith.constant 0 : index
    %c0_0 = arith.constant 0 : index
    %c0_1 = arith.constant 0 : index
    %0 = vector.load %arg1[%c0, %c0_0, %c0_1] : memref<1x32x102xbf16, #tpu.memory_space<vmem>>, vector<1x32x102xbf16>
    %1 = vector.shape_cast %0 : vector<1x32x102xbf16> to vector<32x102xbf16>
    %2 = arith.extf %1 : vector<32x102xbf16> to vector<32x102xf32>
    %cst = arith.constant 5.000000e-01 : f32
    %3 = vector.broadcast %cst : f32 to vector<32x102xf32>
    %4 = arith.mulf %3, %2 : vector<32x102xf32>
    %cst_2 = arith.constant 0.707106769 : f32
    %5 = vector.broadcast %cst_2 : f32 to vector<32x102xf32>
    %6 = arith.mulf %2, %5 : vector<32x102xf32>
    %7 = math.erf %6 : vector<32x102xf32>
    %cst_3 = arith.constant 1.000000e+00 : f32
    %8 = vector.broadcast %cst_3 : f32 to vector<32x102xf32>
    %9 = arith.addf %8, %7 : vector<32x102xf32>
    %10 = arith.mulf %4, %9 : vector<32x102xf32>
    %11 = arith.truncf %10 : vector<32x102xf32> to vector<32x102xbf16>
    %12 = vector.extract_strided_slice %11 {offsets = [0, 0], sizes = [32, 90], strides = [1, 1]} : vector<32x102xbf16> to vector<32x90xbf16>
    %13 = vector.extract_strided_slice %11 {offsets = [0, 1], sizes = [32, 90], strides = [1, 1]} : vector<32x102xbf16> to vector<32x90xbf16>
    %14 = vector.extract_strided_slice %11 {offsets = [0, 10], sizes = [32, 90], strides = [1, 1]} : vector<32x102xbf16> to vector<32x90xbf16>
    %15 = vector.extract_strided_slice %11 {offsets = [0, 11], sizes = [32, 90], strides = [1, 1]} : vector<32x102xbf16> to vector<32x90xbf16>
    %16 = vector.extract_strided_slice %11 {offsets = [0, 0], sizes = [32, 90], strides = [1, 1]} : vector<32x102xbf16> to vector<32x90xbf16>
    %17 = vector.extract_strided_slice %11 {offsets = [0, 1], sizes = [32, 90], strides = [1, 1]} : vector<32x102xbf16> to vector<32x90xbf16>
    %18 = vector.extract_strided_slice %11 {offsets = [0, 10], sizes = [32, 90], strides = [1, 1]} : vector<32x102xbf16> to vector<32x90xbf16>
    %19 = vector.extract_strided_slice %11 {offsets = [0, 11], sizes = [32, 90], strides = [1, 1]} : vector<32x102xbf16> to vector<32x90xbf16>
    %20 = vector.extract_strided_slice %11 {offsets = [0, 0], sizes = [32, 90], strides = [1, 1]} : vector<32x102xbf16> to vector<32x90xbf16>
    %21 = vector.extract_strided_slice %11 {offsets = [0, 1], sizes = [32, 90], strides = [1, 1]} : vector<32x102xbf16> to vector<32x90xbf16>
    %22 = vector.extract_strided_slice %11 {offsets = [0, 10], sizes = [32, 90], strides = [1, 1]} : vector<32x102xbf16> to vector<32x90xbf16>
    %23 = vector.extract_strided_slice %11 {offsets = [0, 11], sizes = [32, 90], strides = [1, 1]} : vector<32x102xbf16> to vector<32x90xbf16>
    %24 = vector.extract_strided_slice %11 {offsets = [0, 0], sizes = [32, 90], strides = [1, 1]} : vector<32x102xbf16> to vector<32x90xbf16>
    %25 = vector.extract_strided_slice %11 {offsets = [0, 1], sizes = [32, 90], strides = [1, 1]} : vector<32x102xbf16> to vector<32x90xbf16>
    %26 = vector.extract_strided_slice %11 {offsets = [0, 10], sizes = [32, 90], strides = [1, 1]} : vector<32x102xbf16> to vector<32x90xbf16>
    %27 = vector.extract_strided_slice %11 {offsets = [0, 11], sizes = [32, 90], strides = [1, 1]} : vector<32x102xbf16> to vector<32x90xbf16>
    %28 = tpu.concatenate %12, %13, %14, %15, %16, %17, %18, %19, %20, %21, %22, %23, %24, %25, %26, %27 in 0 : vector<32x90xbf16>, vector<32x90xbf16>, vector<32x90xbf16>, vector<32x90xbf16>, vector<32x90xbf16>, vector<32x90xbf16>, vector<32x90xbf16>, vector<32x90xbf16>, vector<32x90xbf16>, vector<32x90xbf16>, vector<32x90xbf16>, vector<32x90xbf16>, vector<32x90xbf16>, vector<32x90xbf16>, vector<32x90xbf16>, vector<32x90xbf16> -> vector<512x90xbf16>
    %c0_4 = arith.constant 0 : index
    %c0_5 = arith.constant 0 : index
    %29 = vector.load %arg2[%c0_4, %c0_5] : memref<64x512xbf16, #tpu.memory_space<vmem>>, vector<64x512xbf16>
    %cst_6 = arith.constant dense<0.000000e+00> : vector<64x90xf32>
    %30 = tpu.matmul %29, %28, %cst_6 {dimension_numbers = #tpu.dot_dimension_numbers<[1], [0], [0], [1], [0, 0, 1, 1], [], []>} : vector<64x512xbf16>, vector<512x90xbf16>, vector<64x90xf32> -> vector<64x90xf32>
    %c0_7 = arith.constant 0 : index
    %c0_8 = arith.constant 0 : index
    %31 = vector.load %arg3[%c0_7, %c0_8] : memref<64x1xf32, #tpu.memory_space<vmem>>, vector<64x1xf32>
    %32 = vector.broadcast %31 : vector<64x1xf32> to vector<64x90xf32>
    %33 = arith.addf %30, %32 : vector<64x90xf32>
    %34 = arith.truncf %33 : vector<64x90xf32> to vector<64x90xbf16>
    %c0_9 = arith.constant 0 : index
    %c0_10 = arith.constant 0 : index
    %c0_11 = arith.constant 0 : index
    %35 = vector.load %arg4[%c0_9, %c0_10, %c0_11] : memref<1x64x90xbf16, #tpu.memory_space<vmem>>, vector<1x64x90xbf16>
    %36 = vector.shape_cast %35 : vector<1x64x90xbf16> to vector<64x90xbf16>
    %37 = vector.shape_cast %34 : vector<64x90xbf16> to vector<1x64x90xbf16>
    tpu.vector_store %arg4[%c0_9, %c0_10, %c0_11], %37 {strides = array<i32>} : memref<1x64x90xbf16, #tpu.memory_space<vmem>>, vector<1x64x90xbf16>,
    return
  }
  func.func @transform_0(%arg0: i32) -> (i32, i32, i32) {
    %c0_i32 = arith.constant 0 : i32
    %c0_i32_0 = arith.constant 0 : i32
    %c0_i32_1 = arith.constant 0 : i32
    return %arg0, %c0_i32, %c0_i32_0 : i32, i32, i32
  }
  func.func @transform_1(%arg0: i32) -> (i32, i32) {
    %c0_i32 = arith.constant 0 : i32
    %c0_i32_0 = arith.constant 0 : i32
    %c0_i32_1 = arith.constant 0 : i32
    return %c0_i32, %c0_i32_0 : i32, i32
  }
  func.func @transform_2(%arg0: i32) -> (i32, i32) {
    %c0_i32 = arith.constant 0 : i32
    %c0_i32_0 = arith.constant 0 : i32
    %c0_i32_1 = arith.constant 0 : i32
    return %c0_i32, %c0_i32_0 : i32, i32
  }
  func.func @transform_3(%arg0: i32) -> (i32, i32, i32) {
    %c0_i32 = arith.constant 0 : i32
    %c0_i32_0 = arith.constant 0 : i32
    %c0_i32_1 = arith.constant 0 : i32
    return %arg0, %c0_i32, %c0_i32_0 : i32, i32, i32
  }
}

module attributes {stable_mosaic.version = 11 : i64} {
  func.func @kernel(%arg0: i32, %arg1: memref<1x16x402xbf16, #tpu.memory_space<vmem>>, %arg2: memref<64x256xbf16, #tpu.memory_space<vmem>>, %arg3: memref<64x1xf32, #tpu.memory_space<vmem>>, %arg4: memref<1x64x360xbf16, #tpu.memory_space<vmem>>) attributes {dimension_semantics = [#tpu.dimension_semantics<parallel>], iteration_bounds = array<i64: 2>, scalar_prefetch = 0 : i64, scratch_operands = 0 : i64, tpu.core_type = #tpu.core_type<tc>, window_params = [{transform_indices = @transform_0, window_bounds = array<i64: 1, 16, 402>}, {pipeline_mode = #tpu.pipeline_mode<synchronous>, transform_indices = @transform_1, window_bounds = array<i64: 64, 256>}, {pipeline_mode = #tpu.pipeline_mode<synchronous>, transform_indices = @transform_2, window_bounds = array<i64: 64, 1>}, {transform_indices = @transform_3, window_bounds = array<i64: 1, 64, 360>}]} {
    %c0 = arith.constant 0 : index
    %c0_0 = arith.constant 0 : index
    %c0_1 = arith.constant 0 : index
    %0 = vector.load %arg1[%c0, %c0_0, %c0_1] : memref<1x16x402xbf16, #tpu.memory_space<vmem>>, vector<1x16x402xbf16>
    %1 = vector.shape_cast %0 : vector<1x16x402xbf16> to vector<16x402xbf16>
    %2 = arith.extf %1 : vector<16x402xbf16> to vector<16x402xf32>
    %cst = arith.constant 5.000000e-01 : f32
    %3 = vector.broadcast %cst : f32 to vector<16x402xf32>
    %4 = arith.mulf %3, %2 : vector<16x402xf32>
    %cst_2 = arith.constant 0.707106769 : f32
    %5 = vector.broadcast %cst_2 : f32 to vector<16x402xf32>
    %6 = arith.mulf %2, %5 : vector<16x402xf32>
    %7 = math.erf %6 : vector<16x402xf32>
    %cst_3 = arith.constant 1.000000e+00 : f32
    %8 = vector.broadcast %cst_3 : f32 to vector<16x402xf32>
    %9 = arith.addf %8, %7 : vector<16x402xf32>
    %10 = arith.mulf %4, %9 : vector<16x402xf32>
    %11 = arith.truncf %10 : vector<16x402xf32> to vector<16x402xbf16>
    %12 = vector.extract_strided_slice %11 {offsets = [0, 0], sizes = [16, 360], strides = [1, 1]} : vector<16x402xbf16> to vector<16x360xbf16>
    %13 = vector.extract_strided_slice %11 {offsets = [0, 1], sizes = [16, 360], strides = [1, 1]} : vector<16x402xbf16> to vector<16x360xbf16>
    %14 = vector.extract_strided_slice %11 {offsets = [0, 20], sizes = [16, 360], strides = [1, 1]} : vector<16x402xbf16> to vector<16x360xbf16>
    %15 = vector.extract_strided_slice %11 {offsets = [0, 21], sizes = [16, 360], strides = [1, 1]} : vector<16x402xbf16> to vector<16x360xbf16>
    %16 = vector.extract_strided_slice %11 {offsets = [0, 1], sizes = [16, 360], strides = [1, 1]} : vector<16x402xbf16> to vector<16x360xbf16>
    %17 = vector.extract_strided_slice %11 {offsets = [0, 2], sizes = [16, 360], strides = [1, 1]} : vector<16x402xbf16> to vector<16x360xbf16>
    %18 = vector.extract_strided_slice %11 {offsets = [0, 21], sizes = [16, 360], strides = [1, 1]} : vector<16x402xbf16> to vector<16x360xbf16>
    %19 = vector.extract_strided_slice %11 {offsets = [0, 22], sizes = [16, 360], strides = [1, 1]} : vector<16x402xbf16> to vector<16x360xbf16>
    %20 = vector.extract_strided_slice %11 {offsets = [0, 20], sizes = [16, 360], strides = [1, 1]} : vector<16x402xbf16> to vector<16x360xbf16>
    %21 = vector.extract_strided_slice %11 {offsets = [0, 21], sizes = [16, 360], strides = [1, 1]} : vector<16x402xbf16> to vector<16x360xbf16>
    %22 = vector.extract_strided_slice %11 {offsets = [0, 40], sizes = [16, 360], strides = [1, 1]} : vector<16x402xbf16> to vector<16x360xbf16>
    %23 = vector.extract_strided_slice %11 {offsets = [0, 41], sizes = [16, 360], strides = [1, 1]} : vector<16x402xbf16> to vector<16x360xbf16>
    %24 = vector.extract_strided_slice %11 {offsets = [0, 21], sizes = [16, 360], strides = [1, 1]} : vector<16x402xbf16> to vector<16x360xbf16>
    %25 = vector.extract_strided_slice %11 {offsets = [0, 22], sizes = [16, 360], strides = [1, 1]} : vector<16x402xbf16> to vector<16x360xbf16>
    %26 = vector.extract_strided_slice %11 {offsets = [0, 41], sizes = [16, 360], strides = [1, 1]} : vector<16x402xbf16> to vector<16x360xbf16>
    %27 = vector.extract_strided_slice %11 {offsets = [0, 42], sizes = [16, 360], strides = [1, 1]} : vector<16x402xbf16> to vector<16x360xbf16>
    %28 = tpu.concatenate %12, %13, %14, %15, %16, %17, %18, %19, %20, %21, %22, %23, %24, %25, %26, %27 in 0 : vector<16x360xbf16>, vector<16x360xbf16>, vector<16x360xbf16>, vector<16x360xbf16>, vector<16x360xbf16>, vector<16x360xbf16>, vector<16x360xbf16>, vector<16x360xbf16>, vector<16x360xbf16>, vector<16x360xbf16>, vector<16x360xbf16>, vector<16x360xbf16>, vector<16x360xbf16>, vector<16x360xbf16>, vector<16x360xbf16>, vector<16x360xbf16> -> vector<256x360xbf16>
    %c0_4 = arith.constant 0 : index
    %c0_5 = arith.constant 0 : index
    %29 = vector.load %arg2[%c0_4, %c0_5] : memref<64x256xbf16, #tpu.memory_space<vmem>>, vector<64x256xbf16>
    %cst_6 = arith.constant dense<0.000000e+00> : vector<64x360xf32>
    %30 = tpu.matmul %29, %28, %cst_6 {dimension_numbers = #tpu.dot_dimension_numbers<[1], [0], [0], [1], [0, 0, 1, 1], [], []>} : vector<64x256xbf16>, vector<256x360xbf16>, vector<64x360xf32> -> vector<64x360xf32>
    %c0_7 = arith.constant 0 : index
    %c0_8 = arith.constant 0 : index
    %31 = vector.load %arg3[%c0_7, %c0_8] : memref<64x1xf32, #tpu.memory_space<vmem>>, vector<64x1xf32>
    %32 = vector.broadcast %31 : vector<64x1xf32> to vector<64x360xf32>
    %33 = arith.addf %30, %32 : vector<64x360xf32>
    %34 = arith.truncf %33 : vector<64x360xf32> to vector<64x360xbf16>
    %c0_9 = arith.constant 0 : index
    %c0_10 = arith.constant 0 : index
    %c0_11 = arith.constant 0 : index
    %35 = vector.load %arg4[%c0_9, %c0_10, %c0_11] : memref<1x64x360xbf16, #tpu.memory_space<vmem>>, vector<1x64x360xbf16>
    %36 = vector.shape_cast %35 : vector<1x64x360xbf16> to vector<64x360xbf16>
    %37 = vector.shape_cast %34 : vector<64x360xbf16> to vector<1x64x360xbf16>
    tpu.vector_store %arg4[%c0_9, %c0_10, %c0_11], %37 {strides = array<i32>} : memref<1x64x360xbf16, #tpu.memory_space<vmem>>, vector<1x64x360xbf16>,
    return
  }
  func.func @transform_0(%arg0: i32) -> (i32, i32, i32) {
    %c0_i32 = arith.constant 0 : i32
    %c0_i32_0 = arith.constant 0 : i32
    %c0_i32_1 = arith.constant 0 : i32
    return %arg0, %c0_i32, %c0_i32_0 : i32, i32, i32
  }
  func.func @transform_1(%arg0: i32) -> (i32, i32) {
    %c0_i32 = arith.constant 0 : i32
    %c0_i32_0 = arith.constant 0 : i32
    %c0_i32_1 = arith.constant 0 : i32
    return %c0_i32, %c0_i32_0 : i32, i32
  }
  func.func @transform_2(%arg0: i32) -> (i32, i32) {
    %c0_i32 = arith.constant 0 : i32
    %c0_i32_0 = arith.constant 0 : i32
    %c0_i32_1 = arith.constant 0 : i32
    return %c0_i32, %c0_i32_0 : i32, i32
  }
  func.func @transform_3(%arg0: i32) -> (i32, i32, i32) {
    %c0_i32 = arith.constant 0 : i32
    %c0_i32_0 = arith.constant 0 : i32
    %c0_i32_1 = arith.constant 0 : i32
    return %arg0, %c0_i32, %c0_i32_0 : i32, i32, i32
  }
}

module attributes {stable_mosaic.version = 11 : i64} {
  func.func @kernel(%arg0: i32, %arg1: memref<1x16x1444xbf16, #tpu.memory_space<vmem>>, %arg2: memref<12x256xbf16, #tpu.memory_space<vmem>>, %arg3: memref<12x1xf32, #tpu.memory_space<vmem>>, %arg4: memref<1x12x1292xf32, #tpu.memory_space<vmem>>) attributes {dimension_semantics = [#tpu.dimension_semantics<parallel>], iteration_bounds = array<i64: 2>, scalar_prefetch = 0 : i64, scratch_operands = 0 : i64, tpu.core_type = #tpu.core_type<tc>, window_params = [{transform_indices = @transform_0, window_bounds = array<i64: 1, 16, 1444>}, {pipeline_mode = #tpu.pipeline_mode<synchronous>, transform_indices = @transform_1, window_bounds = array<i64: 12, 256>}, {pipeline_mode = #tpu.pipeline_mode<synchronous>, transform_indices = @transform_2, window_bounds = array<i64: 12, 1>}, {transform_indices = @transform_3, window_bounds = array<i64: 1, 12, 1292>}]} {
    %c0 = arith.constant 0 : index
    %c0_0 = arith.constant 0 : index
    %c0_1 = arith.constant 0 : index
    %0 = vector.load %arg1[%c0, %c0_0, %c0_1] : memref<1x16x1444xbf16, #tpu.memory_space<vmem>>, vector<1x16x1444xbf16>
    %1 = vector.shape_cast %0 : vector<1x16x1444xbf16> to vector<16x1444xbf16>
    %2 = arith.extf %1 : vector<16x1444xbf16> to vector<16x1444xf32>
    %cst = arith.constant 5.000000e-01 : f32
    %3 = vector.broadcast %cst : f32 to vector<16x1444xf32>
    %4 = arith.mulf %3, %2 : vector<16x1444xf32>
    %cst_2 = arith.constant 0.707106769 : f32
    %5 = vector.broadcast %cst_2 : f32 to vector<16x1444xf32>
    %6 = arith.mulf %2, %5 : vector<16x1444xf32>
    %7 = math.erf %6 : vector<16x1444xf32>
    %cst_3 = arith.constant 1.000000e+00 : f32
    %8 = vector.broadcast %cst_3 : f32 to vector<16x1444xf32>
    %9 = arith.addf %8, %7 : vector<16x1444xf32>
    %10 = arith.mulf %4, %9 : vector<16x1444xf32>
    %11 = arith.truncf %10 : vector<16x1444xf32> to vector<16x1444xbf16>
    %12 = vector.extract_strided_slice %11 {offsets = [0, 39], sizes = [16, 1292], strides = [1, 1]} : vector<16x1444xbf16> to vector<16x1292xbf16>
    %13 = vector.extract_strided_slice %11 {offsets = [0, 40], sizes = [16, 1292], strides = [1, 1]} : vector<16x1444xbf16> to vector<16x1292xbf16>
    %14 = vector.extract_strided_slice %11 {offsets = [0, 77], sizes = [16, 1292], strides = [1, 1]} : vector<16x1444xbf16> to vector<16x1292xbf16>
    %15 = vector.extract_strided_slice %11 {offsets = [0, 78], sizes = [16, 1292], strides = [1, 1]} : vector<16x1444xbf16> to vector<16x1292xbf16>
    %16 = vector.extract_strided_slice %11 {offsets = [0, 40], sizes = [16, 1292], strides = [1, 1]} : vector<16x1444xbf16> to vector<16x1292xbf16>
    %17 = vector.extract_strided_slice %11 {offsets = [0, 41], sizes = [16, 1292], strides = [1, 1]} : vector<16x1444xbf16> to vector<16x1292xbf16>
    %18 = vector.extract_strided_slice %11 {offsets = [0, 78], sizes = [16, 1292], strides = [1, 1]} : vector<16x1444xbf16> to vector<16x1292xbf16>
    %19 = vector.extract_strided_slice %11 {offsets = [0, 79], sizes = [16, 1292], strides = [1, 1]} : vector<16x1444xbf16> to vector<16x1292xbf16>
    %20 = vector.extract_strided_slice %11 {offsets = [0, 77], sizes = [16, 1292], strides = [1, 1]} : vector<16x1444xbf16> to vector<16x1292xbf16>
    %21 = vector.extract_strided_slice %11 {offsets = [0, 78], sizes = [16, 1292], strides = [1, 1]} : vector<16x1444xbf16> to vector<16x1292xbf16>
    %22 = vector.extract_strided_slice %11 {offsets = [0, 115], sizes = [16, 1292], strides = [1, 1]} : vector<16x1444xbf16> to vector<16x1292xbf16>
    %23 = vector.extract_strided_slice %11 {offsets = [0, 116], sizes = [16, 1292], strides = [1, 1]} : vector<16x1444xbf16> to vector<16x1292xbf16>
    %24 = vector.extract_strided_slice %11 {offsets = [0, 78], sizes = [16, 1292], strides = [1, 1]} : vector<16x1444xbf16> to vector<16x1292xbf16>
    %25 = vector.extract_strided_slice %11 {offsets = [0, 79], sizes = [16, 1292], strides = [1, 1]} : vector<16x1444xbf16> to vector<16x1292xbf16>
    %26 = vector.extract_strided_slice %11 {offsets = [0, 116], sizes = [16, 1292], strides = [1, 1]} : vector<16x1444xbf16> to vector<16x1292xbf16>
    %27 = vector.extract_strided_slice %11 {offsets = [0, 117], sizes = [16, 1292], strides = [1, 1]} : vector<16x1444xbf16> to vector<16x1292xbf16>
    %28 = tpu.concatenate %12, %13, %14, %15, %16, %17, %18, %19, %20, %21, %22, %23, %24, %25, %26, %27 in 0 : vector<16x1292xbf16>, vector<16x1292xbf16>, vector<16x1292xbf16>, vector<16x1292xbf16>, vector<16x1292xbf16>, vector<16x1292xbf16>, vector<16x1292xbf16>, vector<16x1292xbf16>, vector<16x1292xbf16>, vector<16x1292xbf16>, vector<16x1292xbf16>, vector<16x1292xbf16>, vector<16x1292xbf16>, vector<16x1292xbf16>, vector<16x1292xbf16>, vector<16x1292xbf16> -> vector<256x1292xbf16>
    %c0_4 = arith.constant 0 : index
    %c0_5 = arith.constant 0 : index
    %29 = vector.load %arg2[%c0_4, %c0_5] : memref<12x256xbf16, #tpu.memory_space<vmem>>, vector<12x256xbf16>
    %cst_6 = arith.constant dense<0.000000e+00> : vector<12x1292xf32>
    %30 = tpu.matmul %29, %28, %cst_6 {dimension_numbers = #tpu.dot_dimension_numbers<[1], [0], [0], [1], [0, 0, 1, 1], [], []>} : vector<12x256xbf16>, vector<256x1292xbf16>, vector<12x1292xf32> -> vector<12x1292xf32>
    %c0_7 = arith.constant 0 : index
    %c0_8 = arith.constant 0 : index
    %31 = vector.load %arg3[%c0_7, %c0_8] : memref<12x1xf32, #tpu.memory_space<vmem>>, vector<12x1xf32>
    %32 = vector.broadcast %31 : vector<12x1xf32> to vector<12x1292xf32>
    %33 = arith.addf %30, %32 : vector<12x1292xf32>
    %c0_9 = arith.constant 0 : index
    %c0_10 = arith.constant 0 : index
    %c0_11 = arith.constant 0 : index
    %34 = vector.load %arg4[%c0_9, %c0_10, %c0_11] : memref<1x12x1292xf32, #tpu.memory_space<vmem>>, vector<1x12x1292xf32>
    %35 = vector.shape_cast %34 : vector<1x12x1292xf32> to vector<12x1292xf32>
    %36 = vector.shape_cast %33 : vector<12x1292xf32> to vector<1x12x1292xf32>
    tpu.vector_store %arg4[%c0_9, %c0_10, %c0_11], %36 {strides = array<i32>} : memref<1x12x1292xf32, #tpu.memory_space<vmem>>, vector<1x12x1292xf32>,
    return
  }
  func.func @transform_0(%arg0: i32) -> (i32, i32, i32) {
    %c0_i32 = arith.constant 0 : i32
    %c0_i32_0 = arith.constant 0 : i32
    %c0_i32_1 = arith.constant 0 : i32
    return %arg0, %c0_i32, %c0_i32_0 : i32, i32, i32
  }
  func.func @transform_1(%arg0: i32) -> (i32, i32) {
    %c0_i32 = arith.constant 0 : i32
    %c0_i32_0 = arith.constant 0 : i32
    %c0_i32_1 = arith.constant 0 : i32
    return %c0_i32, %c0_i32_0 : i32, i32
  }
  func.func @transform_2(%arg0: i32) -> (i32, i32) {
    %c0_i32 = arith.constant 0 : i32
    %c0_i32_0 = arith.constant 0 : i32
    %c0_i32_1 = arith.constant 0 : i32
    return %c0_i32, %c0_i32_0 : i32, i32
  }
  func.func @transform_3(%arg0: i32) -> (i32, i32, i32) {
    %c0_i32 = arith.constant 0 : i32
    %c0_i32_0 = arith.constant 0 : i32
    %c0_i32_1 = arith.constant 0 : i32
    return %arg0, %c0_i32, %c0_i32_0 : i32, i32, i32
  }
}

</mosaic_0001>

<llo_original>
// kernel: tile.2
$region0: #{tile.2}
  %s0 = inlined_call_operand.vmem [shape: f32[4,1,1,3], index: 0, kind: input, shape index: {}]
  %s1 = inlined_call_operand.vmem [shape: f32[12,1], index: 1, kind: output, shape index: {}]
  $region1: #{tile.2} parent=0
    #allocation0 [shape = 'u8[4096]{0}', space=vmem, size = 0x1000, scoped, tag = 'scoped mem for input reshape']
    %s3 = sshllo.u32 0, 4
    %v4 = vld [vmem:[%s0] sm:%s3]
    %5 = vst [vmem:[#allocation0] sm:%s3] %v4
    %v6 = vld [vmem:[#allocation0] sm:$0xf]
    %vm7 = vcmask 7168
    %8 = vst.msk [vmem:[%s1] ss:$3 sm:$0xf] %vm7, %v6
    %v9 = vld [vmem:[#allocation0] sm:$0xf]
    %10 = vrot.lane.b32.xlu0 %v9, 127
    %v11 = vpop.permute.xlu0 %10
    %vm12 = vcmask 7168
    %s13 = scalar_lea.vmem %s1, 1
    %14 = vst.msk [vmem:[%s13] ss:$3 sm:$0xf] %vm12, %v11
    %v15 = vld [vmem:[#allocation0] sm:$0xf]
    %16 = vrot.lane.b32.xlu0 %v15, 126
    %v17 = vpop.permute.xlu0 %16
    %vm18 = vcmask 7168
    %s19 = scalar_lea.vmem %s1, 2
    %20 = vst.msk [vmem:[%s19] ss:$3 sm:$0xf] %vm18, %v17

// kernel: tile.22
$region0: #{tile.22}
  #allocation2 [shape = 's32[1]{0}', space=sflag, size = 0x4, scoped, tag = 'scoped memory for tile.22']
  %s0 = inlined_call_operand.hbm [shape: f32[3], index: 0, kind: input, shape index: {}]
  %s1 = inlined_call_operand.vmem [shape: f32[4,1,1,3], index: 1, kind: output, shape index: {}]
  $region1: #{tile.22} parent=0
    #allocation0 [shape = 'u8[512]{0}', space=vmem, size = 0x400, scoped, tag = 'operand span for operand 0']
    #allocation1 [shape = 's32[1]{0}', space=sflag, size = 0x4, scoped, tag = 'scoped memory for tile.22']
    %2 = vsyncpa [#allocation1], 0
    // Predicated region
    $region2: #{tile.22} parent=1 // pred_check
      _
    $region3: #{tile.22} parent=1 // pred_check_branch
      %4 = sbr.rel (0) target = $region5
    $region4: #{tile.22} parent=1 // pred_region
      %s6 = ssub.s32 16, 16
      %7 = vsyncadd [#allocation1], %s6
      %s9 = sshll.u32 [#allocation0], 4
      %s10 = int_to_ptr.vmem [resolvable:$true] %s9
      %12 = dma.hbm_to_vmem [thread:$0]  %s0, 16, %s10, [#allocation1]
    $region5: #{tile.22} parent=1 // pred_fallthru
      _
    // Predicated region
    $region6: #{tile.22} parent=1 // pred_check
      _
    $region7: #{tile.22} parent=1 // pred_check_branch
      %14 = sbr.rel (0) target = $region9
    $region8: #{tile.22} parent=1 // pred_region
      %15 = dma.done [#allocation1], 16
    $region9: #{tile.22} parent=1 // pred_fallthru
      _
    %v16 = vld [vmem:[#allocation0] ss:$0 sm:$0xff]
    %17 = vst [vmem:[%s1] sm:$0xf] %v16
    %18 = vsyncpa [#allocation1], 1

// kernel: tile.14
$region0: #{tile.14}
  #allocation2 [shape = 's32[1]{0}', space=sflag, size = 0x4, scoped, tag = 'scoped memory for tile.14']
  %s0 = inlined_call_operand.hbm [shape: f32[16], index: 0, kind: input, shape index: {}]
  %s1 = inlined_call_operand.vmem [shape: f32[4,1,1,16], index: 1, kind: output, shape index: {}]
  $region1: #{tile.14} parent=0
    #allocation0 [shape = 'u8[512]{0}', space=vmem, size = 0x400, scoped, tag = 'operand span for operand 0']
    #allocation1 [shape = 's32[1]{0}', space=sflag, size = 0x4, scoped, tag = 'scoped memory for tile.14']
    %2 = vsyncpa [#allocation1], 0
    // Predicated region
    $region2: #{tile.14} parent=1 // pred_check
      _
    $region3: #{tile.14} parent=1 // pred_check_branch
      %4 = sbr.rel (0) target = $region5
    $region4: #{tile.14} parent=1 // pred_region
      %s6 = ssub.s32 16, 16
      %7 = vsyncadd [#allocation1], %s6
      %s9 = sshll.u32 [#allocation0], 4
      %s10 = int_to_ptr.vmem [resolvable:$true] %s9
      %12 = dma.hbm_to_vmem [thread:$0]  %s0, 16, %s10, [#allocation1]
    $region5: #{tile.14} parent=1 // pred_fallthru
      _
    // Predicated region
    $region6: #{tile.14} parent=1 // pred_check
      _
    $region7: #{tile.14} parent=1 // pred_check_branch
      %14 = sbr.rel (0) target = $region9
    $region8: #{tile.14} parent=1 // pred_region
      %15 = dma.done [#allocation1], 16
    $region9: #{tile.14} parent=1 // pred_fallthru
      _
    %v16 = vld [vmem:[#allocation0] ss:$0 sm:$0xff]
    %17 = vst [vmem:[%s1] sm:$0xf] %v16
    %18 = vsyncpa [#allocation1], 1

// kernel: tile.1
$region0: #{tile.1}
  %s0 = inlined_call_operand.vmem [shape: f32[4,1,1,16], index: 0, kind: input, shape index: {}]
  %s1 = inlined_call_operand.vmem [shape: f32[64,1], index: 1, kind: output, shape index: {}]
  $region1: #{tile.1} parent=0
    #allocation0 [shape = 'u8[4096]{0}', space=vmem, size = 0x1000, scoped, tag = 'scoped mem for input reshape']
    %s3 = sshllo.u32 0, 4
    %v4 = vld [vmem:[%s0] sm:%s3]
    %5 = vst [vmem:[#allocation0] sm:%s3] %v4
    %v6 = vld [vmem:[#allocation0] sm:$0xf]
    %vm7 = vcmask 7168
    %8 = vst.msk [vmem:[%s1] ss:$16 sm:$0x3] %vm7, %v6
    %9 = vst.msk [vmem:[%s1] ss:$16 sm:$0xc] %vm7, %v6
    %v10 = vld [vmem:[#allocation0] sm:$0xf]
    %11 = vrot.lane.b32.xlu0 %v10, 127
    %v12 = vpop.permute.xlu0 %11
    %vm13 = vcmask 7168
    %s14 = scalar_lea.vmem %s1, 1
    %15 = vst.msk [vmem:[%s14] ss:$16 sm:$0x3] %vm13, %v12
    %s16 = scalar_lea.vmem %s1, 1
    %17 = vst.msk [vmem:[%s16] ss:$16 sm:$0xc] %vm13, %v12
    %v18 = vld [vmem:[#allocation0] sm:$0xf]
    %19 = vrot.lane.b32.xlu0 %v18, 126
    %v20 = vpop.permute.xlu0 %19
    %vm21 = vcmask 7168
    %s22 = scalar_lea.vmem %s1, 2
    %23 = vst.msk [vmem:[%s22] ss:$16 sm:$0x3] %vm21, %v20
    %s24 = scalar_lea.vmem %s1, 2
    %25 = vst.msk [vmem:[%s24] ss:$16 sm:$0xc] %vm21, %v20
    %v26 = vld [vmem:[#allocation0] sm:$0xf]
    %27 = vrot.lane.b32.xlu0 %v26, 125
    %v28 = vpop.permute.xlu0 %27
    %vm29 = vcmask 7168
    %s30 = scalar_lea.vmem %s1, 3
    %31 = vst.msk [vmem:[%s30] ss:$16 sm:$0x3] %vm29, %v28
    %s32 = scalar_lea.vmem %s1, 3
    %33 = vst.msk [vmem:[%s32] ss:$16 sm:$0xc] %vm29, %v28
    %v34 = vld [vmem:[#allocation0] sm:$0xf]
    %35 = vrot.lane.b32.xlu0 %v34, 124
    %v36 = vpop.permute.xlu0 %35
    %vm37 = vcmask 7168
    %s38 = scalar_lea.vmem %s1, 4
    %39 = vst.msk [vmem:[%s38] ss:$16 sm:$0x3] %vm37, %v36
    %s40 = scalar_lea.vmem %s1, 4
    %41 = vst.msk [vmem:[%s40] ss:$16 sm:$0xc] %vm37, %v36
    %v42 = vld [vmem:[#allocation0] sm:$0xf]
    %43 = vrot.lane.b32.xlu0 %v42, 123
    %v44 = vpop.permute.xlu0 %43
    %vm45 = vcmask 7168
    %s46 = scalar_lea.vmem %s1, 5
    %47 = vst.msk [vmem:[%s46] ss:$16 sm:$0x3] %vm45, %v44
    %s48 = scalar_lea.vmem %s1, 5
    %49 = vst.msk [vmem:[%s48] ss:$16 sm:$0xc] %vm45, %v44
    %v50 = vld [vmem:[#allocation0] sm:$0xf]
    %51 = vrot.lane.b32.xlu0 %v50, 122
    %v52 = vpop.permute.xlu0 %51
    %vm53 = vcmask 7168
    %s54 = scalar_lea.vmem %s1, 6
    %55 = vst.msk [vmem:[%s54] ss:$16 sm:$0x3] %vm53, %v52
    %s56 = scalar_lea.vmem %s1, 6
    %57 = vst.msk [vmem:[%s56] ss:$16 sm:$0xc] %vm53, %v52
    %v58 = vld [vmem:[#allocation0] sm:$0xf]
    %59 = vrot.lane.b32.xlu0 %v58, 121
    %v60 = vpop.permute.xlu0 %59
    %vm61 = vcmask 7168
    %s62 = scalar_lea.vmem %s1, 7
    %63 = vst.msk [vmem:[%s62] ss:$16 sm:$0x3] %vm61, %v60
    %s64 = scalar_lea.vmem %s1, 7
    %65 = vst.msk [vmem:[%s64] ss:$16 sm:$0xc] %vm61, %v60
    %v66 = vld [vmem:[#allocation0] sm:$0xf]
    %67 = vrot.lane.b32.xlu0 %v66, 120
    %v68 = vpop.permute.xlu0 %67
    %vm69 = vcmask 7168
    %s70 = scalar_lea.vmem %s1, 8
    %71 = vst.msk [vmem:[%s70] ss:$16 sm:$0x3] %vm69, %v68
    %s72 = scalar_lea.vmem %s1, 8
    %73 = vst.msk [vmem:[%s72] ss:$16 sm:$0xc] %vm69, %v68
    %v74 = vld [vmem:[#allocation0] sm:$0xf]
    %75 = vrot.lane.b32.xlu0 %v74, 119
    %v76 = vpop.permute.xlu0 %75
    %vm77 = vcmask 7168
    %s78 = scalar_lea.vmem %s1, 9
    %79 = vst.msk [vmem:[%s78] ss:$16 sm:$0x3] %vm77, %v76
    %s80 = scalar_lea.vmem %s1, 9
    %81 = vst.msk [vmem:[%s80] ss:$16 sm:$0xc] %vm77, %v76
    %v82 = vld [vmem:[#allocation0] sm:$0xf]
    %83 = vrot.lane.b32.xlu0 %v82, 118
    %v84 = vpop.permute.xlu0 %83
    %vm85 = vcmask 7168
    %s86 = scalar_lea.vmem %s1, 10
    %87 = vst.msk [vmem:[%s86] ss:$16 sm:$0x3] %vm85, %v84
    %s88 = scalar_lea.vmem %s1, 10
    %89 = vst.msk [vmem:[%s88] ss:$16 sm:$0xc] %vm85, %v84
    %v90 = vld [vmem:[#allocation0] sm:$0xf]
    %91 = vrot.lane.b32.xlu0 %v90, 117
    %v92 = vpop.permute.xlu0 %91
    %vm93 = vcmask 7168
    %s94 = scalar_lea.vmem %s1, 11
    %95 = vst.msk [vmem:[%s94] ss:$16 sm:$0x3] %vm93, %v92
    %s96 = scalar_lea.vmem %s1, 11
    %97 = vst.msk [vmem:[%s96] ss:$16 sm:$0xc] %vm93, %v92
    %v98 = vld [vmem:[#allocation0] sm:$0xf]
    %99 = vrot.lane.b32.xlu0 %v98, 116
    %v100 = vpop.permute.xlu0 %99
    %vm101 = vcmask 7168
    %s102 = scalar_lea.vmem %s1, 12
    %103 = vst.msk [vmem:[%s102] ss:$16 sm:$0x3] %vm101, %v100
    %s104 = scalar_lea.vmem %s1, 12
    %105 = vst.msk [vmem:[%s104] ss:$16 sm:$0xc] %vm101, %v100
    %v106 = vld [vmem:[#allocation0] sm:$0xf]
    %107 = vrot.lane.b32.xlu0 %v106, 115
    %v108 = vpop.permute.xlu0 %107
    %vm109 = vcmask 7168
    %s110 = scalar_lea.vmem %s1, 13
    %111 = vst.msk [vmem:[%s110] ss:$16 sm:$0x3] %vm109, %v108
    %s112 = scalar_lea.vmem %s1, 13
    %113 = vst.msk [vmem:[%s112] ss:$16 sm:$0xc] %vm109, %v108
    %v114 = vld [vmem:[#allocation0] sm:$0xf]
    %115 = vrot.lane.b32.xlu0 %v114, 114
    %v116 = vpop.permute.xlu0 %115
    %vm117 = vcmask 7168
    %s118 = scalar_lea.vmem %s1, 14
    %119 = vst.msk [vmem:[%s118] ss:$16 sm:$0x3] %vm117, %v116
    %s120 = scalar_lea.vmem %s1, 14
    %121 = vst.msk [vmem:[%s120] ss:$16 sm:$0xc] %vm117, %v116
    %v122 = vld [vmem:[#allocation0] sm:$0xf]
    %123 = vrot.lane.b32.xlu0 %v122, 113
    %v124 = vpop.permute.xlu0 %123
    %vm125 = vcmask 7168
    %s126 = scalar_lea.vmem %s1, 15
    %127 = vst.msk [vmem:[%s126] ss:$16 sm:$0x3] %vm125, %v124
    %s128 = scalar_lea.vmem %s1, 15
    %129 = vst.msk [vmem:[%s128] ss:$16 sm:$0xc] %vm125, %v124

// kernel: decoder_forward.4
$region0: #{decoder_forward.4}
  #allocation0 [shape = 'u32[]', space=smem, size = 0x4, offset = 0x4, fixed_abs, tag = 'smem constant byte address 0x4 - core index']
  #allocation1 [shape = 'u32[144,128]{1,0:T(1,128)}', space=vmem, size = 0x12000, scoped, tag = 'internal scratch']
  %s0 = inlined_call_operand.vmem [shape: bf16[2,4,102], index: 0, kind: input, shape index: {}]
  %s1 = inlined_call_operand.vmem [shape: bf16[32,36], index: 1, kind: input, shape index: {}]
  %s2 = inlined_call_operand.vmem [shape: f32[32,1], index: 2, kind: input, shape index: {}]
  %s3 = inlined_call_operand.vmem [shape: bf16[2,16,288], index: 3, kind: input, shape index: {}]
  %s4 = inlined_call_operand.vmem [shape: bf16[2,32,16], index: 4, kind: input, shape index: {}]
  %s5 = inlined_call_operand.vmem [shape: bf16[2,32,102], index: 5, kind: output, shape index: {}]
  %s6 = sld [smem:[#allocation0]]
  $region53: #{decoder_forward.4} parent=0
    _
  %s8 = ssub.s32 1, %s6
  %s9 = scalar_select 0, %s8, %s6
  loop: start=0, step=1, limit=4
  $region2: #{decoder_forward.4} parent=0 // loop_pre_header
    _
  $region3: #{decoder_forward.4} parent=0 // loop_header
    %s11 = sphi 0, %s15
    %p12 = scmp.ge.s32.totalorder %s11, 4
    %s21 = sphi 0, %s23
    %s24 = sphi 0, %s21
    %s25 = sphi 0, %s24
    %s41 = sphi 0, %s25
    %s45 = sphi 0, %s45
    %s47 = sphi 0, %s45
    %s48 = sphi 0, %s47
    %s62 = sphi 0, %s48
    %s66 = sphi 0, %s66
    %s68 = sphi 0, %s66
    %s69 = sphi 0, %s68
    %s83 = sphi 0, %s69
    %s87 = sphi 0, %s87
    %s89 = sphi 0, %s87
    %s90 = sphi 0, %s89
    %s104 = sphi 0, %s90
    %s108 = sphi 0, %s108
    %s110 = sphi 0, %s108
    %s111 = sphi 0, %s110
    %s125 = sphi 0, %s111
    %s131 = sphi 0, %s133
    %s134 = sphi 0, %s131
    %s135 = sphi 0, %s134
    %s151 = sphi 0, %s135
  $region4: #{decoder_forward.4} parent=0 // loop_header_branch
    %14 = sbr.rel (%p12) target = $region8
  $region5: #{decoder_forward.4} parent=0 // loop_body
    %s16 = ssub.s32 %s11, 1
    %s17 = ssub.s32 %s11, 2
    %s18 = sadd.s32 %s11, 1
    %s19 = ssub.s32 %s11, %s18
    %p20 = scmp.eq.s32.totalorder %s19, 0
    %s22 = sadd.s32 %s21, 1
    %s23 = scalar_select %p20, %s21, %s22
    %p26 = pneg %p20
    %p27 = scmp.eq.s32.totalorder %s11, 1
    %p28 = por %p26, %p27
    %p29 = scmp.ne.s32.totalorder %s21, %s24
    %p30 = scmp.eq.s32.totalorder %s11, 0
    %p31 = por %p29, %p30
    %p32 = scmp.ne.s32.totalorder %s21, %s24
    %p33 = scmp.eq.s32.totalorder %s16, 1
    %p34 = por %p32, %p33
    %p35 = scmp.ne.s32.totalorder %s24, %s25
    %p36 = scmp.eq.s32.totalorder %s16, 0
    %p37 = por %p35, %p36
    %p38 = scmp.ne.s32.totalorder %s24, %s25
    %p39 = scmp.eq.s32.totalorder %s17, 1
    %p40 = por %p38, %p39
    %p42 = scmp.ne.s32.totalorder %s25, %s41
    %p43 = scmp.eq.s32.totalorder %s17, 0
    %p44 = por %p42, %p43
    %s46 = sadd.s32 %s45, 1
    %p49 = scmp.eq.s32.totalorder %s11, 1
    %p50 = scmp.ne.s32.totalorder %s45, %s47
    %p51 = scmp.eq.s32.totalorder %s11, 0
    %p52 = por %p50, %p51
    %p53 = scmp.ne.s32.totalorder %s45, %s47
    %p54 = scmp.eq.s32.totalorder %s16, 1
    %p55 = por %p53, %p54
    %p56 = scmp.ne.s32.totalorder %s47, %s48
    %p57 = scmp.eq.s32.totalorder %s16, 0
    %p58 = por %p56, %p57
    %p59 = scmp.ne.s32.totalorder %s47, %s48
    %p60 = scmp.eq.s32.totalorder %s17, 1
    %p61 = por %p59, %p60
    %p63 = scmp.ne.s32.totalorder %s48, %s62
    %p64 = scmp.eq.s32.totalorder %s17, 0
    %p65 = por %p63, %p64
    %s67 = sadd.s32 %s66, 1
    %p70 = scmp.eq.s32.totalorder %s11, 1
    %p71 = scmp.ne.s32.totalorder %s66, %s68
    %p72 = scmp.eq.s32.totalorder %s11, 0
    %p73 = por %p71, %p72
    %p74 = scmp.ne.s32.totalorder %s66, %s68
    %p75 = scmp.eq.s32.totalorder %s16, 1
    %p76 = por %p74, %p75
    %p77 = scmp.ne.s32.totalorder %s68, %s69
    %p78 = scmp.eq.s32.totalorder %s16, 0
    %p79 = por %p77, %p78
    %p80 = scmp.ne.s32.totalorder %s68, %s69
    %p81 = scmp.eq.s32.totalorder %s17, 1
    %p82 = por %p80, %p81
    %p84 = scmp.ne.s32.totalorder %s69, %s83
    %p85 = scmp.eq.s32.totalorder %s17, 0
    %p86 = por %p84, %p85
    %s88 = sadd.s32 %s87, 1
    %p91 = scmp.eq.s32.totalorder %s11, 1
    %p92 = scmp.ne.s32.totalorder %s87, %s89
    %p93 = scmp.eq.s32.totalorder %s11, 0
    %p94 = por %p92, %p93
    %p95 = scmp.ne.s32.totalorder %s87, %s89
    %p96 = scmp.eq.s32.totalorder %s16, 1
    %p97 = por %p95, %p96
    %p98 = scmp.ne.s32.totalorder %s89, %s90
    %p99 = scmp.eq.s32.totalorder %s16, 0
    %p100 = por %p98, %p99
    %p101 = scmp.ne.s32.totalorder %s89, %s90
    %p102 = scmp.eq.s32.totalorder %s17, 1
    %p103 = por %p101, %p102
    %p105 = scmp.ne.s32.totalorder %s90, %s104
    %p106 = scmp.eq.s32.totalorder %s17, 0
    %p107 = por %p105, %p106
    %s109 = sadd.s32 %s108, 1
    %p112 = scmp.eq.s32.totalorder %s11, 1
    %p113 = scmp.ne.s32.totalorder %s108, %s110
    %p114 = scmp.eq.s32.totalorder %s11, 0
    %p115 = por %p113, %p114
    %p116 = scmp.ne.s32.totalorder %s108, %s110
    %p117 = scmp.eq.s32.totalorder %s16, 1
    %p118 = por %p116, %p117
    %p119 = scmp.ne.s32.totalorder %s110, %s111
    %p120 = scmp.eq.s32.totalorder %s16, 0
    %p121 = por %p119, %p120
    %p122 = scmp.ne.s32.totalorder %s110, %s111
    %p123 = scmp.eq.s32.totalorder %s17, 1
    %p124 = por %p122, %p123
    %p126 = scmp.ne.s32.totalorder %s111, %s125
    %p127 = scmp.eq.s32.totalorder %s17, 0
    %p128 = por %p126, %p127
    %s129 = ssub.s32 %s11, %s18
    %p130 = scmp.eq.s32.totalorder %s129, 0
    %s132 = sadd.s32 %s131, 1
    %s133 = scalar_select %p130, %s131, %s132
    %p136 = pneg %p130
    %p137 = scmp.eq.s32.totalorder %s11, 1
    %p138 = por %p136, %p137
    %p139 = scmp.ne.s32.totalorder %s131, %s134
    %p140 = scmp.eq.s32.totalorder %s11, 0
    %p141 = por %p139, %p140
    %p142 = scmp.ne.s32.totalorder %s131, %s134
    %p143 = scmp.eq.s32.totalorder %s16, 1
    %p144 = por %p142, %p143
    %p145 = scmp.ne.s32.totalorder %s134, %s135
    %p146 = scmp.eq.s32.totalorder %s16, 0
    %p147 = por %p145, %p146
    %p148 = scmp.ne.s32.totalorder %s134, %s135
    %p149 = scmp.eq.s32.totalorder %s17, 1
    %p150 = por %p148, %p149
    %p152 = scmp.ne.s32.totalorder %s135, %s151
    %p153 = scmp.eq.s32.totalorder %s17, 0
    %p154 = por %p152, %p153
    %p155 = scmp.le.s32.totalorder 1, %s11
    %p156 = scmp.lt.s32.totalorder %s11, 3
    %p157 = pnand %p155, %p156
    %p158 = pneg %p157
    // Predicated region
    $region9: #{decoder_forward.4} parent=5 // pred_check
      _
    $region10: #{decoder_forward.4} parent=5 // pred_check_branch
      %160 = sbr.rel (%p157) target = $region12
    $region11: #{decoder_forward.4} parent=5 // pred_region
      %s161 = ssub.s32 %s11, 1
      // Predicated region
      $region13: #{decoder_forward.4} parent=11 // pred_check
        %p162 = pneg %p58
      $region14: #{decoder_forward.4} parent=11 // pred_check_branch
        %164 = sbr.rel (%p162) target = $region16
      $region15: #{decoder_forward.4} parent=11 // pred_region
        _
      $region16: #{decoder_forward.4} parent=11 // pred_fallthru
        _
      // Predicated region
      $region17: #{decoder_forward.4} parent=11 // pred_check
        %p165 = pneg %p79
      $region18: #{decoder_forward.4} parent=11 // pred_check_branch
        %167 = sbr.rel (%p165) target = $region20
      $region19: #{decoder_forward.4} parent=11 // pred_region
        _
      $region20: #{decoder_forward.4} parent=11 // pred_fallthru
        _
      // Predicated region
      $region21: #{decoder_forward.4} parent=11 // pred_check
        %p168 = pneg %p100
      $region22: #{decoder_forward.4} parent=11 // pred_check_branch
        %170 = sbr.rel (%p168) target = $region24
      $region23: #{decoder_forward.4} parent=11 // pred_region
        _
      $region24: #{decoder_forward.4} parent=11 // pred_fallthru
        _
      // Predicated region
      $region25: #{decoder_forward.4} parent=11 // pred_check
        %p171 = pneg %p121
      $region26: #{decoder_forward.4} parent=11 // pred_check_branch
        %173 = sbr.rel (%p171) target = $region28
      $region27: #{decoder_forward.4} parent=11 // pred_region
        _
      $region28: #{decoder_forward.4} parent=11 // pred_fallthru
        _
    $region12: #{decoder_forward.4} parent=5 // pred_fallthru
      _
    %p174 = scmp.lt.s32.totalorder %s11, 2
    // Predicated region
    $region29: #{decoder_forward.4} parent=5 // pred_check
      %p175 = pneg %p174
    $region30: #{decoder_forward.4} parent=5 // pred_check_branch
      %177 = sbr.rel (%p175) target = $region32
    $region31: #{decoder_forward.4} parent=5 // pred_region
      // Predicated region
      $region33: #{decoder_forward.4} parent=31 // pred_check
        %p178 = pneg %p31
      $region34: #{decoder_forward.4} parent=31 // pred_check_branch
        %180 = sbr.rel (%p178) target = $region36
      $region35: #{decoder_forward.4} parent=31 // pred_region
        %p181 = scmp.lt.s32.totalorder %s11, 1
        %s182 = scalar_select %p181, %s11, 1
        %s183 = smul.addr %s182, 2
        %s184 = scalar_lea.vmem %s0, %s183
      $region36: #{decoder_forward.4} parent=31 // pred_fallthru
        _
    $region32: #{decoder_forward.4} parent=5 // pred_fallthru
      _
    %p185 = scmp.le.s32.totalorder 1, %s11
    %p186 = scmp.lt.s32.totalorder %s11, 3
    %p187 = pnand %p185, %p186
    %p188 = pneg %p187
    // Predicated region
    $region37: #{decoder_forward.4} parent=5 // pred_check
      _
    $region38: #{decoder_forward.4} parent=5 // pred_check_branch
      %190 = sbr.rel (%p187) target = $region40
    $region39: #{decoder_forward.4} parent=5 // pred_region
      %s191 = ssub.s32 %s11, 1
      %p192 = scmp.lt.s32.totalorder %s16, 1
      %s193 = scalar_select %p192, %s16, 1
      %s194 = smul.addr %s193, 2
      %s195 = scalar_lea.vmem %s0, %s194
      %p196 = pneg %p37
      %p197 = pneg %p34
      %p198 = pneg %p58
      %p199 = pneg %p55
      %p200 = pneg %p79
      %p201 = pneg %p76
      %p202 = pneg %p100
      %p203 = pneg %p97
      %p204 = pneg %p121
      %p205 = pneg %p118
      %p206 = pneg %p147
      %p207 = pneg %p144
      %p208 = scmp.lt.s32.totalorder %s16, 1
      %s209 = scalar_select %p208, %s16, 1
      %s210 = smul.addr %s209, 4
      %s211 = smul.addr %s210, 4
      %s212 = scalar_lea.vmem %s5, %s211
      %p213 = scmp.lt.s32.totalorder %s16, 1
      %s214 = scalar_select %p213, %s16, 1
      %s215 = smul.addr %s214, 2
      %s216 = scalar_lea.vmem %s0, %s215
      %p217 = scmp.lt.s32.totalorder %s16, 1
      %s218 = scalar_select %p217, %s16, 1
      %s219 = smul.addr %s218, 4
      %s220 = smul.addr %s219, 4
      %s221 = scalar_lea.vmem %s5, %s220
      %v223 = vlaneseq
      %v224 = vand.u32 %v223, 127
      %vm225 = vcmp.lt.s32.totalorder %v224, 0
      %v226 = vsub.s32 0, %v224
      %v227 = vsel %vm225, %v226, %v224
      %v228 = vmul.u32.u64.compose %v227, 3435973837
      %v229 = vextract.low.u32 %v228
      %v230 = vextract.high.u32 %v228
      %v231 = vshrl.u32 %v230, 3
      %v232 = vmul.u32 %v231, 10
      %v233 = vsub.s32 %v227, %v232
      %v234 = vsub.s32 0, %v233
      %v235 = vsel %vm225, %v234, %v233
      %vm236 = vcmp.ne.s32.totalorder %v235, 0
      %vm237 = vcmp.lt.s32.totalorder %v235, 0
      %vm238 = vmand %vm237, %vm236
      %v239 = vadd.s32 %v235, 10
      %v240 = vsel %vm238, %v239, %v235
      %vm241 = vcmp.lt.s32.totalorder %v240, 8
      %v242 = vld [vmem:[%s216] sm:$0x3]
      %v243 = vld [vmem:[%s1] sm:$0xf]
      %v244 = vld [vmem:[%s1 + $0x4] sm:$0xf]
      %v245 = vld [vmem:[%s1 + $0x8] sm:$0xf]
      %v246 = vld [vmem:[%s1 + $0xc] sm:$0xf]
      %v248 = vcombine.low %v242, %v242
      %v250 = vunpack.c.l.s4 1983009808
      %v251 = vunpack.c.0.s8 %v250
      %v252 = vlaneseq
      %v253 = vshrl.u32 %v252, 7
      %v254 = vsub.s32 %v251, %v253
      %v255 = vrot.slane %v248, %v254
      %v257 = vunpack.c.l.s4 1983009808
      %v258 = vunpack.c.0.s8 %v257
      %v259 = vlaneseq
      %v260 = vshrl.u32 %v259, 7
      %v261 = vsub.s32 %v258, %v260
      %v262 = vrot.slane %v242, %v261
      %263 = vrot.lane.b32.xlu0 %v255, 127
      %v264 = vpop.permute.xlu0 %263
      %v265 = vcombine.low %v262, %v262
      %266 = vrot.lane.b32.xlu0 %v265, 126
      %v267 = vpop.permute.xlu0 %266
      %v268 = vcombine.low %v255, %v255
      %269 = vrot.lane.b32.xlu0 %v268, 118
      %v270 = vpop.permute.xlu0 %269
      %271 = vrot.lane.b32.xlu0 %v262, 117
      %v272 = vpop.permute.xlu0 %271
      %273 = vrot.lane.b32.xlu0 %v255, 116
      %v274 = vpop.permute.xlu0 %273
      %275 = vrot.lane.b32.xlu0 %v265, 108
      %v276 = vpop.permute.xlu0 %275
      %277 = vrot.lane.b32.xlu0 %v268, 107
      %v278 = vpop.permute.xlu0 %277
      %279 = vrot.lane.b32.xlu0 %v262, 106
      %v280 = vpop.permute.xlu0 %279
      %vm281 = vcmask 1041408
      %v284 = vsel %vm281, %v242, %v264
      %vm285 = vcmask 1043456
      %v287 = vsel %vm285, %v284, %v267
      %vm288 = vcmask 1045504
      %v290 = vsel %vm288, %v287, %v270
      %v294 = vsel %vm281, %v272, %v274
      %v296 = vsel %vm285, %v294, %v276
      %v298 = vsel %vm288, %v296, %v278
      %v300 = vld [vmem:[%s2] sm:$0xff]
      %v301 = vld [vmem:[%s2 + $0x8] sm:$0xff]
      %v302 = vld [vmem:[%s2 + $0x10] sm:$0xff]
      %v303 = vld [vmem:[%s2 + $0x18] sm:$0xff]
      %305 = vset.pattern.permute.xlu0 0
      %306 = vperm.xlu0 %305, %v300
      %v307 = vpop.permute.xlu0 %306
      %310 = vset.pattern.permute.xlu0 0
      %311 = vperm.xlu0 %310, %v301
      %v312 = vpop.permute.xlu0 %311
      %315 = vset.pattern.permute.xlu0 0
      %316 = vperm.xlu0 %315, %v302
      %v317 = vpop.permute.xlu0 %316
      %320 = vset.pattern.permute.xlu0 0
      %321 = vperm.xlu0 %320, %v303
      %v322 = vpop.permute.xlu0 %321
      %v328 = vunpack.c.l.b16 %v243
      %v329 = vunpack.c.l.b16 %v244
      %v330 = vunpack.c.l.b16 %v245
      %v331 = vunpack.c.l.b16 %v246
      %v332 = vpack.c.b16 %v329, %v328
      %v333 = vpack.c.b16 %v331, %v330
      %vm334 = vcmask 293888
      %v336 = vsel %vm334, %v332, 0
      %v339 = vsel %vm334, %v333, 0
      %v342 = vsel %vm281, %v280, 0
      %344 = vmatprep.subr.bf16.mxu0 0
      %345 = vmatpush1.bf16.msra.mxu0 %v290
      %346 = vmatprep.subr.bf16.mxu0 0
      %347 = vmatpush1.bf16.msra.mxu0 %v298
      %348 = vmatprep.subr.bf16.mxu0 0
      %349 = vmatpush1.bf16.msra.mxu0 %v342
      %350 = vmatprep.subr.bf16.mxu0 0
      %351 = vmatpush1.bf16.msra.mxu0 0
      %352 = vmatprep.subr.bf16.mxu0 0
      %353 = vmatpush1.bf16.msra.mxu0 0
      %354 = vmatprep.subr.bf16.mxu0 0
      %355 = vmatpush1.bf16.msra.mxu0 0
      %356 = vmatprep.subr.bf16.mxu0 0
      %357 = vmatpush1.bf16.msra.mxu0 0
      %358 = vmatprep.subr.bf16.mxu0 0
      %359 = vmatpush1.bf16.msra.mxu0 0
      %360 = vmatprep.subr.bf16.mxu0 0
      %361 = vmatpush1.bf16.msra.mxu0 0
      %362 = vmatprep.subr.bf16.mxu0 0
      %363 = vmatpush1.bf16.msra.mxu0 0
      %364 = vmatprep.subr.bf16.mxu0 0
      %365 = vmatpush1.bf16.msra.mxu0 0
      %366 = vmatprep.subr.bf16.mxu0 0
      %367 = vmatpush1.bf16.msra.mxu0 0
      %368 = vmatprep.subr.bf16.mxu0 0
      %369 = vmatpush1.bf16.msra.mxu0 0
      %370 = vmatprep.subr.bf16.mxu0 0
      %371 = vmatpush1.bf16.msra.mxu0 0
      %372 = vmatprep.subr.bf16.mxu0 0
      %373 = vmatpush1.bf16.msra.mxu0 0
      %374 = vmatprep.subr.bf16.mxu0 0
      %375 = vmatpush1.bf16.msra.mxu0 0
      %376 = vmatprep.mubr.bf16.mxu0 0
      %377 = vmatmul.mubr.bf16.gmra.mrb[0].mxu0 %v336
      %v378 = vpop.f32.mrb[0].mxu0
      %v379 = vadd.f32 %v307, %v378
      %v380 = vpop.f32.mrb[0].mxu0
      %v381 = vpop.f32.mrb[0].mxu0
      %v382 = vadd.f32 %v312, %v381
      %v383 = vpop.f32.mrb[0].mxu0
      %384 = vmatprep.mubr.bf16.mxu0 0
      %385 = vmatmul.mubr.bf16.gmra.mrb[0].mxu0 %v339
      %v386 = vpop.f32.mrb[0].mxu0
      %v387 = vadd.f32 %v317, %v386
      %v388 = vpop.f32.mrb[0].mxu0
      %v389 = vpop.f32.mrb[0].mxu0
      %v390 = vadd.f32 %v322, %v389
      %v391 = vpop.f32.mrb[0].mxu0
      %392 = vdwg.mxu0
      %v393 = vsel %vm241, 1, 0
      %vm394 = vcmp.eq.s32.totalorder %v393, 1
      %v395 = vsel %vm394, %v379, 0.0
      %v396 = vsel %vm394, %v382, 0.0
      %v397 = vsel %vm394, %v387, 0.0
      %v398 = vsel %vm394, %v390, 0.0
      %403 = vrot.lane.b32.xlu0 %v395, 11
      %v404 = vpop.permute.xlu0 %403
      %405 = vrot.lane.b32.xlu0 %v396, 11
      %v406 = vpop.permute.xlu0 %405
      %407 = vrot.lane.b32.xlu0 %v397, 11
      %v408 = vpop.permute.xlu0 %407
      %409 = vrot.lane.b32.xlu0 %v398, 11
      %v410 = vpop.permute.xlu0 %409
      %vm415 = vcmask 89088
      %v416 = vsel %vm415, 0.0, %v404
      %v417 = vsel %vm415, 0.0, %v406
      %v418 = vsel %vm415, 0.0, %v408
      %v419 = vsel %vm415, 0.0, %v410
      %vm420 = vcmask 744448
      %v421 = vsel %vm420, %v416, 0.0
      %v422 = vsel %vm420, %v417, 0.0
      %v423 = vsel %vm420, %v418, 0.0
      %v424 = vsel %vm420, %v419, 0.0
      %v425 = vmul.f32 %v421, 0.5
      %v426 = vmul.f32 %v422, 0.5
      %v427 = vmul.f32 %v423, 0.5
      %v428 = vmul.f32 %v424, 0.5
      %v429 = vmul.f32 %v421, 0.70710677
      %v430 = vmul.f32 %v422, 0.70710677
      %v431 = vmul.f32 %v423, 0.70710677
      %v432 = vmul.f32 %v424, 0.70710677
      %v433 = verf.f32.pop %v429
      %v434 = verf.f32.pop %v430
      %v435 = verf.f32.pop %v431
      %v436 = verf.f32.pop %v432
      %v437 = vadd.f32 %v433, 1.0
      %v438 = vadd.f32 %v434, 1.0
      %v439 = vadd.f32 %v435, 1.0
      %v440 = vadd.f32 %v436, 1.0
      %v441 = vmul.f32 %v425, %v437
      %v442 = vmul.f32 %v426, %v438
      %v443 = vmul.f32 %v427, %v439
      %v444 = vmul.f32 %v428, %v440
      %v445 = vpack.c.bf16 %v442, %v441
      %v446 = vpack.c.bf16 %v444, %v443
      %v447 = vld [vmem:[%s3] sm:$0xff]
      %v448 = vld [vmem:[%s3 + $0x8] sm:$0xf]
      %v449 = vld [vmem:[%s3 + $0xc] sm:$0xff]
      %v450 = vld [vmem:[%s3 + $0x14] sm:$0xf]
      %453 = vrot.lane.b32.xlu0 %v445, 127
      %v454 = vpop.permute.xlu0 %453
      %455 = vrot.lane.b32.xlu0 %v446, 127
      %v456 = vpop.permute.xlu0 %455
      %459 = vrot.lane.b32.xlu0 %v445, 126
      %v460 = vpop.permute.xlu0 %459
      %461 = vrot.lane.b32.xlu0 %v446, 126
      %v462 = vpop.permute.xlu0 %461
      %465 = vrot.lane.b32.xlu0 %v445, 118
      %v466 = vpop.permute.xlu0 %465
      %467 = vrot.lane.b32.xlu0 %v446, 118
      %v468 = vpop.permute.xlu0 %467
      %471 = vrot.lane.b32.xlu0 %v445, 117
      %v472 = vpop.permute.xlu0 %471
      %473 = vrot.lane.b32.xlu0 %v446, 117
      %v474 = vpop.permute.xlu0 %473
      %477 = vrot.lane.b32.xlu0 %v445, 116
      %v478 = vpop.permute.xlu0 %477
      %479 = vrot.lane.b32.xlu0 %v446, 116
      %v480 = vpop.permute.xlu0 %479
      %483 = vrot.lane.b32.xlu0 %v445, 108
      %v484 = vpop.permute.xlu0 %483
      %485 = vrot.lane.b32.xlu0 %v446, 108
      %v486 = vpop.permute.xlu0 %485
      %489 = vrot.lane.b32.xlu0 %v445, 107
      %v490 = vpop.permute.xlu0 %489
      %491 = vrot.lane.b32.xlu0 %v446, 107
      %v492 = vpop.permute.xlu0 %491
      %495 = vrot.lane.b32.xlu0 %v445, 106
      %v496 = vpop.permute.xlu0 %495
      %497 = vrot.lane.b32.xlu0 %v446, 106
      %v498 = vpop.permute.xlu0 %497
      %v505 = vunpack.c.l.b16 %v447
      %v506 = vunpack.c.h.b16 %v447
      %v507 = vunpack.c.l.b16 %v448
      %v508 = vunpack.c.l.b16 %v449
      %v509 = vunpack.c.h.b16 %v449
      %v510 = vunpack.c.l.b16 %v450
      %v511 = vpack.c.b16 %v508, %v505
      %v512 = vpack.c.b16 %v509, %v506
      %v513 = vpack.c.b16 %v510, %v507
      %vm516 = vcmask 261120
      %v518 = vsel %vm516, %v513, 0
      %520 = vmatprep.subr.bf16.mxu0 0
      %521 = vmatpush1.bf16.msra.mxu0 %v445
      %522 = vmatprep.subr.bf16.mxu0 0
      %523 = vmatpush1.bf16.msra.mxu0 %v446
      %524 = vmatprep.subr.bf16.mxu0 0
      %525 = vmatpush1.bf16.msra.mxu0 %v454
      %526 = vmatprep.subr.bf16.mxu0 0
      %527 = vmatpush1.bf16.msra.mxu0 %v456
      %528 = vmatprep.subr.bf16.mxu0 0
      %529 = vmatpush1.bf16.msra.mxu0 %v460
      %530 = vmatprep.subr.bf16.mxu0 0
      %531 = vmatpush1.bf16.msra.mxu0 %v462
      %532 = vmatprep.subr.bf16.mxu0 0
      %533 = vmatpush1.bf16.msra.mxu0 %v466
      %534 = vmatprep.subr.bf16.mxu0 0
      %535 = vmatpush1.bf16.msra.mxu0 %v468
      %536 = vmatprep.subr.bf16.mxu0 0
      %537 = vmatpush1.bf16.msra.mxu0 %v472
      %538 = vmatprep.subr.bf16.mxu0 0
      %539 = vmatpush1.bf16.msra.mxu0 %v474
      %540 = vmatprep.subr.bf16.mxu0 0
      %541 = vmatpush1.bf16.msra.mxu0 %v478
      %542 = vmatprep.subr.bf16.mxu0 0
      %543 = vmatpush1.bf16.msra.mxu0 %v480
      %544 = vmatprep.subr.bf16.mxu0 0
      %545 = vmatpush1.bf16.msra.mxu0 %v484
      %546 = vmatprep.subr.bf16.mxu0 0
      %547 = vmatpush1.bf16.msra.mxu0 %v486
      %548 = vmatprep.subr.bf16.mxu0 0
      %549 = vmatpush1.bf16.msra.mxu0 %v490
      %550 = vmatprep.subr.bf16.mxu0 0
      %551 = vmatpush1.bf16.msra.mxu0 %v492
      %552 = vmatprep.mubr.bf16.mxu0 %v512
      %553 = vmatmul.mubr.bf16.gmra.mrb[0].mxu0 %v511
      %v554 = vpop.f32.mrb[0].mxu0
      %v555 = vadd.f32 0.0, %v554
      %v556 = vpop.f32.mrb[0].mxu0
      %v557 = vpop.f32.mrb[0].mxu0
      %v558 = vadd.f32 0.0, %v557
      %v559 = vpop.f32.mrb[0].mxu0
      %560 = vdwg.mxu0
      %561 = vmatprep.subr.bf16.mxu0 0
      %562 = vmatpush1.bf16.msra.mxu0 %v496
      %563 = vmatprep.subr.bf16.mxu0 0
      %564 = vmatpush1.bf16.msra.mxu0 %v498
      %565 = vmatprep.subr.bf16.mxu0 0
      %566 = vmatpush1.bf16.msra.mxu0 0
      %567 = vmatprep.subr.bf16.mxu0 0
      %568 = vmatpush1.bf16.msra.mxu0 0
      %569 = vmatprep.subr.bf16.mxu0 0
      %570 = vmatpush1.bf16.msra.mxu0 0
      %571 = vmatprep.subr.bf16.mxu0 0
      %572 = vmatpush1.bf16.msra.mxu0 0
      %573 = vmatprep.subr.bf16.mxu0 0
      %574 = vmatpush1.bf16.msra.mxu0 0
      %575 = vmatprep.subr.bf16.mxu0 0
      %576 = vmatpush1.bf16.msra.mxu0 0
      %577 = vmatprep.subr.bf16.mxu0 0
      %578 = vmatpush1.bf16.msra.mxu0 0
      %579 = vmatprep.subr.bf16.mxu0 0
      %580 = vmatpush1.bf16.msra.mxu0 0
      %581 = vmatprep.subr.bf16.mxu0 0
      %582 = vmatpush1.bf16.msra.mxu0 0
      %583 = vmatprep.subr.bf16.mxu0 0
      %584 = vmatpush1.bf16.msra.mxu0 0
      %585 = vmatprep.subr.bf16.mxu0 0
      %586 = vmatpush1.bf16.msra.mxu0 0
      %587 = vmatprep.subr.bf16.mxu0 0
      %588 = vmatpush1.bf16.msra.mxu0 0
      %589 = vmatprep.subr.bf16.mxu0 0
      %590 = vmatpush1.bf16.msra.mxu0 0
      %591 = vmatprep.subr.bf16.mxu0 0
      %592 = vmatpush1.bf16.msra.mxu0 0
      %593 = vmatprep.mubr.bf16.mxu0 0
      %594 = vmatmul.mubr.bf16.gmra.mrb[0].mxu0 %v518
      %v595 = vpop.f32.mrb[0].mxu0
      %v596 = vadd.f32 %v555, %v595
      %v597 = vpop.f32.mrb[0].mxu0
      %v598 = vpop.f32.mrb[0].mxu0
      %v599 = vadd.f32 %v558, %v598
      %v600 = vpop.f32.mrb[0].mxu0
      %601 = vdwg.mxu0
      %v602 = vmul.f32 %v596, 0.5
      %v603 = vmul.f32 %v599, 0.5
      %v604 = vmul.f32 %v596, 0.70710677
      %v605 = vmul.f32 %v599, 0.70710677
      %v606 = verf.f32.pop %v604
      %v607 = verf.f32.pop %v605
      %v608 = vadd.f32 %v606, 1.0
      %v609 = vadd.f32 %v607, 1.0
      %v610 = vmul.f32 %v602, %v608
      %v611 = vmul.f32 %v603, %v609
      %v612 = vpack.c.bf16 %v611, %v610
      %v613 = vld [vmem:[%s4] sm:$0xf]
      %v614 = vld [vmem:[%s4 + $0x4] sm:$0xf]
      %v615 = vld [vmem:[%s4 + $0x8] sm:$0xf]
      %v616 = vld [vmem:[%s4 + $0xc] sm:$0xf]
      %v621 = vunpack.c.l.b16 %v613
      %v622 = vunpack.c.l.b16 %v614
      %v623 = vunpack.c.l.b16 %v615
      %v624 = vunpack.c.l.b16 %v616
      %v625 = vpack.c.b16 %v622, %v621
      %v626 = vpack.c.b16 %v624, %v623
      %vm627 = vcmask 130048
      %v629 = vsel %vm627, %v625, 0
      %v632 = vsel %vm627, %v626, 0
      %634 = vmatprep.subr.bf16.mxu0 0
      %635 = vmatpush1.bf16.msra.mxu0 %v612
      %636 = vmatprep.subr.bf16.mxu0 0
      %637 = vmatpush1.bf16.msra.mxu0 0
      %638 = vmatprep.subr.bf16.mxu0 0
      %639 = vmatpush1.bf16.msra.mxu0 0
      %640 = vmatprep.subr.bf16.mxu0 0
      %641 = vmatpush1.bf16.msra.mxu0 0
      %642 = vmatprep.subr.bf16.mxu0 0
      %643 = vmatpush1.bf16.msra.mxu0 0
      %644 = vmatprep.subr.bf16.mxu0 0
      %645 = vmatpush1.bf16.msra.mxu0 0
      %646 = vmatprep.subr.bf16.mxu0 0
      %647 = vmatpush1.bf16.msra.mxu0 0
      %648 = vmatprep.subr.bf16.mxu0 0
      %649 = vmatpush1.bf16.msra.mxu0 0
      %650 = vmatprep.subr.bf16.mxu0 0
      %651 = vmatpush1.bf16.msra.mxu0 0
      %652 = vmatprep.subr.bf16.mxu0 0
      %653 = vmatpush1.bf16.msra.mxu0 0
      %654 = vmatprep.subr.bf16.mxu0 0
      %655 = vmatpush1.bf16.msra.mxu0 0
      %656 = vmatprep.subr.bf16.mxu0 0
      %657 = vmatpush1.bf16.msra.mxu0 0
      %658 = vmatprep.subr.bf16.mxu0 0
      %659 = vmatpush1.bf16.msra.mxu0 0
      %660 = vmatprep.subr.bf16.mxu0 0
      %661 = vmatpush1.bf16.msra.mxu0 0
      %662 = vmatprep.subr.bf16.mxu0 0
      %663 = vmatpush1.bf16.msra.mxu0 0
      %664 = vmatprep.subr.bf16.mxu0 0
      %665 = vmatpush1.bf16.msra.mxu0 0
      %666 = vmatprep.mubr.bf16.mxu0 0
      %667 = vmatmul.mubr.bf16.gmra.mrb[0].mxu0 %v629
      %v668 = vpop.f32.mrb[0].mxu0
      %v669 = vadd.f32 0.0, %v668
      %v670 = vpop.f32.mrb[0].mxu0
      %v671 = vpop.f32.mrb[0].mxu0
      %v672 = vadd.f32 0.0, %v671
      %v673 = vpop.f32.mrb[0].mxu0
      %674 = vmatprep.mubr.bf16.mxu0 0
      %675 = vmatmul.mubr.bf16.gmra.mrb[0].mxu0 %v632
      %v676 = vpop.f32.mrb[0].mxu0
      %v677 = vadd.f32 0.0, %v676
      %v678 = vpop.f32.mrb[0].mxu0
      %v679 = vpop.f32.mrb[0].mxu0
      %v680 = vadd.f32 0.0, %v679
      %v681 = vpop.f32.mrb[0].mxu0
      %682 = vdwg.mxu0
      %v683 = vsel %vm394, %v669, 0.0
      %v684 = vsel %vm394, %v672, 0.0
      %v685 = vsel %vm394, %v677, 0.0
      %v686 = vsel %vm394, %v680, 0.0
      %691 = vrot.lane.b32.xlu0 %v683, 11
      %v692 = vpop.permute.xlu0 %691
      %693 = vrot.lane.b32.xlu0 %v684, 11
      %v694 = vpop.permute.xlu0 %693
      %695 = vrot.lane.b32.xlu0 %v685, 11
      %v696 = vpop.permute.xlu0 %695
      %697 = vrot.lane.b32.xlu0 %v686, 11
      %v698 = vpop.permute.xlu0 %697
      %v703 = vsel %vm415, 0.0, %v692
      %v704 = vsel %vm415, 0.0, %v694
      %v705 = vsel %vm415, 0.0, %v696
      %v706 = vsel %vm415, 0.0, %v698
      %v707 = vsel %vm420, %v703, 0.0
      %v708 = vsel %vm420, %v704, 0.0
      %v709 = vsel %vm420, %v705, 0.0
      %v710 = vsel %vm420, %v706, 0.0
      %v711 = vadd.f32 %v421, %v707
      %v712 = vadd.f32 %v422, %v708
      %v713 = vadd.f32 %v423, %v709
      %v714 = vadd.f32 %v424, %v710
      %v715 = vmul.f32 %v711, 0.5
      %v716 = vmul.f32 %v712, 0.5
      %v717 = vmul.f32 %v713, 0.5
      %v718 = vmul.f32 %v714, 0.5
      %v719 = vmul.f32 %v711, 0.70710677
      %v720 = vmul.f32 %v712, 0.70710677
      %v721 = vmul.f32 %v713, 0.70710677
      %v722 = vmul.f32 %v714, 0.70710677
      %v723 = verf.f32.pop %v719
      %v724 = verf.f32.pop %v720
      %v725 = verf.f32.pop %v721
      %v726 = verf.f32.pop %v722
      %v727 = vadd.f32 %v723, 1.0
      %v728 = vadd.f32 %v724, 1.0
      %v729 = vadd.f32 %v725, 1.0
      %v730 = vadd.f32 %v726, 1.0
      %v731 = vmul.f32 %v715, %v727
      %v732 = vmul.f32 %v716, %v728
      %v733 = vmul.f32 %v717, %v729
      %v734 = vmul.f32 %v718, %v730
      %v735 = vpack.c.bf16 %v732, %v731
      %v736 = vpack.c.bf16 %v734, %v733
      %s737 = scalar_lea.vmem %s3, 24
      %v738 = vld [vmem:[%s737] sm:$0xff]
      %v739 = vld [vmem:[%s737 + $0x8] sm:$0xf]
      %v740 = vld [vmem:[%s737 + $0xc] sm:$0xff]
      %v741 = vld [vmem:[%s737 + $0x14] sm:$0xf]
      %744 = vrot.lane.b32.xlu0 %v735, 127
      %v745 = vpop.permute.xlu0 %744
      %746 = vrot.lane.b32.xlu0 %v736, 127
      %v747 = vpop.permute.xlu0 %746
      %750 = vrot.lane.b32.xlu0 %v735, 126
      %v751 = vpop.permute.xlu0 %750
      %752 = vrot.lane.b32.xlu0 %v736, 126
      %v753 = vpop.permute.xlu0 %752
      %756 = vrot.lane.b32.xlu0 %v735, 118
      %v757 = vpop.permute.xlu0 %756
      %758 = vrot.lane.b32.xlu0 %v736, 118
      %v759 = vpop.permute.xlu0 %758
      %762 = vrot.lane.b32.xlu0 %v735, 117
      %v763 = vpop.permute.xlu0 %762
      %764 = vrot.lane.b32.xlu0 %v736, 117
      %v765 = vpop.permute.xlu0 %764
      %768 = vrot.lane.b32.xlu0 %v735, 116
      %v769 = vpop.permute.xlu0 %768
      %770 = vrot.lane.b32.xlu0 %v736, 116
      %v771 = vpop.permute.xlu0 %770
      %774 = vrot.lane.b32.xlu0 %v735, 108
      %v775 = vpop.permute.xlu0 %774
      %776 = vrot.lane.b32.xlu0 %v736, 108
      %v777 = vpop.permute.xlu0 %776
      %780 = vrot.lane.b32.xlu0 %v735, 107
      %v781 = vpop.permute.xlu0 %780
      %782 = vrot.lane.b32.xlu0 %v736, 107
      %v783 = vpop.permute.xlu0 %782
      %786 = vrot.lane.b32.xlu0 %v735, 106
      %v787 = vpop.permute.xlu0 %786
      %788 = vrot.lane.b32.xlu0 %v736, 106
      %v789 = vpop.permute.xlu0 %788
      %v796 = vunpack.c.l.b16 %v738
      %v797 = vunpack.c.h.b16 %v738
      %v798 = vunpack.c.l.b16 %v739
      %v799 = vunpack.c.l.b16 %v740
      %v800 = vunpack.c.h.b16 %v740
      %v801 = vunpack.c.l.b16 %v741
      %v802 = vpack.c.b16 %v799, %v796
      %v803 = vpack.c.b16 %v800, %v797
      %v804 = vpack.c.b16 %v801, %v798
      %v808 = vsel %vm516, %v804, 0
      %810 = vmatprep.subr.bf16.mxu0 0
      %811 = vmatpush1.bf16.msra.mxu0 %v735
      %812 = vmatprep.subr.bf16.mxu0 0
      %813 = vmatpush1.bf16.msra.mxu0 %v736
      %814 = vmatprep.subr.bf16.mxu0 0
      %815 = vmatpush1.bf16.msra.mxu0 %v745
      %816 = vmatprep.subr.bf16.mxu0 0
      %817 = vmatpush1.bf16.msra.mxu0 %v747
      %818 = vmatprep.subr.bf16.mxu0 0
      %819 = vmatpush1.bf16.msra.mxu0 %v751
      %820 = vmatprep.subr.bf16.mxu0 0
      %821 = vmatpush1.bf16.msra.mxu0 %v753
      %822 = vmatprep.subr.bf16.mxu0 0
      %823 = vmatpush1.bf16.msra.mxu0 %v757
      %824 = vmatprep.subr.bf16.mxu0 0
      %825 = vmatpush1.bf16.msra.mxu0 %v759
      %826 = vmatprep.subr.bf16.mxu0 0
      %827 = vmatpush1.bf16.msra.mxu0 %v763
      %828 = vmatprep.subr.bf16.mxu0 0
      %829 = vmatpush1.bf16.msra.mxu0 %v765
      %830 = vmatprep.subr.bf16.mxu0 0
      %831 = vmatpush1.bf16.msra.mxu0 %v769
      %832 = vmatprep.subr.bf16.mxu0 0
      %833 = vmatpush1.bf16.msra.mxu0 %v771
      %834 = vmatprep.subr.bf16.mxu0 0
      %835 = vmatpush1.bf16.msra.mxu0 %v775
      %836 = vmatprep.subr.bf16.mxu0 0
      %837 = vmatpush1.bf16.msra.mxu0 %v777
      %838 = vmatprep.subr.bf16.mxu0 0
      %839 = vmatpush1.bf16.msra.mxu0 %v781
      %840 = vmatprep.subr.bf16.mxu0 0
      %841 = vmatpush1.bf16.msra.mxu0 %v783
      %842 = vmatprep.mubr.bf16.mxu0 %v803
      %843 = vmatmul.mubr.bf16.gmra.mrb[0].mxu0 %v802
      %v844 = vpop.f32.mrb[0].mxu0
      %v845 = vadd.f32 0.0, %v844
      %v846 = vpop.f32.mrb[0].mxu0
      %v847 = vpop.f32.mrb[0].mxu0
      %v848 = vadd.f32 0.0, %v847
      %v849 = vpop.f32.mrb[0].mxu0
      %850 = vdwg.mxu0
      %851 = vmatprep.subr.bf16.mxu0 0
      %852 = vmatpush1.bf16.msra.mxu0 %v787
      %853 = vmatprep.subr.bf16.mxu0 0
      %854 = vmatpush1.bf16.msra.mxu0 %v789
      %855 = vmatprep.subr.bf16.mxu0 0
      %856 = vmatpush1.bf16.msra.mxu0 0
      %857 = vmatprep.subr.bf16.mxu0 0
      %858 = vmatpush1.bf16.msra.mxu0 0
      %859 = vmatprep.subr.bf16.mxu0 0
      %860 = vmatpush1.bf16.msra.mxu0 0
      %861 = vmatprep.subr.bf16.mxu0 0
      %862 = vmatpush1.bf16.msra.mxu0 0
      %863 = vmatprep.subr.bf16.mxu0 0
      %864 = vmatpush1.bf16.msra.mxu0 0
      %865 = vmatprep.subr.bf16.mxu0 0
      %866 = vmatpush1.bf16.msra.mxu0 0
      %867 = vmatprep.subr.bf16.mxu0 0
      %868 = vmatpush1.bf16.msra.mxu0 0
      %869 = vmatprep.subr.bf16.mxu0 0
      %870 = vmatpush1.bf16.msra.mxu0 0
      %871 = vmatprep.subr.bf16.mxu0 0
      %872 = vmatpush1.bf16.msra.mxu0 0
      %873 = vmatprep.subr.bf16.mxu0 0
      %874 = vmatpush1.bf16.msra.mxu0 0
      %875 = vmatprep.subr.bf16.mxu0 0
      %876 = vmatpush1.bf16.msra.mxu0 0
      %877 = vmatprep.subr.bf16.mxu0 0
      %878 = vmatpush1.bf16.msra.mxu0 0
      %879 = vmatprep.subr.bf16.mxu0 0
      %880 = vmatpush1.bf16.msra.mxu0 0
      %881 = vmatprep.subr.bf16.mxu0 0
      %882 = vmatpush1.bf16.msra.mxu0 0
      %883 = vmatprep.mubr.bf16.mxu0 0
      %884 = vmatmul.mubr.bf16.gmra.mrb[0].mxu0 %v808
      %v885 = vpop.f32.mrb[0].mxu0
      %v886 = vadd.f32 %v845, %v885
      %v887 = vpop.f32.mrb[0].mxu0
      %v888 = vpop.f32.mrb[0].mxu0
      %v889 = vadd.f32 %v848, %v888
      %v890 = vpop.f32.mrb[0].mxu0
      %891 = vdwg.mxu0
      %v892 = vmul.f32 %v886, 0.5
      %v893 = vmul.f32 %v889, 0.5
      %v894 = vmul.f32 %v886, 0.70710677
      %v895 = vmul.f32 %v889, 0.70710677
      %v896 = verf.f32.pop %v894
      %v897 = verf.f32.pop %v895
      %v898 = vadd.f32 %v896, 1.0
      %v899 = vadd.f32 %v897, 1.0
      %v900 = vmul.f32 %v892, %v898
      %v901 = vmul.f32 %v893, %v899
      %v902 = vpack.c.bf16 %v901, %v900
      %s903 = scalar_lea.vmem %s4, 16
      %v904 = vld [vmem:[%s903] sm:$0xf]
      %v905 = vld [vmem:[%s903 + $0x4] sm:$0xf]
      %v906 = vld [vmem:[%s903 + $0x8] sm:$0xf]
      %v907 = vld [vmem:[%s903 + $0xc] sm:$0xf]
      %v912 = vunpack.c.l.b16 %v904
      %v913 = vunpack.c.l.b16 %v905
      %v914 = vunpack.c.l.b16 %v906
      %v915 = vunpack.c.l.b16 %v907
      %v916 = vpack.c.b16 %v913, %v912
      %v917 = vpack.c.b16 %v915, %v914
      %v919 = vsel %vm627, %v916, 0
      %v922 = vsel %vm627, %v917, 0
      %924 = vmatprep.subr.bf16.mxu0 0
      %925 = vmatpush1.bf16.msra.mxu0 %v902
      %926 = vmatprep.subr.bf16.mxu0 0
      %927 = vmatpush1.bf16.msra.mxu0 0
      %928 = vmatprep.subr.bf16.mxu0 0
      %929 = vmatpush1.bf16.msra.mxu0 0
      %930 = vmatprep.subr.bf16.mxu0 0
      %931 = vmatpush1.bf16.msra.mxu0 0
      %932 = vmatprep.subr.bf16.mxu0 0
      %933 = vmatpush1.bf16.msra.mxu0 0
      %934 = vmatprep.subr.bf16.mxu0 0
      %935 = vmatpush1.bf16.msra.mxu0 0
      %936 = vmatprep.subr.bf16.mxu0 0
      %937 = vmatpush1.bf16.msra.mxu0 0
      %938 = vmatprep.subr.bf16.mxu0 0
      %939 = vmatpush1.bf16.msra.mxu0 0
      %940 = vmatprep.subr.bf16.mxu0 0
      %941 = vmatpush1.bf16.msra.mxu0 0
      %942 = vmatprep.subr.bf16.mxu0 0
      %943 = vmatpush1.bf16.msra.mxu0 0
      %944 = vmatprep.subr.bf16.mxu0 0
      %945 = vmatpush1.bf16.msra.mxu0 0
      %946 = vmatprep.subr.bf16.mxu0 0
      %947 = vmatpush1.bf16.msra.mxu0 0
      %948 = vmatprep.subr.bf16.mxu0 0
      %949 = vmatpush1.bf16.msra.mxu0 0
      %950 = vmatprep.subr.bf16.mxu0 0
      %951 = vmatpush1.bf16.msra.mxu0 0
      %952 = vmatprep.subr.bf16.mxu0 0
      %953 = vmatpush1.bf16.msra.mxu0 0
      %954 = vmatprep.subr.bf16.mxu0 0
      %955 = vmatpush1.bf16.msra.mxu0 0
      %956 = vmatprep.mubr.bf16.mxu0 0
      %957 = vmatmul.mubr.bf16.gmra.mrb[0].mxu0 %v919
      %v958 = vpop.f32.mrb[0].mxu0
      %v959 = vadd.f32 0.0, %v958
      %v960 = vpop.f32.mrb[0].mxu0
      %v961 = vpop.f32.mrb[0].mxu0
      %v962 = vadd.f32 0.0, %v961
      %v963 = vpop.f32.mrb[0].mxu0
      %964 = vmatprep.mubr.bf16.mxu0 0
      %965 = vmatmul.mubr.bf16.gmra.mrb[0].mxu0 %v922
      %v966 = vpop.f32.mrb[0].mxu0
      %v967 = vadd.f32 0.0, %v966
      %v968 = vpop.f32.mrb[0].mxu0
      %v969 = vpop.f32.mrb[0].mxu0
      %v970 = vadd.f32 0.0, %v969
      %v971 = vpop.f32.mrb[0].mxu0
      %972 = vdwg.mxu0
      %v973 = vsel %vm394, %v959, 0.0
      %v974 = vsel %vm394, %v962, 0.0
      %v975 = vsel %vm394, %v967, 0.0
      %v976 = vsel %vm394, %v970, 0.0
      %981 = vrot.lane.b32.xlu0 %v973, 11
      %v982 = vpop.permute.xlu0 %981
      %983 = vrot.lane.b32.xlu0 %v974, 11
      %v984 = vpop.permute.xlu0 %983
      %985 = vrot.lane.b32.xlu0 %v975, 11
      %v986 = vpop.permute.xlu0 %985
      %987 = vrot.lane.b32.xlu0 %v976, 11
      %v988 = vpop.permute.xlu0 %987
      %v993 = vsel %vm415, 0.0, %v982
      %v994 = vsel %vm415, 0.0, %v984
      %v995 = vsel %vm415, 0.0, %v986
      %v996 = vsel %vm415, 0.0, %v988
      %v997 = vsel %vm420, %v993, 0.0
      %v998 = vsel %vm420, %v994, 0.0
      %v999 = vsel %vm420, %v995, 0.0
      %v1000 = vsel %vm420, %v996, 0.0
      %v1001 = vadd.f32 %v711, %v997
      %v1002 = vadd.f32 %v712, %v998
      %v1003 = vadd.f32 %v713, %v999
      %v1004 = vadd.f32 %v714, %v1000
      %v1005 = vpack.c.bf16 %v1002, %v1001
      %v1006 = vpack.c.bf16 %v1004, %v1003
      %v1009 = vunpack.c.l.b16 %v1005
      %v1010 = vunpack.c.h.b16 %v1005
      %v1011 = vunpack.c.l.b16 %v1006
      %v1012 = vunpack.c.h.b16 %v1006
      %v1013 = vpack.c.b16 %v1009, %v1009
      %v1014 = vpack.c.b16 %v1010, %v1010
      %v1015 = vpack.c.b16 %v1011, %v1011
      %v1016 = vpack.c.b16 %v1012, %v1012
      %vm1021 = vcmask 830464
      %1022 = vst.msk [vmem:[%s221] sm:$0xf] %vm1021, %v1013
      %1023 = vst.msk [vmem:[%s221 + $0x4] sm:$0xf] %vm1021, %v1014
      %1024 = vst.msk [vmem:[%s221 + $0x8] sm:$0xf] %vm1021, %v1015
      %1025 = vst.msk [vmem:[%s221 + $0xc] sm:$0xf] %vm1021, %v1016
      %p1026 = scmp.lt.s32.totalorder %s16, 1
      %s1027 = scalar_select %p1026, %s16, 1
      %s1028 = smul.addr %s1027, 4
      %s1029 = smul.addr %s1028, 4
      %s1030 = scalar_lea.vmem %s5, %s1029
      // Predicated region
      $region41: #{decoder_forward.4} parent=39 // pred_check
        %p1031 = pneg %p144
      $region42: #{decoder_forward.4} parent=39 // pred_check_branch
        %1033 = sbr.rel (%p1031) target = $region44
      $region43: #{decoder_forward.4} parent=39 // pred_region
        _
      $region44: #{decoder_forward.4} parent=39 // pred_fallthru
        _
    $region40: #{decoder_forward.4} parent=5 // pred_fallthru
      _
    %p1034 = scmp.le.s32.totalorder 2, %s11
    // Predicated region
    $region45: #{decoder_forward.4} parent=5 // pred_check
      %p1035 = pneg %p1034
    $region46: #{decoder_forward.4} parent=5 // pred_check_branch
      %1037 = sbr.rel (%p1035) target = $region48
    $region47: #{decoder_forward.4} parent=5 // pred_region
      %s1038 = ssub.s32 %s11, 2
      // Predicated region
      $region49: #{decoder_forward.4} parent=47 // pred_check
        %p1039 = pneg %p150
      $region50: #{decoder_forward.4} parent=47 // pred_check_branch
        %1041 = sbr.rel (%p1039) target = $region52
      $region51: #{decoder_forward.4} parent=47 // pred_region
        %p1042 = scmp.lt.s32.totalorder %s17, 1
        %s1043 = scalar_select %p1042, %s17, 1
        %s1044 = smul.addr %s1043, 4
        %s1045 = smul.addr %s1044, 4
        %s1046 = scalar_lea.vmem %s5, %s1045
      $region52: #{decoder_forward.4} parent=47 // pred_fallthru
        _
    $region48: #{decoder_forward.4} parent=5 // pred_fallthru
      _
  $region6: #{decoder_forward.4} parent=0 // loop_footer
    %s15 = sadd.s32 1, %s11
  $region7: #{decoder_forward.4} parent=0 // loop_footer_branch
    %10 = sbr.rel target = $region3
  $region8: #{decoder_forward.4} parent=0 // loop_exit
    _

// kernel: decoder_forward.5
$region0: #{decoder_forward.5}
  #allocation0 [shape = 'u32[]', space=smem, size = 0x4, offset = 0x4, fixed_abs, tag = 'smem constant byte address 0x4 - core index']
  #allocation1 [shape = 'u32[144,128]{1,0:T(1,128)}', space=vmem, size = 0x12000, scoped, tag = 'internal scratch']
  %s0 = inlined_call_operand.vmem [shape: bf16[2,32,102], index: 0, kind: input, shape index: {}]
  %s1 = inlined_call_operand.vmem [shape: bf16[64,512], index: 1, kind: input, shape index: {}]
  %s2 = inlined_call_operand.vmem [shape: f32[64,1], index: 2, kind: input, shape index: {}]
  %s3 = inlined_call_operand.vmem [shape: bf16[2,64,90], index: 3, kind: output, shape index: {}]
  %s4 = sld [smem:[#allocation0]]
  $region45: #{decoder_forward.5} parent=0
    _
  %s6 = ssub.s32 1, %s4
  %s7 = scalar_select 0, %s6, %s4
  loop: start=0, step=1, limit=4
  $region2: #{decoder_forward.5} parent=0 // loop_pre_header
    _
  $region3: #{decoder_forward.5} parent=0 // loop_header
    %s9 = sphi 0, %s13
    %p10 = scmp.ge.s32.totalorder %s9, 4
    %s19 = sphi 0, %s21
    %s22 = sphi 0, %s19
    %s23 = sphi 0, %s22
    %s39 = sphi 0, %s23
    %s43 = sphi 0, %s43
    %s45 = sphi 0, %s43
    %s46 = sphi 0, %s45
    %s60 = sphi 0, %s46
    %s64 = sphi 0, %s64
    %s66 = sphi 0, %s64
    %s67 = sphi 0, %s66
    %s81 = sphi 0, %s67
    %s87 = sphi 0, %s89
    %s90 = sphi 0, %s87
    %s91 = sphi 0, %s90
    %s107 = sphi 0, %s91
  $region4: #{decoder_forward.5} parent=0 // loop_header_branch
    %12 = sbr.rel (%p10) target = $region8
  $region5: #{decoder_forward.5} parent=0 // loop_body
    %s14 = ssub.s32 %s9, 1
    %s15 = ssub.s32 %s9, 2
    %s16 = sadd.s32 %s9, 1
    %s17 = ssub.s32 %s9, %s16
    %p18 = scmp.eq.s32.totalorder %s17, 0
    %s20 = sadd.s32 %s19, 1
    %s21 = scalar_select %p18, %s19, %s20
    %p24 = pneg %p18
    %p25 = scmp.eq.s32.totalorder %s9, 1
    %p26 = por %p24, %p25
    %p27 = scmp.ne.s32.totalorder %s19, %s22
    %p28 = scmp.eq.s32.totalorder %s9, 0
    %p29 = por %p27, %p28
    %p30 = scmp.ne.s32.totalorder %s19, %s22
    %p31 = scmp.eq.s32.totalorder %s14, 1
    %p32 = por %p30, %p31
    %p33 = scmp.ne.s32.totalorder %s22, %s23
    %p34 = scmp.eq.s32.totalorder %s14, 0
    %p35 = por %p33, %p34
    %p36 = scmp.ne.s32.totalorder %s22, %s23
    %p37 = scmp.eq.s32.totalorder %s15, 1
    %p38 = por %p36, %p37
    %p40 = scmp.ne.s32.totalorder %s23, %s39
    %p41 = scmp.eq.s32.totalorder %s15, 0
    %p42 = por %p40, %p41
    %s44 = sadd.s32 %s43, 1
    %p47 = scmp.eq.s32.totalorder %s9, 1
    %p48 = scmp.ne.s32.totalorder %s43, %s45
    %p49 = scmp.eq.s32.totalorder %s9, 0
    %p50 = por %p48, %p49
    %p51 = scmp.ne.s32.totalorder %s43, %s45
    %p52 = scmp.eq.s32.totalorder %s14, 1
    %p53 = por %p51, %p52
    %p54 = scmp.ne.s32.totalorder %s45, %s46
    %p55 = scmp.eq.s32.totalorder %s14, 0
    %p56 = por %p54, %p55
    %p57 = scmp.ne.s32.totalorder %s45, %s46
    %p58 = scmp.eq.s32.totalorder %s15, 1
    %p59 = por %p57, %p58
    %p61 = scmp.ne.s32.totalorder %s46, %s60
    %p62 = scmp.eq.s32.totalorder %s15, 0
    %p63 = por %p61, %p62
    %s65 = sadd.s32 %s64, 1
    %p68 = scmp.eq.s32.totalorder %s9, 1
    %p69 = scmp.ne.s32.totalorder %s64, %s66
    %p70 = scmp.eq.s32.totalorder %s9, 0
    %p71 = por %p69, %p70
    %p72 = scmp.ne.s32.totalorder %s64, %s66
    %p73 = scmp.eq.s32.totalorder %s14, 1
    %p74 = por %p72, %p73
    %p75 = scmp.ne.s32.totalorder %s66, %s67
    %p76 = scmp.eq.s32.totalorder %s14, 0
    %p77 = por %p75, %p76
    %p78 = scmp.ne.s32.totalorder %s66, %s67
    %p79 = scmp.eq.s32.totalorder %s15, 1
    %p80 = por %p78, %p79
    %p82 = scmp.ne.s32.totalorder %s67, %s81
    %p83 = scmp.eq.s32.totalorder %s15, 0
    %p84 = por %p82, %p83
    %s85 = ssub.s32 %s9, %s16
    %p86 = scmp.eq.s32.totalorder %s85, 0
    %s88 = sadd.s32 %s87, 1
    %s89 = scalar_select %p86, %s87, %s88
    %p92 = pneg %p86
    %p93 = scmp.eq.s32.totalorder %s9, 1
    %p94 = por %p92, %p93
    %p95 = scmp.ne.s32.totalorder %s87, %s90
    %p96 = scmp.eq.s32.totalorder %s9, 0
    %p97 = por %p95, %p96
    %p98 = scmp.ne.s32.totalorder %s87, %s90
    %p99 = scmp.eq.s32.totalorder %s14, 1
    %p100 = por %p98, %p99
    %p101 = scmp.ne.s32.totalorder %s90, %s91
    %p102 = scmp.eq.s32.totalorder %s14, 0
    %p103 = por %p101, %p102
    %p104 = scmp.ne.s32.totalorder %s90, %s91
    %p105 = scmp.eq.s32.totalorder %s15, 1
    %p106 = por %p104, %p105
    %p108 = scmp.ne.s32.totalorder %s91, %s107
    %p109 = scmp.eq.s32.totalorder %s15, 0
    %p110 = por %p108, %p109
    %p111 = scmp.le.s32.totalorder 1, %s9
    %p112 = scmp.lt.s32.totalorder %s9, 3
    %p113 = pnand %p111, %p112
    %p114 = pneg %p113
    // Predicated region
    $region9: #{decoder_forward.5} parent=5 // pred_check
      _
    $region10: #{decoder_forward.5} parent=5 // pred_check_branch
      %116 = sbr.rel (%p113) target = $region12
    $region11: #{decoder_forward.5} parent=5 // pred_region
      %s117 = ssub.s32 %s9, 1
      // Predicated region
      $region13: #{decoder_forward.5} parent=11 // pred_check
        %p118 = pneg %p56
      $region14: #{decoder_forward.5} parent=11 // pred_check_branch
        %120 = sbr.rel (%p118) target = $region16
      $region15: #{decoder_forward.5} parent=11 // pred_region
        _
      $region16: #{decoder_forward.5} parent=11 // pred_fallthru
        _
      // Predicated region
      $region17: #{decoder_forward.5} parent=11 // pred_check
        %p121 = pneg %p77
      $region18: #{decoder_forward.5} parent=11 // pred_check_branch
        %123 = sbr.rel (%p121) target = $region20
      $region19: #{decoder_forward.5} parent=11 // pred_region
        _
      $region20: #{decoder_forward.5} parent=11 // pred_fallthru
        _
    $region12: #{decoder_forward.5} parent=5 // pred_fallthru
      _
    %p124 = scmp.lt.s32.totalorder %s9, 2
    // Predicated region
    $region21: #{decoder_forward.5} parent=5 // pred_check
      %p125 = pneg %p124
    $region22: #{decoder_forward.5} parent=5 // pred_check_branch
      %127 = sbr.rel (%p125) target = $region24
    $region23: #{decoder_forward.5} parent=5 // pred_region
      // Predicated region
      $region25: #{decoder_forward.5} parent=23 // pred_check
        %p128 = pneg %p29
      $region26: #{decoder_forward.5} parent=23 // pred_check_branch
        %130 = sbr.rel (%p128) target = $region28
      $region27: #{decoder_forward.5} parent=23 // pred_region
        %p131 = scmp.lt.s32.totalorder %s9, 1
        %s132 = scalar_select %p131, %s9, 1
        %s133 = smul.addr %s132, 4
        %s134 = smul.addr %s133, 4
        %s135 = scalar_lea.vmem %s0, %s134
      $region28: #{decoder_forward.5} parent=23 // pred_fallthru
        _
    $region24: #{decoder_forward.5} parent=5 // pred_fallthru
      _
    %p136 = scmp.le.s32.totalorder 1, %s9
    %p137 = scmp.lt.s32.totalorder %s9, 3
    %p138 = pnand %p136, %p137
    %p139 = pneg %p138
    // Predicated region
    $region29: #{decoder_forward.5} parent=5 // pred_check
      _
    $region30: #{decoder_forward.5} parent=5 // pred_check_branch
      %141 = sbr.rel (%p138) target = $region32
    $region31: #{decoder_forward.5} parent=5 // pred_region
      %s142 = ssub.s32 %s9, 1
      %p143 = scmp.lt.s32.totalorder %s14, 1
      %s144 = scalar_select %p143, %s14, 1
      %s145 = smul.addr %s144, 4
      %s146 = smul.addr %s145, 4
      %s147 = scalar_lea.vmem %s0, %s146
      %p148 = pneg %p35
      %p149 = pneg %p32
      %p150 = pneg %p56
      %p151 = pneg %p53
      %p152 = pneg %p77
      %p153 = pneg %p74
      %p154 = pneg %p103
      %p155 = pneg %p100
      %p156 = scmp.lt.s32.totalorder %s14, 1
      %s157 = scalar_select %p156, %s14, 1
      %s158 = smul.addr %s157, 8
      %s159 = smul.addr %s158, 4
      %s160 = scalar_lea.vmem %s3, %s159
      %p161 = scmp.lt.s32.totalorder %s14, 1
      %s162 = scalar_select %p161, %s14, 1
      %s163 = smul.addr %s162, 4
      %s164 = smul.addr %s163, 4
      %s165 = scalar_lea.vmem %s0, %s164
      %p166 = scmp.lt.s32.totalorder %s14, 1
      %s167 = scalar_select %p166, %s14, 1
      %s168 = smul.addr %s167, 8
      %s169 = smul.addr %s168, 4
      %s170 = scalar_lea.vmem %s3, %s169
      %v172 = vld [vmem:[%s165] sm:$0xf]
      %v173 = vld [vmem:[%s165 + $0x4] sm:$0xf]
      %v174 = vld [vmem:[%s165 + $0x8] sm:$0xf]
      %v175 = vld [vmem:[%s165 + $0xc] sm:$0xf]
      %v176 = vunpack.c.l.bf16 %v172
      %v177 = vunpack.c.l.bf16 %v173
      %v178 = vunpack.c.l.bf16 %v174
      %v179 = vunpack.c.l.bf16 %v175
      %v180 = vmul.f32 %v176, 0.5
      %v181 = vmul.f32 %v177, 0.5
      %v182 = vmul.f32 %v178, 0.5
      %v183 = vmul.f32 %v179, 0.5
      %v184 = vmul.f32 %v176, 0.70710677
      %v185 = vmul.f32 %v177, 0.70710677
      %v186 = vmul.f32 %v178, 0.70710677
      %v187 = vmul.f32 %v179, 0.70710677
      %v188 = verf.f32.pop %v184
      %v189 = verf.f32.pop %v185
      %v190 = verf.f32.pop %v186
      %v191 = verf.f32.pop %v187
      %v192 = vadd.f32 %v188, 1.0
      %v193 = vadd.f32 %v189, 1.0
      %v194 = vadd.f32 %v190, 1.0
      %v195 = vadd.f32 %v191, 1.0
      %v196 = vmul.f32 %v180, %v192
      %v197 = vmul.f32 %v181, %v193
      %v198 = vmul.f32 %v182, %v194
      %v199 = vmul.f32 %v183, %v195
      %v200 = vpack.c.bf16 %v197, %v196
      %v201 = vpack.c.bf16 %v199, %v198
      %204 = vrot.lane.b32.xlu0 %v200, 127
      %v205 = vpop.permute.xlu0 %204
      %206 = vrot.lane.b32.xlu0 %v201, 127
      %v207 = vpop.permute.xlu0 %206
      %210 = vrot.lane.b32.xlu0 %v200, 118
      %v211 = vpop.permute.xlu0 %210
      %212 = vrot.lane.b32.xlu0 %v201, 118
      %v213 = vpop.permute.xlu0 %212
      %216 = vrot.lane.b32.xlu0 %v200, 117
      %v217 = vpop.permute.xlu0 %216
      %218 = vrot.lane.b32.xlu0 %v201, 117
      %v219 = vpop.permute.xlu0 %218
      %v222 = vld [vmem:[%s1] sm:$0xff]
      %v223 = vld [vmem:[%s1 + $0x8] sm:$0xff]
      %v224 = vld [vmem:[%s1 + $0x10] sm:$0xff]
      %v225 = vld [vmem:[%s1 + $0x18] sm:$0xff]
      %v226 = vld [vmem:[%s1 + $0x20] sm:$0xff]
      %v227 = vld [vmem:[%s1 + $0x28] sm:$0xff]
      %v228 = vld [vmem:[%s1 + $0x30] sm:$0xff]
      %v229 = vld [vmem:[%s1 + $0x38] sm:$0xff]
      %v230 = vld [vmem:[%s1 + $0x40] sm:$0xff]
      %v231 = vld [vmem:[%s1 + $0x48] sm:$0xff]
      %v232 = vld [vmem:[%s1 + $0x50] sm:$0xff]
      %v233 = vld [vmem:[%s1 + $0x58] sm:$0xff]
      %v234 = vld [vmem:[%s1 + $0x60] sm:$0xff]
      %v235 = vld [vmem:[%s1 + $0x68] sm:$0xff]
      %v236 = vld [vmem:[%s1 + $0x70] sm:$0xff]
      %v237 = vld [vmem:[%s1 + $0x78] sm:$0xff]
      %v238 = vld [vmem:[%s2] sm:$0xff]
      %v239 = vld [vmem:[%s2 + $0x8] sm:$0xff]
      %v240 = vld [vmem:[%s2 + $0x10] sm:$0xff]
      %v241 = vld [vmem:[%s2 + $0x18] sm:$0xff]
      %v242 = vld [vmem:[%s2 + $0x20] sm:$0xff]
      %v243 = vld [vmem:[%s2 + $0x28] sm:$0xff]
      %v244 = vld [vmem:[%s2 + $0x30] sm:$0xff]
      %v245 = vld [vmem:[%s2 + $0x38] sm:$0xff]
      %247 = vset.pattern.permute.xlu0 0
      %248 = vperm.xlu0 %247, %v238
      %v249 = vpop.permute.xlu0 %248
      %252 = vset.pattern.permute.xlu0 0
      %253 = vperm.xlu0 %252, %v239
      %v254 = vpop.permute.xlu0 %253
      %257 = vset.pattern.permute.xlu0 0
      %258 = vperm.xlu0 %257, %v240
      %v259 = vpop.permute.xlu0 %258
      %262 = vset.pattern.permute.xlu0 0
      %263 = vperm.xlu0 %262, %v241
      %v264 = vpop.permute.xlu0 %263
      %267 = vset.pattern.permute.xlu0 0
      %268 = vperm.xlu0 %267, %v242
      %v269 = vpop.permute.xlu0 %268
      %272 = vset.pattern.permute.xlu0 0
      %273 = vperm.xlu0 %272, %v243
      %v274 = vpop.permute.xlu0 %273
      %277 = vset.pattern.permute.xlu0 0
      %278 = vperm.xlu0 %277, %v244
      %v279 = vpop.permute.xlu0 %278
      %282 = vset.pattern.permute.xlu0 0
      %283 = vperm.xlu0 %282, %v245
      %v284 = vpop.permute.xlu0 %283
      %v302 = vunpack.c.l.b16 %v222
      %v303 = vunpack.c.h.b16 %v222
      %v304 = vunpack.c.l.b16 %v223
      %v305 = vunpack.c.h.b16 %v223
      %v306 = vunpack.c.l.b16 %v224
      %v307 = vunpack.c.h.b16 %v224
      %v308 = vunpack.c.l.b16 %v225
      %v309 = vunpack.c.h.b16 %v225
      %v310 = vunpack.c.l.b16 %v226
      %v311 = vunpack.c.h.b16 %v226
      %v312 = vunpack.c.l.b16 %v227
      %v313 = vunpack.c.h.b16 %v227
      %v314 = vunpack.c.l.b16 %v228
      %v315 = vunpack.c.h.b16 %v228
      %v316 = vunpack.c.l.b16 %v229
      %v317 = vunpack.c.h.b16 %v229
      %v318 = vunpack.c.l.b16 %v230
      %v319 = vunpack.c.h.b16 %v230
      %v320 = vunpack.c.l.b16 %v231
      %v321 = vunpack.c.h.b16 %v231
      %v322 = vunpack.c.l.b16 %v232
      %v323 = vunpack.c.h.b16 %v232
      %v324 = vunpack.c.l.b16 %v233
      %v325 = vunpack.c.h.b16 %v233
      %v326 = vunpack.c.l.b16 %v234
      %v327 = vunpack.c.h.b16 %v234
      %v328 = vunpack.c.l.b16 %v235
      %v329 = vunpack.c.h.b16 %v235
      %v330 = vunpack.c.l.b16 %v236
      %v331 = vunpack.c.h.b16 %v236
      %v332 = vunpack.c.l.b16 %v237
      %v333 = vunpack.c.h.b16 %v237
      %v334 = vpack.c.b16 %v306, %v302
      %v335 = vpack.c.b16 %v307, %v303
      %v336 = vpack.c.b16 %v308, %v304
      %v337 = vpack.c.b16 %v309, %v305
      %v338 = vpack.c.b16 %v314, %v310
      %v339 = vpack.c.b16 %v315, %v311
      %v340 = vpack.c.b16 %v316, %v312
      %v341 = vpack.c.b16 %v317, %v313
      %v342 = vpack.c.b16 %v322, %v318
      %v343 = vpack.c.b16 %v323, %v319
      %v344 = vpack.c.b16 %v324, %v320
      %v345 = vpack.c.b16 %v325, %v321
      %v346 = vpack.c.b16 %v330, %v326
      %v347 = vpack.c.b16 %v331, %v327
      %v348 = vpack.c.b16 %v332, %v328
      %v349 = vpack.c.b16 %v333, %v329
      %366 = vmatprep.subr.bf16.mxu0 0
      %367 = vmatpush1.bf16.msra.mxu0 %v200
      %368 = vmatprep.subr.bf16.mxu0 0
      %369 = vmatpush1.bf16.msra.mxu0 %v201
      %370 = vmatprep.subr.bf16.mxu0 0
      %371 = vmatpush1.bf16.msra.mxu0 %v205
      %372 = vmatprep.subr.bf16.mxu0 0
      %373 = vmatpush1.bf16.msra.mxu0 %v207
      %374 = vmatprep.subr.bf16.mxu0 0
      %375 = vmatpush1.bf16.msra.mxu0 %v211
      %376 = vmatprep.subr.bf16.mxu0 0
      %377 = vmatpush1.bf16.msra.mxu0 %v213
      %378 = vmatprep.subr.bf16.mxu0 0
      %379 = vmatpush1.bf16.msra.mxu0 %v217
      %380 = vmatprep.subr.bf16.mxu0 0
      %381 = vmatpush1.bf16.msra.mxu0 %v219
      %382 = vmatprep.subr.bf16.mxu0 0
      %383 = vmatpush1.bf16.msra.mxu0 %v200
      %384 = vmatprep.subr.bf16.mxu0 0
      %385 = vmatpush1.bf16.msra.mxu0 %v201
      %386 = vmatprep.subr.bf16.mxu0 0
      %387 = vmatpush1.bf16.msra.mxu0 %v205
      %388 = vmatprep.subr.bf16.mxu0 0
      %389 = vmatpush1.bf16.msra.mxu0 %v207
      %390 = vmatprep.subr.bf16.mxu0 0
      %391 = vmatpush1.bf16.msra.mxu0 %v211
      %392 = vmatprep.subr.bf16.mxu0 0
      %393 = vmatpush1.bf16.msra.mxu0 %v213
      %394 = vmatprep.subr.bf16.mxu0 0
      %395 = vmatpush1.bf16.msra.mxu0 %v217
      %396 = vmatprep.subr.bf16.mxu0 0
      %397 = vmatpush1.bf16.msra.mxu0 %v219
      %398 = vmatprep.mubr.bf16.mxu0 %v335
      %399 = vmatmul.mubr.bf16.gmra.mrb[0].mxu0 %v334
      %v400 = vpop.f32.mrb[0].mxu0
      %v401 = vadd.f32 %v249, %v400
      %v402 = vpop.f32.mrb[0].mxu0
      %v403 = vpop.f32.mrb[0].mxu0
      %v404 = vadd.f32 %v254, %v403
      %v405 = vpop.f32.mrb[0].mxu0
      %406 = vmatprep.mubr.bf16.mxu0 %v339
      %407 = vmatmul.mubr.bf16.gmra.mrb[0].mxu0 %v338
      %v408 = vpop.f32.mrb[0].mxu0
      %v409 = vadd.f32 %v259, %v408
      %v410 = vpop.f32.mrb[0].mxu0
      %v411 = vpop.f32.mrb[0].mxu0
      %v412 = vadd.f32 %v264, %v411
      %v413 = vpop.f32.mrb[0].mxu0
      %414 = vmatprep.mubr.bf16.mxu0 %v343
      %415 = vmatmul.mubr.bf16.gmra.mrb[0].mxu0 %v342
      %v416 = vpop.f32.mrb[0].mxu0
      %v417 = vadd.f32 %v269, %v416
      %v418 = vpop.f32.mrb[0].mxu0
      %v419 = vpop.f32.mrb[0].mxu0
      %v420 = vadd.f32 %v274, %v419
      %v421 = vpop.f32.mrb[0].mxu0
      %422 = vmatprep.mubr.bf16.mxu0 %v347
      %423 = vmatmul.mubr.bf16.gmra.mrb[0].mxu0 %v346
      %v424 = vpop.f32.mrb[0].mxu0
      %v425 = vadd.f32 %v279, %v424
      %v426 = vpop.f32.mrb[0].mxu0
      %v427 = vpop.f32.mrb[0].mxu0
      %v428 = vadd.f32 %v284, %v427
      %v429 = vpop.f32.mrb[0].mxu0
      %430 = vdwg.mxu0
      %431 = vmatprep.subr.bf16.mxu0 0
      %432 = vmatpush1.bf16.msra.mxu0 %v200
      %433 = vmatprep.subr.bf16.mxu0 0
      %434 = vmatpush1.bf16.msra.mxu0 %v201
      %435 = vmatprep.subr.bf16.mxu0 0
      %436 = vmatpush1.bf16.msra.mxu0 %v205
      %437 = vmatprep.subr.bf16.mxu0 0
      %438 = vmatpush1.bf16.msra.mxu0 %v207
      %439 = vmatprep.subr.bf16.mxu0 0
      %440 = vmatpush1.bf16.msra.mxu0 %v211
      %441 = vmatprep.subr.bf16.mxu0 0
      %442 = vmatpush1.bf16.msra.mxu0 %v213
      %443 = vmatprep.subr.bf16.mxu0 0
      %444 = vmatpush1.bf16.msra.mxu0 %v217
      %445 = vmatprep.subr.bf16.mxu0 0
      %446 = vmatpush1.bf16.msra.mxu0 %v219
      %447 = vmatprep.subr.bf16.mxu0 0
      %448 = vmatpush1.bf16.msra.mxu0 %v200
      %449 = vmatprep.subr.bf16.mxu0 0
      %450 = vmatpush1.bf16.msra.mxu0 %v201
      %451 = vmatprep.subr.bf16.mxu0 0
      %452 = vmatpush1.bf16.msra.mxu0 %v205
      %453 = vmatprep.subr.bf16.mxu0 0
      %454 = vmatpush1.bf16.msra.mxu0 %v207
      %455 = vmatprep.subr.bf16.mxu0 0
      %456 = vmatpush1.bf16.msra.mxu0 %v211
      %457 = vmatprep.subr.bf16.mxu0 0
      %458 = vmatpush1.bf16.msra.mxu0 %v213
      %459 = vmatprep.subr.bf16.mxu0 0
      %460 = vmatpush1.bf16.msra.mxu0 %v217
      %461 = vmatprep.subr.bf16.mxu0 0
      %462 = vmatpush1.bf16.msra.mxu0 %v219
      %463 = vmatprep.mubr.bf16.mxu0 %v337
      %464 = vmatmul.mubr.bf16.gmra.mrb[0].mxu0 %v336
      %v465 = vpop.f32.mrb[0].mxu0
      %v466 = vadd.f32 %v401, %v465
      %v467 = vpop.f32.mrb[0].mxu0
      %v468 = vpop.f32.mrb[0].mxu0
      %v469 = vadd.f32 %v404, %v468
      %v470 = vpop.f32.mrb[0].mxu0
      %471 = vmatprep.mubr.bf16.mxu0 %v341
      %472 = vmatmul.mubr.bf16.gmra.mrb[0].mxu0 %v340
      %v473 = vpop.f32.mrb[0].mxu0
      %v474 = vadd.f32 %v409, %v473
      %v475 = vpop.f32.mrb[0].mxu0
      %v476 = vpop.f32.mrb[0].mxu0
      %v477 = vadd.f32 %v412, %v476
      %v478 = vpop.f32.mrb[0].mxu0
      %479 = vmatprep.mubr.bf16.mxu0 %v345
      %480 = vmatmul.mubr.bf16.gmra.mrb[0].mxu0 %v344
      %v481 = vpop.f32.mrb[0].mxu0
      %v482 = vadd.f32 %v417, %v481
      %v483 = vpop.f32.mrb[0].mxu0
      %v484 = vpop.f32.mrb[0].mxu0
      %v485 = vadd.f32 %v420, %v484
      %v486 = vpop.f32.mrb[0].mxu0
      %487 = vmatprep.mubr.bf16.mxu0 %v349
      %488 = vmatmul.mubr.bf16.gmra.mrb[0].mxu0 %v348
      %v489 = vpop.f32.mrb[0].mxu0
      %v490 = vadd.f32 %v425, %v489
      %v491 = vpop.f32.mrb[0].mxu0
      %v492 = vpop.f32.mrb[0].mxu0
      %v493 = vadd.f32 %v428, %v492
      %v494 = vpop.f32.mrb[0].mxu0
      %495 = vdwg.mxu0
      %v496 = vpack.c.bf16 %v469, %v466
      %v497 = vpack.c.bf16 %v477, %v474
      %v498 = vpack.c.bf16 %v485, %v482
      %v499 = vpack.c.bf16 %v493, %v490
      %v504 = vunpack.c.l.b16 %v496
      %v505 = vunpack.c.h.b16 %v496
      %v506 = vunpack.c.l.b16 %v497
      %v507 = vunpack.c.h.b16 %v497
      %v508 = vunpack.c.l.b16 %v498
      %v509 = vunpack.c.h.b16 %v498
      %v510 = vunpack.c.l.b16 %v499
      %v511 = vunpack.c.h.b16 %v499
      %v512 = vpack.c.b16 %v504, %v504
      %v513 = vpack.c.b16 %v505, %v505
      %v514 = vpack.c.b16 %v506, %v506
      %v515 = vpack.c.b16 %v507, %v507
      %v516 = vpack.c.b16 %v508, %v508
      %v517 = vpack.c.b16 %v509, %v509
      %v518 = vpack.c.b16 %v510, %v510
      %v519 = vpack.c.b16 %v511, %v511
      %vm528 = vcmask 732160
      %529 = vst.msk [vmem:[%s170] sm:$0xf] %vm528, %v512
      %530 = vst.msk [vmem:[%s170 + $0x4] sm:$0xf] %vm528, %v513
      %531 = vst.msk [vmem:[%s170 + $0x8] sm:$0xf] %vm528, %v514
      %532 = vst.msk [vmem:[%s170 + $0xc] sm:$0xf] %vm528, %v515
      %533 = vst.msk [vmem:[%s170 + $0x10] sm:$0xf] %vm528, %v516
      %534 = vst.msk [vmem:[%s170 + $0x14] sm:$0xf] %vm528, %v517
      %535 = vst.msk [vmem:[%s170 + $0x18] sm:$0xf] %vm528, %v518
      %536 = vst.msk [vmem:[%s170 + $0x1c] sm:$0xf] %vm528, %v519
      %p537 = scmp.lt.s32.totalorder %s14, 1
      %s538 = scalar_select %p537, %s14, 1
      %s539 = smul.addr %s538, 8
      %s540 = smul.addr %s539, 4
      %s541 = scalar_lea.vmem %s3, %s540
      // Predicated region
      $region33: #{decoder_forward.5} parent=31 // pred_check
        %p542 = pneg %p100
      $region34: #{decoder_forward.5} parent=31 // pred_check_branch
        %544 = sbr.rel (%p542) target = $region36
      $region35: #{decoder_forward.5} parent=31 // pred_region
        _
      $region36: #{decoder_forward.5} parent=31 // pred_fallthru
        _
    $region32: #{decoder_forward.5} parent=5 // pred_fallthru
      _
    %p545 = scmp.le.s32.totalorder 2, %s9
    // Predicated region
    $region37: #{decoder_forward.5} parent=5 // pred_check
      %p546 = pneg %p545
    $region38: #{decoder_forward.5} parent=5 // pred_check_branch
      %548 = sbr.rel (%p546) target = $region40
    $region39: #{decoder_forward.5} parent=5 // pred_region
      %s549 = ssub.s32 %s9, 2
      // Predicated region
      $region41: #{decoder_forward.5} parent=39 // pred_check
        %p550 = pneg %p106
      $region42: #{decoder_forward.5} parent=39 // pred_check_branch
        %552 = sbr.rel (%p550) target = $region44
      $region43: #{decoder_forward.5} parent=39 // pred_region
        %p553 = scmp.lt.s32.totalorder %s15, 1
        %s554 = scalar_select %p553, %s15, 1
        %s555 = smul.addr %s554, 8
        %s556 = smul.addr %s555, 4
        %s557 = scalar_lea.vmem %s3, %s556
      $region44: #{decoder_forward.5} parent=39 // pred_fallthru
        _
    $region40: #{decoder_forward.5} parent=5 // pred_fallthru
      _
  $region6: #{decoder_forward.5} parent=0 // loop_footer
    %s13 = sadd.s32 1, %s9
  $region7: #{decoder_forward.5} parent=0 // loop_footer_branch
    %8 = sbr.rel target = $region3
  $region8: #{decoder_forward.5} parent=0 // loop_exit
    _

// kernel: decoder_forward.6
$region0: #{decoder_forward.6}
  #allocation0 [shape = 'u32[]', space=smem, size = 0x4, offset = 0x4, fixed_abs, tag = 'smem constant byte address 0x4 - core index']
  #allocation1 [shape = 'u32[144,128]{1,0:T(1,128)}', space=vmem, size = 0x12000, scoped, tag = 'internal scratch']
  %s0 = inlined_call_operand.vmem [shape: bf16[2,16,402], index: 0, kind: input, shape index: {}]
  %s1 = inlined_call_operand.vmem [shape: bf16[64,256], index: 1, kind: input, shape index: {}]
  %s2 = inlined_call_operand.vmem [shape: f32[64,1], index: 2, kind: input, shape index: {}]
  %s3 = inlined_call_operand.vmem [shape: bf16[2,64,360], index: 3, kind: output, shape index: {}]
  %s4 = sld [smem:[#allocation0]]
  $region45: #{decoder_forward.6} parent=0
    _
  %s6 = ssub.s32 1, %s4
  %s7 = scalar_select 0, %s6, %s4
  loop: start=0, step=1, limit=4
  $region2: #{decoder_forward.6} parent=0 // loop_pre_header
    _
  $region3: #{decoder_forward.6} parent=0 // loop_header
    %s9 = sphi 0, %s13
    %p10 = scmp.ge.s32.totalorder %s9, 4
    %s19 = sphi 0, %s21
    %s22 = sphi 0, %s19
    %s23 = sphi 0, %s22
    %s39 = sphi 0, %s23
    %s43 = sphi 0, %s43
    %s45 = sphi 0, %s43
    %s46 = sphi 0, %s45
    %s60 = sphi 0, %s46
    %s64 = sphi 0, %s64
    %s66 = sphi 0, %s64
    %s67 = sphi 0, %s66
    %s81 = sphi 0, %s67
    %s87 = sphi 0, %s89
    %s90 = sphi 0, %s87
    %s91 = sphi 0, %s90
    %s107 = sphi 0, %s91
  $region4: #{decoder_forward.6} parent=0 // loop_header_branch
    %12 = sbr.rel (%p10) target = $region8
  $region5: #{decoder_forward.6} parent=0 // loop_body
    %s14 = ssub.s32 %s9, 1
    %s15 = ssub.s32 %s9, 2
    %s16 = sadd.s32 %s9, 1
    %s17 = ssub.s32 %s9, %s16
    %p18 = scmp.eq.s32.totalorder %s17, 0
    %s20 = sadd.s32 %s19, 1
    %s21 = scalar_select %p18, %s19, %s20
    %p24 = pneg %p18
    %p25 = scmp.eq.s32.totalorder %s9, 1
    %p26 = por %p24, %p25
    %p27 = scmp.ne.s32.totalorder %s19, %s22
    %p28 = scmp.eq.s32.totalorder %s9, 0
    %p29 = por %p27, %p28
    %p30 = scmp.ne.s32.totalorder %s19, %s22
    %p31 = scmp.eq.s32.totalorder %s14, 1
    %p32 = por %p30, %p31
    %p33 = scmp.ne.s32.totalorder %s22, %s23
    %p34 = scmp.eq.s32.totalorder %s14, 0
    %p35 = por %p33, %p34
    %p36 = scmp.ne.s32.totalorder %s22, %s23
    %p37 = scmp.eq.s32.totalorder %s15, 1
    %p38 = por %p36, %p37
    %p40 = scmp.ne.s32.totalorder %s23, %s39
    %p41 = scmp.eq.s32.totalorder %s15, 0
    %p42 = por %p40, %p41
    %s44 = sadd.s32 %s43, 1
    %p47 = scmp.eq.s32.totalorder %s9, 1
    %p48 = scmp.ne.s32.totalorder %s43, %s45
    %p49 = scmp.eq.s32.totalorder %s9, 0
    %p50 = por %p48, %p49
    %p51 = scmp.ne.s32.totalorder %s43, %s45
    %p52 = scmp.eq.s32.totalorder %s14, 1
    %p53 = por %p51, %p52
    %p54 = scmp.ne.s32.totalorder %s45, %s46
    %p55 = scmp.eq.s32.totalorder %s14, 0
    %p56 = por %p54, %p55
    %p57 = scmp.ne.s32.totalorder %s45, %s46
    %p58 = scmp.eq.s32.totalorder %s15, 1
    %p59 = por %p57, %p58
    %p61 = scmp.ne.s32.totalorder %s46, %s60
    %p62 = scmp.eq.s32.totalorder %s15, 0
    %p63 = por %p61, %p62
    %s65 = sadd.s32 %s64, 1
    %p68 = scmp.eq.s32.totalorder %s9, 1
    %p69 = scmp.ne.s32.totalorder %s64, %s66
    %p70 = scmp.eq.s32.totalorder %s9, 0
    %p71 = por %p69, %p70
    %p72 = scmp.ne.s32.totalorder %s64, %s66
    %p73 = scmp.eq.s32.totalorder %s14, 1
    %p74 = por %p72, %p73
    %p75 = scmp.ne.s32.totalorder %s66, %s67
    %p76 = scmp.eq.s32.totalorder %s14, 0
    %p77 = por %p75, %p76
    %p78 = scmp.ne.s32.totalorder %s66, %s67
    %p79 = scmp.eq.s32.totalorder %s15, 1
    %p80 = por %p78, %p79
    %p82 = scmp.ne.s32.totalorder %s67, %s81
    %p83 = scmp.eq.s32.totalorder %s15, 0
    %p84 = por %p82, %p83
    %s85 = ssub.s32 %s9, %s16
    %p86 = scmp.eq.s32.totalorder %s85, 0
    %s88 = sadd.s32 %s87, 1
    %s89 = scalar_select %p86, %s87, %s88
    %p92 = pneg %p86
    %p93 = scmp.eq.s32.totalorder %s9, 1
    %p94 = por %p92, %p93
    %p95 = scmp.ne.s32.totalorder %s87, %s90
    %p96 = scmp.eq.s32.totalorder %s9, 0
    %p97 = por %p95, %p96
    %p98 = scmp.ne.s32.totalorder %s87, %s90
    %p99 = scmp.eq.s32.totalorder %s14, 1
    %p100 = por %p98, %p99
    %p101 = scmp.ne.s32.totalorder %s90, %s91
    %p102 = scmp.eq.s32.totalorder %s14, 0
    %p103 = por %p101, %p102
    %p104 = scmp.ne.s32.totalorder %s90, %s91
    %p105 = scmp.eq.s32.totalorder %s15, 1
    %p106 = por %p104, %p105
    %p108 = scmp.ne.s32.totalorder %s91, %s107
    %p109 = scmp.eq.s32.totalorder %s15, 0
    %p110 = por %p108, %p109
    %p111 = scmp.le.s32.totalorder 1, %s9
    %p112 = scmp.lt.s32.totalorder %s9, 3
    %p113 = pnand %p111, %p112
    %p114 = pneg %p113
    // Predicated region
    $region9: #{decoder_forward.6} parent=5 // pred_check
      _
    $region10: #{decoder_forward.6} parent=5 // pred_check_branch
      %116 = sbr.rel (%p113) target = $region12
    $region11: #{decoder_forward.6} parent=5 // pred_region
      %s117 = ssub.s32 %s9, 1
      // Predicated region
      $region13: #{decoder_forward.6} parent=11 // pred_check
        %p118 = pneg %p56
      $region14: #{decoder_forward.6} parent=11 // pred_check_branch
        %120 = sbr.rel (%p118) target = $region16
      $region15: #{decoder_forward.6} parent=11 // pred_region
        _
      $region16: #{decoder_forward.6} parent=11 // pred_fallthru
        _
      // Predicated region
      $region17: #{decoder_forward.6} parent=11 // pred_check
        %p121 = pneg %p77
      $region18: #{decoder_forward.6} parent=11 // pred_check_branch
        %123 = sbr.rel (%p121) target = $region20
      $region19: #{decoder_forward.6} parent=11 // pred_region
        _
      $region20: #{decoder_forward.6} parent=11 // pred_fallthru
        _
    $region12: #{decoder_forward.6} parent=5 // pred_fallthru
      _
    %p124 = scmp.lt.s32.totalorder %s9, 2
    // Predicated region
    $region21: #{decoder_forward.6} parent=5 // pred_check
      %p125 = pneg %p124
    $region22: #{decoder_forward.6} parent=5 // pred_check_branch
      %127 = sbr.rel (%p125) target = $region24
    $region23: #{decoder_forward.6} parent=5 // pred_region
      // Predicated region
      $region25: #{decoder_forward.6} parent=23 // pred_check
        %p128 = pneg %p29
      $region26: #{decoder_forward.6} parent=23 // pred_check_branch
        %130 = sbr.rel (%p128) target = $region28
      $region27: #{decoder_forward.6} parent=23 // pred_region
        %p131 = scmp.lt.s32.totalorder %s9, 1
        %s132 = scalar_select %p131, %s9, 1
        %s133 = smul.addr %s132, 8
        %s134 = smul.addr %s133, 4
        %s135 = scalar_lea.vmem %s0, %s134
      $region28: #{decoder_forward.6} parent=23 // pred_fallthru
        _
    $region24: #{decoder_forward.6} parent=5 // pred_fallthru
      _
    %p136 = scmp.le.s32.totalorder 1, %s9
    %p137 = scmp.lt.s32.totalorder %s9, 3
    %p138 = pnand %p136, %p137
    %p139 = pneg %p138
    // Predicated region
    $region29: #{decoder_forward.6} parent=5 // pred_check
      _
    $region30: #{decoder_forward.6} parent=5 // pred_check_branch
      %141 = sbr.rel (%p138) target = $region32
    $region31: #{decoder_forward.6} parent=5 // pred_region
      %s142 = ssub.s32 %s9, 1
      %p143 = scmp.lt.s32.totalorder %s14, 1
      %s144 = scalar_select %p143, %s14, 1
      %s145 = smul.addr %s144, 8
      %s146 = smul.addr %s145, 4
      %s147 = scalar_lea.vmem %s0, %s146
      %p148 = pneg %p35
      %p149 = pneg %p32
      %p150 = pneg %p56
      %p151 = pneg %p53
      %p152 = pneg %p77
      %p153 = pneg %p74
      %p154 = pneg %p103
      %p155 = pneg %p100
      %p156 = scmp.lt.s32.totalorder %s14, 1
      %s157 = scalar_select %p156, %s14, 1
      %s158 = smul.addr %s157, 24
      %s159 = smul.addr %s158, 4
      %s160 = scalar_lea.vmem %s3, %s159
      %p161 = scmp.lt.s32.totalorder %s14, 1
      %s162 = scalar_select %p161, %s14, 1
      %s163 = smul.addr %s162, 8
      %s164 = smul.addr %s163, 4
      %s165 = scalar_lea.vmem %s0, %s164
      %p166 = scmp.lt.s32.totalorder %s14, 1
      %s167 = scalar_select %p166, %s14, 1
      %s168 = smul.addr %s167, 24
      %s169 = smul.addr %s168, 4
      %s170 = scalar_lea.vmem %s3, %s169
      %v172 = vld [vmem:[%s165] sm:$0xff]
      %v173 = vld [vmem:[%s165 + $0x8] sm:$0xff]
      %v174 = vld [vmem:[%s165 + $0x10] sm:$0xff]
      %v175 = vld [vmem:[%s165 + $0x18] sm:$0xff]
      %v176 = vunpack.c.l.bf16 %v172
      %v177 = vunpack.c.h.bf16 %v172
      %v178 = vunpack.c.l.bf16 %v173
      %v179 = vunpack.c.h.bf16 %v173
      %v180 = vunpack.c.l.bf16 %v174
      %v181 = vunpack.c.h.bf16 %v174
      %v182 = vunpack.c.l.bf16 %v175
      %v183 = vunpack.c.h.bf16 %v175
      %v184 = vmul.f32 %v176, 0.5
      %v185 = vmul.f32 %v177, 0.5
      %v186 = vmul.f32 %v178, 0.5
      %v187 = vmul.f32 %v179, 0.5
      %v188 = vmul.f32 %v180, 0.5
      %v189 = vmul.f32 %v181, 0.5
      %v190 = vmul.f32 %v182, 0.5
      %v191 = vmul.f32 %v183, 0.5
      %v192 = vmul.f32 %v176, 0.70710677
      %v193 = vmul.f32 %v177, 0.70710677
      %v194 = vmul.f32 %v178, 0.70710677
      %v195 = vmul.f32 %v179, 0.70710677
      %v196 = vmul.f32 %v180, 0.70710677
      %v197 = vmul.f32 %v181, 0.70710677
      %v198 = vmul.f32 %v182, 0.70710677
      %v199 = vmul.f32 %v183, 0.70710677
      %v200 = verf.f32.pop %v192
      %v201 = verf.f32.pop %v193
      %v202 = verf.f32.pop %v194
      %v203 = verf.f32.pop %v195
      %v204 = verf.f32.pop %v196
      %v205 = verf.f32.pop %v197
      %v206 = verf.f32.pop %v198
      %v207 = verf.f32.pop %v199
      %v208 = vadd.f32 %v200, 1.0
      %v209 = vadd.f32 %v201, 1.0
      %v210 = vadd.f32 %v202, 1.0
      %v211 = vadd.f32 %v203, 1.0
      %v212 = vadd.f32 %v204, 1.0
      %v213 = vadd.f32 %v205, 1.0
      %v214 = vadd.f32 %v206, 1.0
      %v215 = vadd.f32 %v207, 1.0
      %v216 = vmul.f32 %v184, %v208
      %v217 = vmul.f32 %v185, %v209
      %v218 = vmul.f32 %v186, %v210
      %v219 = vmul.f32 %v187, %v211
      %v220 = vmul.f32 %v188, %v212
      %v221 = vmul.f32 %v189, %v213
      %v222 = vmul.f32 %v190, %v214
      %v223 = vmul.f32 %v191, %v215
      %v224 = vpack.c.bf16 %v220, %v216
      %v225 = vpack.c.bf16 %v221, %v217
      %v226 = vpack.c.bf16 %v222, %v218
      %v227 = vpack.c.bf16 %v223, %v219
      %231 = vrot.lane.b32.xlu0 %v224, 127
      %v232 = vpop.permute.xlu0 %231
      %233 = vrot.lane.b32.xlu0 %v225, 127
      %v234 = vpop.permute.xlu0 %233
      %235 = vrot.lane.b32.xlu0 %v226, 127
      %v236 = vpop.permute.xlu0 %235
      %vm237 = vcmask 1039360
      %v238 = vsel %vm237, %v232, %v234
      %v239 = vsel %vm237, %v234, %v236
      %243 = vrot.lane.b32.xlu0 %v224, 108
      %v244 = vpop.permute.xlu0 %243
      %245 = vrot.lane.b32.xlu0 %v225, 108
      %v246 = vpop.permute.xlu0 %245
      %247 = vrot.lane.b32.xlu0 %v226, 108
      %v248 = vpop.permute.xlu0 %247
      %vm249 = vcmask 883712
      %v250 = vsel %vm249, %v244, %v246
      %v251 = vsel %vm249, %v246, %v248
      %255 = vrot.lane.b32.xlu0 %v224, 107
      %v256 = vpop.permute.xlu0 %255
      %257 = vrot.lane.b32.xlu0 %v225, 107
      %v258 = vpop.permute.xlu0 %257
      %259 = vrot.lane.b32.xlu0 %v226, 107
      %v260 = vpop.permute.xlu0 %259
      %vm261 = vcmask 875520
      %v262 = vsel %vm261, %v256, %v258
      %v263 = vsel %vm261, %v258, %v260
      %267 = vrot.lane.b32.xlu0 %v224, 126
      %v268 = vpop.permute.xlu0 %267
      %269 = vrot.lane.b32.xlu0 %v225, 126
      %v270 = vpop.permute.xlu0 %269
      %271 = vrot.lane.b32.xlu0 %v226, 126
      %v272 = vpop.permute.xlu0 %271
      %vm273 = vcmask 1031168
      %v274 = vsel %vm273, %v268, %v270
      %v275 = vsel %vm273, %v270, %v272
      %279 = vrot.lane.b32.xlu0 %v224, 106
      %v280 = vpop.permute.xlu0 %279
      %281 = vrot.lane.b32.xlu0 %v225, 106
      %v282 = vpop.permute.xlu0 %281
      %283 = vrot.lane.b32.xlu0 %v226, 106
      %v284 = vpop.permute.xlu0 %283
      %vm285 = vcmask 867328
      %v286 = vsel %vm285, %v280, %v282
      %v287 = vsel %vm285, %v282, %v284
      %292 = vrot.lane.b32.xlu0 %v224, 88
      %v293 = vpop.permute.xlu0 %292
      %294 = vrot.lane.b32.xlu0 %v225, 88
      %v295 = vpop.permute.xlu0 %294
      %296 = vrot.lane.b32.xlu0 %v226, 88
      %v297 = vpop.permute.xlu0 %296
      %298 = vrot.lane.b32.xlu0 %v227, 88
      %v299 = vpop.permute.xlu0 %298
      %vm300 = vcmask 719872
      %v301 = vsel %vm300, %v293, %v295
      %v302 = vsel %vm300, %v295, %v297
      %v303 = vsel %vm300, %v297, %v299
      %307 = vrot.lane.b32.xlu0 %v224, 87
      %v308 = vpop.permute.xlu0 %307
      %309 = vrot.lane.b32.xlu0 %v225, 87
      %v310 = vpop.permute.xlu0 %309
      %311 = vrot.lane.b32.xlu0 %v226, 87
      %v312 = vpop.permute.xlu0 %311
      %313 = vrot.lane.b32.xlu0 %v227, 87
      %v314 = vpop.permute.xlu0 %313
      %vm315 = vcmask 711680
      %v316 = vsel %vm315, %v308, %v310
      %v317 = vsel %vm315, %v310, %v312
      %v318 = vsel %vm315, %v312, %v314
      %322 = vrot.lane.b32.xlu0 %v224, 86
      %v323 = vpop.permute.xlu0 %322
      %324 = vrot.lane.b32.xlu0 %v225, 86
      %v325 = vpop.permute.xlu0 %324
      %326 = vrot.lane.b32.xlu0 %v226, 86
      %v327 = vpop.permute.xlu0 %326
      %328 = vrot.lane.b32.xlu0 %v227, 86
      %v329 = vpop.permute.xlu0 %328
      %vm330 = vcmask 703488
      %v331 = vsel %vm330, %v323, %v325
      %v332 = vsel %vm330, %v325, %v327
      %v333 = vsel %vm330, %v327, %v329
      %v337 = vld [vmem:[%s1] sm:$0xff]
      %v338 = vld [vmem:[%s1 + $0x8] sm:$0xff]
      %v339 = vld [vmem:[%s1 + $0x10] sm:$0xff]
      %v340 = vld [vmem:[%s1 + $0x18] sm:$0xff]
      %v341 = vld [vmem:[%s1 + $0x20] sm:$0xff]
      %v342 = vld [vmem:[%s1 + $0x28] sm:$0xff]
      %v343 = vld [vmem:[%s1 + $0x30] sm:$0xff]
      %v344 = vld [vmem:[%s1 + $0x38] sm:$0xff]
      %v345 = vld [vmem:[%s2] sm:$0xff]
      %v346 = vld [vmem:[%s2 + $0x8] sm:$0xff]
      %v347 = vld [vmem:[%s2 + $0x10] sm:$0xff]
      %v348 = vld [vmem:[%s2 + $0x18] sm:$0xff]
      %v349 = vld [vmem:[%s2 + $0x20] sm:$0xff]
      %v350 = vld [vmem:[%s2 + $0x28] sm:$0xff]
      %v351 = vld [vmem:[%s2 + $0x30] sm:$0xff]
      %v352 = vld [vmem:[%s2 + $0x38] sm:$0xff]
      %354 = vset.pattern.permute.xlu0 0
      %355 = vperm.xlu0 %354, %v345
      %v356 = vpop.permute.xlu0 %355
      %359 = vset.pattern.permute.xlu0 0
      %360 = vperm.xlu0 %359, %v346
      %v361 = vpop.permute.xlu0 %360
      %364 = vset.pattern.permute.xlu0 0
      %365 = vperm.xlu0 %364, %v347
      %v366 = vpop.permute.xlu0 %365
      %369 = vset.pattern.permute.xlu0 0
      %370 = vperm.xlu0 %369, %v348
      %v371 = vpop.permute.xlu0 %370
      %374 = vset.pattern.permute.xlu0 0
      %375 = vperm.xlu0 %374, %v349
      %v376 = vpop.permute.xlu0 %375
      %379 = vset.pattern.permute.xlu0 0
      %380 = vperm.xlu0 %379, %v350
      %v381 = vpop.permute.xlu0 %380
      %384 = vset.pattern.permute.xlu0 0
      %385 = vperm.xlu0 %384, %v351
      %v386 = vpop.permute.xlu0 %385
      %389 = vset.pattern.permute.xlu0 0
      %390 = vperm.xlu0 %389, %v352
      %v391 = vpop.permute.xlu0 %390
      %v401 = vunpack.c.l.b16 %v337
      %v402 = vunpack.c.h.b16 %v337
      %v403 = vunpack.c.l.b16 %v338
      %v404 = vunpack.c.h.b16 %v338
      %v405 = vunpack.c.l.b16 %v339
      %v406 = vunpack.c.h.b16 %v339
      %v407 = vunpack.c.l.b16 %v340
      %v408 = vunpack.c.h.b16 %v340
      %v409 = vunpack.c.l.b16 %v341
      %v410 = vunpack.c.h.b16 %v341
      %v411 = vunpack.c.l.b16 %v342
      %v412 = vunpack.c.h.b16 %v342
      %v413 = vunpack.c.l.b16 %v343
      %v414 = vunpack.c.h.b16 %v343
      %v415 = vunpack.c.l.b16 %v344
      %v416 = vunpack.c.h.b16 %v344
      %v417 = vpack.c.b16 %v403, %v401
      %v418 = vpack.c.b16 %v404, %v402
      %v419 = vpack.c.b16 %v407, %v405
      %v420 = vpack.c.b16 %v408, %v406
      %v421 = vpack.c.b16 %v411, %v409
      %v422 = vpack.c.b16 %v412, %v410
      %v423 = vpack.c.b16 %v415, %v413
      %v424 = vpack.c.b16 %v416, %v414
      %433 = vmatprep.subr.bf16.mxu0 %v225
      %434 = vmatpush1.bf16.msra.mxu0 %v224
      %435 = vmatprep.subr.bf16.mxu0 %v239
      %436 = vmatpush1.bf16.msra.mxu0 %v238
      %437 = vmatprep.subr.bf16.mxu0 %v251
      %438 = vmatpush1.bf16.msra.mxu0 %v250
      %439 = vmatprep.subr.bf16.mxu0 %v263
      %440 = vmatpush1.bf16.msra.mxu0 %v262
      %441 = vmatprep.subr.bf16.mxu0 %v239
      %442 = vmatpush1.bf16.msra.mxu0 %v238
      %443 = vmatprep.subr.bf16.mxu0 %v275
      %444 = vmatpush1.bf16.msra.mxu0 %v274
      %445 = vmatprep.subr.bf16.mxu0 %v263
      %446 = vmatpush1.bf16.msra.mxu0 %v262
      %447 = vmatprep.subr.bf16.mxu0 %v287
      %448 = vmatpush1.bf16.msra.mxu0 %v286
      %449 = vmatprep.subr.bf16.mxu0 %v251
      %450 = vmatpush1.bf16.msra.mxu0 %v250
      %451 = vmatprep.subr.bf16.mxu0 %v263
      %452 = vmatpush1.bf16.msra.mxu0 %v262
      %453 = vmatprep.subr.bf16.mxu0 %v302
      %454 = vmatpush1.bf16.msra.mxu0 %v301
      %455 = vmatprep.subr.bf16.mxu0 %v317
      %456 = vmatpush1.bf16.msra.mxu0 %v316
      %457 = vmatprep.subr.bf16.mxu0 %v263
      %458 = vmatpush1.bf16.msra.mxu0 %v262
      %459 = vmatprep.subr.bf16.mxu0 %v287
      %460 = vmatpush1.bf16.msra.mxu0 %v286
      %461 = vmatprep.subr.bf16.mxu0 %v317
      %462 = vmatpush1.bf16.msra.mxu0 %v316
      %463 = vmatprep.subr.bf16.mxu0 %v332
      %464 = vmatpush1.bf16.msra.mxu0 %v331
      %465 = vmatprep.mubr.bf16.mxu0 %v418
      %466 = vmatmul.mubr.bf16.gmra.mrb[0].mxu0 %v417
      %v467 = vpop.f32.mrb[0].mxu0
      %v468 = vadd.f32 %v356, %v467
      %v469 = vpop.f32.mrb[0].mxu0
      %v470 = vadd.f32 %v356, %v469
      %v471 = vpop.f32.mrb[0].mxu0
      %v472 = vadd.f32 %v361, %v471
      %v473 = vpop.f32.mrb[0].mxu0
      %v474 = vadd.f32 %v361, %v473
      %475 = vmatprep.mubr.bf16.mxu0 %v420
      %476 = vmatmul.mubr.bf16.gmra.mrb[0].mxu0 %v419
      %v477 = vpop.f32.mrb[0].mxu0
      %v478 = vadd.f32 %v366, %v477
      %v479 = vpop.f32.mrb[0].mxu0
      %v480 = vadd.f32 %v366, %v479
      %v481 = vpop.f32.mrb[0].mxu0
      %v482 = vadd.f32 %v371, %v481
      %v483 = vpop.f32.mrb[0].mxu0
      %v484 = vadd.f32 %v371, %v483
      %485 = vmatprep.mubr.bf16.mxu0 %v422
      %486 = vmatmul.mubr.bf16.gmra.mrb[0].mxu0 %v421
      %v487 = vpop.f32.mrb[0].mxu0
      %v488 = vadd.f32 %v376, %v487
      %v489 = vpop.f32.mrb[0].mxu0
      %v490 = vadd.f32 %v376, %v489
      %v491 = vpop.f32.mrb[0].mxu0
      %v492 = vadd.f32 %v381, %v491
      %v493 = vpop.f32.mrb[0].mxu0
      %v494 = vadd.f32 %v381, %v493
      %495 = vmatprep.mubr.bf16.mxu0 %v424
      %496 = vmatmul.mubr.bf16.gmra.mrb[0].mxu0 %v423
      %v497 = vpop.f32.mrb[0].mxu0
      %v498 = vadd.f32 %v386, %v497
      %v499 = vpop.f32.mrb[0].mxu0
      %v500 = vadd.f32 %v386, %v499
      %v501 = vpop.f32.mrb[0].mxu0
      %v502 = vadd.f32 %v391, %v501
      %v503 = vpop.f32.mrb[0].mxu0
      %v504 = vadd.f32 %v391, %v503
      %505 = vdwg.mxu0
      %506 = vmatprep.subr.bf16.mxu0 0
      %507 = vmatpush1.bf16.msra.mxu0 %v226
      %508 = vmatprep.subr.bf16.mxu0 0
      %509 = vmatpush1.bf16.msra.mxu0 %v236
      %510 = vmatprep.subr.bf16.mxu0 0
      %511 = vmatpush1.bf16.msra.mxu0 %v248
      %512 = vmatprep.subr.bf16.mxu0 0
      %513 = vmatpush1.bf16.msra.mxu0 %v260
      %514 = vmatprep.subr.bf16.mxu0 0
      %515 = vmatpush1.bf16.msra.mxu0 %v236
      %516 = vmatprep.subr.bf16.mxu0 0
      %517 = vmatpush1.bf16.msra.mxu0 %v272
      %518 = vmatprep.subr.bf16.mxu0 0
      %519 = vmatpush1.bf16.msra.mxu0 %v260
      %520 = vmatprep.subr.bf16.mxu0 0
      %521 = vmatpush1.bf16.msra.mxu0 %v284
      %522 = vmatprep.subr.bf16.mxu0 0
      %523 = vmatpush1.bf16.msra.mxu0 %v248
      %524 = vmatprep.subr.bf16.mxu0 0
      %525 = vmatpush1.bf16.msra.mxu0 %v260
      %526 = vmatprep.subr.bf16.mxu0 0
      %527 = vmatpush1.bf16.msra.mxu0 %v303
      %528 = vmatprep.subr.bf16.mxu0 0
      %529 = vmatpush1.bf16.msra.mxu0 %v318
      %530 = vmatprep.subr.bf16.mxu0 0
      %531 = vmatpush1.bf16.msra.mxu0 %v260
      %532 = vmatprep.subr.bf16.mxu0 0
      %533 = vmatpush1.bf16.msra.mxu0 %v284
      %534 = vmatprep.subr.bf16.mxu0 0
      %535 = vmatpush1.bf16.msra.mxu0 %v318
      %536 = vmatprep.subr.bf16.mxu0 0
      %537 = vmatpush1.bf16.msra.mxu0 %v333
      %538 = vmatprep.mubr.bf16.mxu0 %v418
      %539 = vmatmul.mubr.bf16.gmra.mrb[0].mxu0 %v417
      %v540 = vpop.f32.mrb[0].mxu0
      %v541 = vadd.f32 %v356, %v540
      %v542 = vpop.f32.mrb[0].mxu0
      %v543 = vpop.f32.mrb[0].mxu0
      %v544 = vadd.f32 %v361, %v543
      %v545 = vpop.f32.mrb[0].mxu0
      %546 = vmatprep.mubr.bf16.mxu0 %v420
      %547 = vmatmul.mubr.bf16.gmra.mrb[0].mxu0 %v419
      %v548 = vpop.f32.mrb[0].mxu0
      %v549 = vadd.f32 %v366, %v548
      %v550 = vpop.f32.mrb[0].mxu0
      %v551 = vpop.f32.mrb[0].mxu0
      %v552 = vadd.f32 %v371, %v551
      %v553 = vpop.f32.mrb[0].mxu0
      %554 = vmatprep.mubr.bf16.mxu0 %v422
      %555 = vmatmul.mubr.bf16.gmra.mrb[0].mxu0 %v421
      %v556 = vpop.f32.mrb[0].mxu0
      %v557 = vadd.f32 %v376, %v556
      %v558 = vpop.f32.mrb[0].mxu0
      %v559 = vpop.f32.mrb[0].mxu0
      %v560 = vadd.f32 %v381, %v559
      %v561 = vpop.f32.mrb[0].mxu0
      %562 = vmatprep.mubr.bf16.mxu0 %v424
      %563 = vmatmul.mubr.bf16.gmra.mrb[0].mxu0 %v423
      %v564 = vpop.f32.mrb[0].mxu0
      %v565 = vadd.f32 %v386, %v564
      %v566 = vpop.f32.mrb[0].mxu0
      %v567 = vpop.f32.mrb[0].mxu0
      %v568 = vadd.f32 %v391, %v567
      %v569 = vpop.f32.mrb[0].mxu0
      %570 = vdwg.mxu0
      %v571 = vpack.c.bf16 %v472, %v468
      %v572 = vpack.c.bf16 %v474, %v470
      %v573 = vpack.c.bf16 %v544, %v541
      %v574 = vpack.c.bf16 %v482, %v478
      %v575 = vpack.c.bf16 %v484, %v480
      %v576 = vpack.c.bf16 %v552, %v549
      %v577 = vpack.c.bf16 %v492, %v488
      %v578 = vpack.c.bf16 %v494, %v490
      %v579 = vpack.c.bf16 %v560, %v557
      %v580 = vpack.c.bf16 %v502, %v498
      %v581 = vpack.c.bf16 %v504, %v500
      %v582 = vpack.c.bf16 %v568, %v565
      %v595 = vunpack.c.l.b16 %v571
      %v596 = vunpack.c.l.b16 %v572
      %v597 = vunpack.c.l.b16 %v573
      %v598 = vunpack.c.h.b16 %v571
      %v599 = vunpack.c.h.b16 %v572
      %v600 = vunpack.c.h.b16 %v573
      %v601 = vunpack.c.l.b16 %v574
      %v602 = vunpack.c.l.b16 %v575
      %v603 = vunpack.c.l.b16 %v576
      %v604 = vunpack.c.h.b16 %v574
      %v605 = vunpack.c.h.b16 %v575
      %v606 = vunpack.c.h.b16 %v576
      %v607 = vunpack.c.l.b16 %v577
      %v608 = vunpack.c.l.b16 %v578
      %v609 = vunpack.c.l.b16 %v579
      %v610 = vunpack.c.h.b16 %v577
      %v611 = vunpack.c.h.b16 %v578
      %v612 = vunpack.c.h.b16 %v579
      %v613 = vunpack.c.l.b16 %v580
      %v614 = vunpack.c.l.b16 %v581
      %v615 = vunpack.c.l.b16 %v582
      %v616 = vunpack.c.h.b16 %v580
      %v617 = vunpack.c.h.b16 %v581
      %v618 = vunpack.c.h.b16 %v582
      %v619 = vpack.c.b16 %v596, %v595
      %v620 = vpack.c.b16 %v597, %v597
      %v621 = vpack.c.b16 %v599, %v598
      %v622 = vpack.c.b16 %v600, %v600
      %v623 = vpack.c.b16 %v602, %v601
      %v624 = vpack.c.b16 %v603, %v603
      %v625 = vpack.c.b16 %v605, %v604
      %v626 = vpack.c.b16 %v606, %v606
      %v627 = vpack.c.b16 %v608, %v607
      %v628 = vpack.c.b16 %v609, %v609
      %v629 = vpack.c.b16 %v611, %v610
      %v630 = vpack.c.b16 %v612, %v612
      %v631 = vpack.c.b16 %v614, %v613
      %v632 = vpack.c.b16 %v615, %v615
      %v633 = vpack.c.b16 %v617, %v616
      %v634 = vpack.c.b16 %v618, %v618
      %651 = vst [vmem:[%s170] sm:$0xff] %v619
      %vm652 = vcmask 846848
      %653 = vst.msk [vmem:[%s170 + $0x8] sm:$0xf] %vm652, %v620
      %654 = vst [vmem:[%s170 + $0xc] sm:$0xff] %v621
      %655 = vst.msk [vmem:[%s170 + $0x14] sm:$0xf] %vm652, %v622
      %656 = vst [vmem:[%s170 + $0x18] sm:$0xff] %v623
      %657 = vst.msk [vmem:[%s170 + $0x20] sm:$0xf] %vm652, %v624
      %658 = vst [vmem:[%s170 + $0x24] sm:$0xff] %v625
      %659 = vst.msk [vmem:[%s170 + $0x2c] sm:$0xf] %vm652, %v626
      %660 = vst [vmem:[%s170 + $0x30] sm:$0xff] %v627
      %661 = vst.msk [vmem:[%s170 + $0x38] sm:$0xf] %vm652, %v628
      %662 = vst [vmem:[%s170 + $0x3c] sm:$0xff] %v629
      %663 = vst.msk [vmem:[%s170 + $0x44] sm:$0xf] %vm652, %v630
      %664 = vst [vmem:[%s170 + $0x48] sm:$0xff] %v631
      %665 = vst.msk [vmem:[%s170 + $0x50] sm:$0xf] %vm652, %v632
      %666 = vst [vmem:[%s170 + $0x54] sm:$0xff] %v633
      %667 = vst.msk [vmem:[%s170 + $0x5c] sm:$0xf] %vm652, %v634
      %p668 = scmp.lt.s32.totalorder %s14, 1
      %s669 = scalar_select %p668, %s14, 1
      %s670 = smul.addr %s669, 24
      %s671 = smul.addr %s670, 4
      %s672 = scalar_lea.vmem %s3, %s671
      // Predicated region
      $region33: #{decoder_forward.6} parent=31 // pred_check
        %p673 = pneg %p100
      $region34: #{decoder_forward.6} parent=31 // pred_check_branch
        %675 = sbr.rel (%p673) target = $region36
      $region35: #{decoder_forward.6} parent=31 // pred_region
        _
      $region36: #{decoder_forward.6} parent=31 // pred_fallthru
        _
    $region32: #{decoder_forward.6} parent=5 // pred_fallthru
      _
    %p676 = scmp.le.s32.totalorder 2, %s9
    // Predicated region
    $region37: #{decoder_forward.6} parent=5 // pred_check
      %p677 = pneg %p676
    $region38: #{decoder_forward.6} parent=5 // pred_check_branch
      %679 = sbr.rel (%p677) target = $region40
    $region39: #{decoder_forward.6} parent=5 // pred_region
      %s680 = ssub.s32 %s9, 2
      // Predicated region
      $region41: #{decoder_forward.6} parent=39 // pred_check
        %p681 = pneg %p106
      $region42: #{decoder_forward.6} parent=39 // pred_check_branch
        %683 = sbr.rel (%p681) target = $region44
      $region43: #{decoder_forward.6} parent=39 // pred_region
        %p684 = scmp.lt.s32.totalorder %s15, 1
        %s685 = scalar_select %p684, %s15, 1
        %s686 = smul.addr %s685, 24
        %s687 = smul.addr %s686, 4
        %s688 = scalar_lea.vmem %s3, %s687
      $region44: #{decoder_forward.6} parent=39 // pred_fallthru
        _
    $region40: #{decoder_forward.6} parent=5 // pred_fallthru
      _
  $region6: #{decoder_forward.6} parent=0 // loop_footer
    %s13 = sadd.s32 1, %s9
  $region7: #{decoder_forward.6} parent=0 // loop_footer_branch
    %8 = sbr.rel target = $region3
  $region8: #{decoder_forward.6} parent=0 // loop_exit
    _

// kernel: decoder_forward.7
$region0: #{decoder_forward.7}
  #allocation0 [shape = 'u32[]', space=smem, size = 0x4, offset = 0x4, fixed_abs, tag = 'smem constant byte address 0x4 - core index']
  #allocation1 [shape = 'u32[144,128]{1,0:T(1,128)}', space=vmem, size = 0x12000, scoped, tag = 'internal scratch']
  %s0 = inlined_call_operand.vmem [shape: bf16[2,16,1444], index: 0, kind: input, shape index: {}]
  %s1 = inlined_call_operand.vmem [shape: bf16[12,256], index: 1, kind: input, shape index: {}]
  %s2 = inlined_call_operand.vmem [shape: f32[12,1], index: 2, kind: input, shape index: {}]
  %s3 = inlined_call_operand.vmem [shape: f32[2,12,1292], index: 3, kind: output, shape index: {}]
  %s4 = sld [smem:[#allocation0]]
  $region45: #{decoder_forward.7} parent=0
    _
  %s6 = ssub.s32 1, %s4
  %s7 = scalar_select 0, %s6, %s4
  loop: start=0, step=1, limit=4
  $region2: #{decoder_forward.7} parent=0 // loop_pre_header
    _
  $region3: #{decoder_forward.7} parent=0 // loop_header
    %s9 = sphi 0, %s13
    %p10 = scmp.ge.s32.totalorder %s9, 4
    %s19 = sphi 0, %s21
    %s22 = sphi 0, %s19
    %s23 = sphi 0, %s22
    %s39 = sphi 0, %s23
    %s43 = sphi 0, %s43
    %s45 = sphi 0, %s43
    %s46 = sphi 0, %s45
    %s60 = sphi 0, %s46
    %s64 = sphi 0, %s64
    %s66 = sphi 0, %s64
    %s67 = sphi 0, %s66
    %s81 = sphi 0, %s67
    %s87 = sphi 0, %s89
    %s90 = sphi 0, %s87
    %s91 = sphi 0, %s90
    %s107 = sphi 0, %s91
  $region4: #{decoder_forward.7} parent=0 // loop_header_branch
    %12 = sbr.rel (%p10) target = $region8
  $region5: #{decoder_forward.7} parent=0 // loop_body
    %s14 = ssub.s32 %s9, 1
    %s15 = ssub.s32 %s9, 2
    %s16 = sadd.s32 %s9, 1
    %s17 = ssub.s32 %s9, %s16
    %p18 = scmp.eq.s32.totalorder %s17, 0
    %s20 = sadd.s32 %s19, 1
    %s21 = scalar_select %p18, %s19, %s20
    %p24 = pneg %p18
    %p25 = scmp.eq.s32.totalorder %s9, 1
    %p26 = por %p24, %p25
    %p27 = scmp.ne.s32.totalorder %s19, %s22
    %p28 = scmp.eq.s32.totalorder %s9, 0
    %p29 = por %p27, %p28
    %p30 = scmp.ne.s32.totalorder %s19, %s22
    %p31 = scmp.eq.s32.totalorder %s14, 1
    %p32 = por %p30, %p31
    %p33 = scmp.ne.s32.totalorder %s22, %s23
    %p34 = scmp.eq.s32.totalorder %s14, 0
    %p35 = por %p33, %p34
    %p36 = scmp.ne.s32.totalorder %s22, %s23
    %p37 = scmp.eq.s32.totalorder %s15, 1
    %p38 = por %p36, %p37
    %p40 = scmp.ne.s32.totalorder %s23, %s39
    %p41 = scmp.eq.s32.totalorder %s15, 0
    %p42 = por %p40, %p41
    %s44 = sadd.s32 %s43, 1
    %p47 = scmp.eq.s32.totalorder %s9, 1
    %p48 = scmp.ne.s32.totalorder %s43, %s45
    %p49 = scmp.eq.s32.totalorder %s9, 0
    %p50 = por %p48, %p49
    %p51 = scmp.ne.s32.totalorder %s43, %s45
    %p52 = scmp.eq.s32.totalorder %s14, 1
    %p53 = por %p51, %p52
    %p54 = scmp.ne.s32.totalorder %s45, %s46
    %p55 = scmp.eq.s32.totalorder %s14, 0
    %p56 = por %p54, %p55
    %p57 = scmp.ne.s32.totalorder %s45, %s46
    %p58 = scmp.eq.s32.totalorder %s15, 1
    %p59 = por %p57, %p58
    %p61 = scmp.ne.s32.totalorder %s46, %s60
    %p62 = scmp.eq.s32.totalorder %s15, 0
    %p63 = por %p61, %p62
    %s65 = sadd.s32 %s64, 1
    %p68 = scmp.eq.s32.totalorder %s9, 1
    %p69 = scmp.ne.s32.totalorder %s64, %s66
    %p70 = scmp.eq.s32.totalorder %s9, 0
    %p71 = por %p69, %p70
    %p72 = scmp.ne.s32.totalorder %s64, %s66
    %p73 = scmp.eq.s32.totalorder %s14, 1
    %p74 = por %p72, %p73
    %p75 = scmp.ne.s32.totalorder %s66, %s67
    %p76 = scmp.eq.s32.totalorder %s14, 0
    %p77 = por %p75, %p76
    %p78 = scmp.ne.s32.totalorder %s66, %s67
    %p79 = scmp.eq.s32.totalorder %s15, 1
    %p80 = por %p78, %p79
    %p82 = scmp.ne.s32.totalorder %s67, %s81
    %p83 = scmp.eq.s32.totalorder %s15, 0
    %p84 = por %p82, %p83
    %s85 = ssub.s32 %s9, %s16
    %p86 = scmp.eq.s32.totalorder %s85, 0
    %s88 = sadd.s32 %s87, 1
    %s89 = scalar_select %p86, %s87, %s88
    %p92 = pneg %p86
    %p93 = scmp.eq.s32.totalorder %s9, 1
    %p94 = por %p92, %p93
    %p95 = scmp.ne.s32.totalorder %s87, %s90
    %p96 = scmp.eq.s32.totalorder %s9, 0
    %p97 = por %p95, %p96
    %p98 = scmp.ne.s32.totalorder %s87, %s90
    %p99 = scmp.eq.s32.totalorder %s14, 1
    %p100 = por %p98, %p99
    %p101 = scmp.ne.s32.totalorder %s90, %s91
    %p102 = scmp.eq.s32.totalorder %s14, 0
    %p103 = por %p101, %p102
    %p104 = scmp.ne.s32.totalorder %s90, %s91
    %p105 = scmp.eq.s32.totalorder %s15, 1
    %p106 = por %p104, %p105
    %p108 = scmp.ne.s32.totalorder %s91, %s107
    %p109 = scmp.eq.s32.totalorder %s15, 0
    %p110 = por %p108, %p109
    %p111 = scmp.le.s32.totalorder 1, %s9
    %p112 = scmp.lt.s32.totalorder %s9, 3
    %p113 = pnand %p111, %p112
    %p114 = pneg %p113
    // Predicated region
    $region9: #{decoder_forward.7} parent=5 // pred_check
      _
    $region10: #{decoder_forward.7} parent=5 // pred_check_branch
      %116 = sbr.rel (%p113) target = $region12
    $region11: #{decoder_forward.7} parent=5 // pred_region
      %s117 = ssub.s32 %s9, 1
      // Predicated region
      $region13: #{decoder_forward.7} parent=11 // pred_check
        %p118 = pneg %p56
      $region14: #{decoder_forward.7} parent=11 // pred_check_branch
        %120 = sbr.rel (%p118) target = $region16
      $region15: #{decoder_forward.7} parent=11 // pred_region
        _
      $region16: #{decoder_forward.7} parent=11 // pred_fallthru
        _
      // Predicated region
      $region17: #{decoder_forward.7} parent=11 // pred_check
        %p121 = pneg %p77
      $region18: #{decoder_forward.7} parent=11 // pred_check_branch
        %123 = sbr.rel (%p121) target = $region20
      $region19: #{decoder_forward.7} parent=11 // pred_region
        _
      $region20: #{decoder_forward.7} parent=11 // pred_fallthru
        _
    $region12: #{decoder_forward.7} parent=5 // pred_fallthru
      _
    %p124 = scmp.lt.s32.totalorder %s9, 2
    // Predicated region
    $region21: #{decoder_forward.7} parent=5 // pred_check
      %p125 = pneg %p124
    $region22: #{decoder_forward.7} parent=5 // pred_check_branch
      %127 = sbr.rel (%p125) target = $region24
    $region23: #{decoder_forward.7} parent=5 // pred_region
      // Predicated region
      $region25: #{decoder_forward.7} parent=23 // pred_check
        %p128 = pneg %p29
      $region26: #{decoder_forward.7} parent=23 // pred_check_branch
        %130 = sbr.rel (%p128) target = $region28
      $region27: #{decoder_forward.7} parent=23 // pred_region
        %p131 = scmp.lt.s32.totalorder %s9, 1
        %s132 = scalar_select %p131, %s9, 1
        %s133 = smul.addr %s132, 24
        %s134 = smul.addr %s133, 4
        %s135 = scalar_lea.vmem %s0, %s134
      $region28: #{decoder_forward.7} parent=23 // pred_fallthru
        _
    $region24: #{decoder_forward.7} parent=5 // pred_fallthru
      _
    %p136 = scmp.le.s32.totalorder 1, %s9
    %p137 = scmp.lt.s32.totalorder %s9, 3
    %p138 = pnand %p136, %p137
    %p139 = pneg %p138
    // Predicated region
    $region29: #{decoder_forward.7} parent=5 // pred_check
      _
    $region30: #{decoder_forward.7} parent=5 // pred_check_branch
      %141 = sbr.rel (%p138) target = $region32
    $region31: #{decoder_forward.7} parent=5 // pred_region
      %s142 = ssub.s32 %s9, 1
      %p143 = scmp.lt.s32.totalorder %s14, 1
      %s144 = scalar_select %p143, %s14, 1
      %s145 = smul.addr %s144, 24
      %s146 = smul.addr %s145, 4
      %s147 = scalar_lea.vmem %s0, %s146
      %p148 = pneg %p35
      %p149 = pneg %p32
      %p150 = pneg %p56
      %p151 = pneg %p53
      %p152 = pneg %p77
      %p153 = pneg %p74
      %p154 = pneg %p103
      %p155 = pneg %p100
      %p156 = scmp.lt.s32.totalorder %s14, 1
      %s157 = scalar_select %p156, %s14, 1
      %s158 = smul.addr %s157, 22
      %s159 = smul.addr %s158, 8
      %s160 = scalar_lea.vmem %s3, %s159
      %p161 = scmp.lt.s32.totalorder %s14, 1
      %s162 = scalar_select %p161, %s14, 1
      %s163 = smul.addr %s162, 24
      %s164 = smul.addr %s163, 4
      %s165 = scalar_lea.vmem %s0, %s164
      %p166 = scmp.lt.s32.totalorder %s14, 1
      %s167 = scalar_select %p166, %s14, 1
      %s168 = smul.addr %s167, 22
      %s169 = smul.addr %s168, 8
      %s170 = scalar_lea.vmem %s3, %s169
      %v172 = vld [vmem:[%s165] sm:$0xff]
      %v173 = vld [vmem:[%s165 + $0x8] sm:$0xff]
      %v174 = vld [vmem:[%s165 + $0x10] sm:$0xff]
      %v175 = vld [vmem:[%s165 + $0x18] sm:$0xff]
      %v176 = vld [vmem:[%s165 + $0x20] sm:$0xff]
      %v177 = vld [vmem:[%s165 + $0x28] sm:$0xff]
      %v178 = vld [vmem:[%s165 + $0x30] sm:$0xff]
      %v179 = vld [vmem:[%s165 + $0x38] sm:$0xff]
      %v180 = vld [vmem:[%s165 + $0x40] sm:$0xff]
      %v181 = vld [vmem:[%s165 + $0x48] sm:$0xff]
      %v182 = vld [vmem:[%s165 + $0x50] sm:$0xff]
      %v183 = vld [vmem:[%s165 + $0x58] sm:$0xff]
      %v184 = vunpack.c.l.bf16 %v172
      %v185 = vunpack.c.h.bf16 %v172
      %v186 = vunpack.c.l.bf16 %v173
      %v187 = vunpack.c.h.bf16 %v173
      %v188 = vunpack.c.l.bf16 %v174
      %v189 = vunpack.c.h.bf16 %v174
      %v190 = vunpack.c.l.bf16 %v175
      %v191 = vunpack.c.h.bf16 %v175
      %v192 = vunpack.c.l.bf16 %v176
      %v193 = vunpack.c.h.bf16 %v176
      %v194 = vunpack.c.l.bf16 %v177
      %v195 = vunpack.c.h.bf16 %v177
      %v196 = vunpack.c.l.bf16 %v178
      %v197 = vunpack.c.h.bf16 %v178
      %v198 = vunpack.c.l.bf16 %v179
      %v199 = vunpack.c.h.bf16 %v179
      %v200 = vunpack.c.l.bf16 %v180
      %v201 = vunpack.c.h.bf16 %v180
      %v202 = vunpack.c.l.bf16 %v181
      %v203 = vunpack.c.h.bf16 %v181
      %v204 = vunpack.c.l.bf16 %v182
      %v205 = vunpack.c.h.bf16 %v182
      %v206 = vunpack.c.l.bf16 %v183
      %v207 = vunpack.c.h.bf16 %v183
      %v208 = vmul.f32 %v184, 0.5
      %v209 = vmul.f32 %v185, 0.5
      %v210 = vmul.f32 %v186, 0.5
      %v211 = vmul.f32 %v187, 0.5
      %v212 = vmul.f32 %v188, 0.5
      %v213 = vmul.f32 %v189, 0.5
      %v214 = vmul.f32 %v190, 0.5
      %v215 = vmul.f32 %v191, 0.5
      %v216 = vmul.f32 %v192, 0.5
      %v217 = vmul.f32 %v193, 0.5
      %v218 = vmul.f32 %v194, 0.5
      %v219 = vmul.f32 %v195, 0.5
      %v220 = vmul.f32 %v196, 0.5
      %v221 = vmul.f32 %v197, 0.5
      %v222 = vmul.f32 %v198, 0.5
      %v223 = vmul.f32 %v199, 0.5
      %v224 = vmul.f32 %v200, 0.5
      %v225 = vmul.f32 %v201, 0.5
      %v226 = vmul.f32 %v202, 0.5
      %v227 = vmul.f32 %v203, 0.5
      %v228 = vmul.f32 %v204, 0.5
      %v229 = vmul.f32 %v205, 0.5
      %v230 = vmul.f32 %v206, 0.5
      %v231 = vmul.f32 %v207, 0.5
      %v232 = vmul.f32 %v184, 0.70710677
      %v233 = vmul.f32 %v185, 0.70710677
      %v234 = vmul.f32 %v186, 0.70710677
      %v235 = vmul.f32 %v187, 0.70710677
      %v236 = vmul.f32 %v188, 0.70710677
      %v237 = vmul.f32 %v189, 0.70710677
      %v238 = vmul.f32 %v190, 0.70710677
      %v239 = vmul.f32 %v191, 0.70710677
      %v240 = vmul.f32 %v192, 0.70710677
      %v241 = vmul.f32 %v193, 0.70710677
      %v242 = vmul.f32 %v194, 0.70710677
      %v243 = vmul.f32 %v195, 0.70710677
      %v244 = vmul.f32 %v196, 0.70710677
      %v245 = vmul.f32 %v197, 0.70710677
      %v246 = vmul.f32 %v198, 0.70710677
      %v247 = vmul.f32 %v199, 0.70710677
      %v248 = vmul.f32 %v200, 0.70710677
      %v249 = vmul.f32 %v201, 0.70710677
      %v250 = vmul.f32 %v202, 0.70710677
      %v251 = vmul.f32 %v203, 0.70710677
      %v252 = vmul.f32 %v204, 0.70710677
      %v253 = vmul.f32 %v205, 0.70710677
      %v254 = vmul.f32 %v206, 0.70710677
      %v255 = vmul.f32 %v207, 0.70710677
      %v256 = verf.f32.pop %v232
      %v257 = verf.f32.pop %v233
      %v258 = verf.f32.pop %v234
      %v259 = verf.f32.pop %v235
      %v260 = verf.f32.pop %v236
      %v261 = verf.f32.pop %v237
      %v262 = verf.f32.pop %v238
      %v263 = verf.f32.pop %v239
      %v264 = verf.f32.pop %v240
      %v265 = verf.f32.pop %v241
      %v266 = verf.f32.pop %v242
      %v267 = verf.f32.pop %v243
      %v268 = verf.f32.pop %v244
      %v269 = verf.f32.pop %v245
      %v270 = verf.f32.pop %v246
      %v271 = verf.f32.pop %v247
      %v272 = verf.f32.pop %v248
      %v273 = verf.f32.pop %v249
      %v274 = verf.f32.pop %v250
      %v275 = verf.f32.pop %v251
      %v276 = verf.f32.pop %v252
      %v277 = verf.f32.pop %v253
      %v278 = verf.f32.pop %v254
      %v279 = verf.f32.pop %v255
      %v280 = vadd.f32 %v256, 1.0
      %v281 = vadd.f32 %v257, 1.0
      %v282 = vadd.f32 %v258, 1.0
      %v283 = vadd.f32 %v259, 1.0
      %v284 = vadd.f32 %v260, 1.0
      %v285 = vadd.f32 %v261, 1.0
      %v286 = vadd.f32 %v262, 1.0
      %v287 = vadd.f32 %v263, 1.0
      %v288 = vadd.f32 %v264, 1.0
      %v289 = vadd.f32 %v265, 1.0
      %v290 = vadd.f32 %v266, 1.0
      %v291 = vadd.f32 %v267, 1.0
      %v292 = vadd.f32 %v268, 1.0
      %v293 = vadd.f32 %v269, 1.0
      %v294 = vadd.f32 %v270, 1.0
      %v295 = vadd.f32 %v271, 1.0
      %v296 = vadd.f32 %v272, 1.0
      %v297 = vadd.f32 %v273, 1.0
      %v298 = vadd.f32 %v274, 1.0
      %v299 = vadd.f32 %v275, 1.0
      %v300 = vadd.f32 %v276, 1.0
      %v301 = vadd.f32 %v277, 1.0
      %v302 = vadd.f32 %v278, 1.0
      %v303 = vadd.f32 %v279, 1.0
      %v304 = vmul.f32 %v208, %v280
      %v305 = vmul.f32 %v209, %v281
      %v306 = vmul.f32 %v210, %v282
      %v307 = vmul.f32 %v211, %v283
      %v308 = vmul.f32 %v212, %v284
      %v309 = vmul.f32 %v213, %v285
      %v310 = vmul.f32 %v214, %v286
      %v311 = vmul.f32 %v215, %v287
      %v312 = vmul.f32 %v216, %v288
      %v313 = vmul.f32 %v217, %v289
      %v314 = vmul.f32 %v218, %v290
      %v315 = vmul.f32 %v219, %v291
      %v316 = vmul.f32 %v220, %v292
      %v317 = vmul.f32 %v221, %v293
      %v318 = vmul.f32 %v222, %v294
      %v319 = vmul.f32 %v223, %v295
      %v320 = vmul.f32 %v224, %v296
      %v321 = vmul.f32 %v225, %v297
      %v322 = vmul.f32 %v226, %v298
      %v323 = vmul.f32 %v227, %v299
      %v324 = vmul.f32 %v228, %v300
      %v325 = vmul.f32 %v229, %v301
      %v326 = vmul.f32 %v230, %v302
      %v327 = vmul.f32 %v231, %v303
      %v328 = vpack.c.bf16 %v316, %v304
      %v329 = vpack.c.bf16 %v317, %v305
      %v330 = vpack.c.bf16 %v318, %v306
      %v331 = vpack.c.bf16 %v319, %v307
      %v332 = vpack.c.bf16 %v320, %v308
      %v333 = vpack.c.bf16 %v321, %v309
      %v334 = vpack.c.bf16 %v322, %v310
      %v335 = vpack.c.bf16 %v323, %v311
      %v336 = vpack.c.bf16 %v324, %v312
      %v337 = vpack.c.bf16 %v325, %v313
      %v338 = vpack.c.bf16 %v326, %v314
      %v339 = vpack.c.bf16 %v327, %v315
      %351 = vrot.lane.b32.xlu0 %v328, 127
      %v352 = vpop.permute.xlu0 %351
      %353 = vrot.lane.b32.xlu0 %v329, 127
      %v354 = vpop.permute.xlu0 %353
      %355 = vrot.lane.b32.xlu0 %v330, 127
      %v356 = vpop.permute.xlu0 %355
      %357 = vrot.lane.b32.xlu0 %v331, 127
      %v358 = vpop.permute.xlu0 %357
      %359 = vrot.lane.b32.xlu0 %v332, 127
      %v360 = vpop.permute.xlu0 %359
      %361 = vrot.lane.b32.xlu0 %v333, 127
      %v362 = vpop.permute.xlu0 %361
      %363 = vrot.lane.b32.xlu0 %v334, 127
      %v364 = vpop.permute.xlu0 %363
      %365 = vrot.lane.b32.xlu0 %v335, 127
      %v366 = vpop.permute.xlu0 %365
      %367 = vrot.lane.b32.xlu0 %v336, 127
      %v368 = vpop.permute.xlu0 %367
      %369 = vrot.lane.b32.xlu0 %v337, 127
      %v370 = vpop.permute.xlu0 %369
      %371 = vrot.lane.b32.xlu0 %v338, 127
      %v372 = vpop.permute.xlu0 %371
      %vm373 = vcmask 1039360
      %v374 = vsel %vm373, %v352, %v354
      %v375 = vsel %vm373, %v354, %v356
      %v376 = vsel %vm373, %v356, %v358
      %v377 = vsel %vm373, %v358, %v360
      %v378 = vsel %vm373, %v360, %v362
      %v379 = vsel %vm373, %v362, %v364
      %v380 = vsel %vm373, %v364, %v366
      %v381 = vsel %vm373, %v366, %v368
      %v382 = vsel %vm373, %v368, %v370
      %v383 = vsel %vm373, %v370, %v372
      %384 = vrot.lane.b32.xlu0 %v328, 90
      %v385 = vpop.permute.xlu0 %384
      %386 = vrot.lane.b32.xlu0 %v329, 90
      %v387 = vpop.permute.xlu0 %386
      %388 = vrot.lane.b32.xlu0 %v330, 90
      %v389 = vpop.permute.xlu0 %388
      %390 = vrot.lane.b32.xlu0 %v331, 90
      %v391 = vpop.permute.xlu0 %390
      %392 = vrot.lane.b32.xlu0 %v332, 90
      %v393 = vpop.permute.xlu0 %392
      %394 = vrot.lane.b32.xlu0 %v333, 90
      %v395 = vpop.permute.xlu0 %394
      %396 = vrot.lane.b32.xlu0 %v334, 90
      %v397 = vpop.permute.xlu0 %396
      %398 = vrot.lane.b32.xlu0 %v335, 90
      %v399 = vpop.permute.xlu0 %398
      %400 = vrot.lane.b32.xlu0 %v336, 90
      %v401 = vpop.permute.xlu0 %400
      %402 = vrot.lane.b32.xlu0 %v337, 90
      %v403 = vpop.permute.xlu0 %402
      %404 = vrot.lane.b32.xlu0 %v338, 90
      %v405 = vpop.permute.xlu0 %404
      %vm406 = vcmask 736256
      %v407 = vsel %vm406, %v385, %v387
      %v408 = vsel %vm406, %v387, %v389
      %v409 = vsel %vm406, %v389, %v391
      %v410 = vsel %vm406, %v391, %v393
      %v411 = vsel %vm406, %v393, %v395
      %v412 = vsel %vm406, %v395, %v397
      %v413 = vsel %vm406, %v397, %v399
      %v414 = vsel %vm406, %v399, %v401
      %v415 = vsel %vm406, %v401, %v403
      %v416 = vsel %vm406, %v403, %v405
      %417 = vrot.lane.b32.xlu0 %v328, 89
      %v418 = vpop.permute.xlu0 %417
      %419 = vrot.lane.b32.xlu0 %v329, 89
      %v420 = vpop.permute.xlu0 %419
      %421 = vrot.lane.b32.xlu0 %v330, 89
      %v422 = vpop.permute.xlu0 %421
      %423 = vrot.lane.b32.xlu0 %v331, 89
      %v424 = vpop.permute.xlu0 %423
      %425 = vrot.lane.b32.xlu0 %v332, 89
      %v426 = vpop.permute.xlu0 %425
      %427 = vrot.lane.b32.xlu0 %v333, 89
      %v428 = vpop.permute.xlu0 %427
      %429 = vrot.lane.b32.xlu0 %v334, 89
      %v430 = vpop.permute.xlu0 %429
      %431 = vrot.lane.b32.xlu0 %v335, 89
      %v432 = vpop.permute.xlu0 %431
      %433 = vrot.lane.b32.xlu0 %v336, 89
      %v434 = vpop.permute.xlu0 %433
      %435 = vrot.lane.b32.xlu0 %v337, 89
      %v436 = vpop.permute.xlu0 %435
      %437 = vrot.lane.b32.xlu0 %v338, 89
      %v438 = vpop.permute.xlu0 %437
      %vm439 = vcmask 728064
      %v440 = vsel %vm439, %v418, %v420
      %v441 = vsel %vm439, %v420, %v422
      %v442 = vsel %vm439, %v422, %v424
      %v443 = vsel %vm439, %v424, %v426
      %v444 = vsel %vm439, %v426, %v428
      %v445 = vsel %vm439, %v428, %v430
      %v446 = vsel %vm439, %v430, %v432
      %v447 = vsel %vm439, %v432, %v434
      %v448 = vsel %vm439, %v434, %v436
      %v449 = vsel %vm439, %v436, %v438
      %450 = vrot.lane.b32.xlu0 %v328, 126
      %v451 = vpop.permute.xlu0 %450
      %452 = vrot.lane.b32.xlu0 %v329, 126
      %v453 = vpop.permute.xlu0 %452
      %454 = vrot.lane.b32.xlu0 %v330, 126
      %v455 = vpop.permute.xlu0 %454
      %456 = vrot.lane.b32.xlu0 %v331, 126
      %v457 = vpop.permute.xlu0 %456
      %458 = vrot.lane.b32.xlu0 %v332, 126
      %v459 = vpop.permute.xlu0 %458
      %460 = vrot.lane.b32.xlu0 %v333, 126
      %v461 = vpop.permute.xlu0 %460
      %462 = vrot.lane.b32.xlu0 %v334, 126
      %v463 = vpop.permute.xlu0 %462
      %464 = vrot.lane.b32.xlu0 %v335, 126
      %v465 = vpop.permute.xlu0 %464
      %466 = vrot.lane.b32.xlu0 %v336, 126
      %v467 = vpop.permute.xlu0 %466
      %468 = vrot.lane.b32.xlu0 %v337, 126
      %v469 = vpop.permute.xlu0 %468
      %470 = vrot.lane.b32.xlu0 %v338, 126
      %v471 = vpop.permute.xlu0 %470
      %vm472 = vcmask 1031168
      %v473 = vsel %vm472, %v451, %v453
      %v474 = vsel %vm472, %v453, %v455
      %v475 = vsel %vm472, %v455, %v457
      %v476 = vsel %vm472, %v457, %v459
      %v477 = vsel %vm472, %v459, %v461
      %v478 = vsel %vm472, %v461, %v463
      %v479 = vsel %vm472, %v463, %v465
      %v480 = vsel %vm472, %v465, %v467
      %v481 = vsel %vm472, %v467, %v469
      %v482 = vsel %vm472, %v469, %v471
      %483 = vrot.lane.b32.xlu0 %v328, 88
      %v484 = vpop.permute.xlu0 %483
      %485 = vrot.lane.b32.xlu0 %v329, 88
      %v486 = vpop.permute.xlu0 %485
      %487 = vrot.lane.b32.xlu0 %v330, 88
      %v488 = vpop.permute.xlu0 %487
      %489 = vrot.lane.b32.xlu0 %v331, 88
      %v490 = vpop.permute.xlu0 %489
      %491 = vrot.lane.b32.xlu0 %v332, 88
      %v492 = vpop.permute.xlu0 %491
      %493 = vrot.lane.b32.xlu0 %v333, 88
      %v494 = vpop.permute.xlu0 %493
      %495 = vrot.lane.b32.xlu0 %v334, 88
      %v496 = vpop.permute.xlu0 %495
      %497 = vrot.lane.b32.xlu0 %v335, 88
      %v498 = vpop.permute.xlu0 %497
      %499 = vrot.lane.b32.xlu0 %v336, 88
      %v500 = vpop.permute.xlu0 %499
      %501 = vrot.lane.b32.xlu0 %v337, 88
      %v502 = vpop.permute.xlu0 %501
      %503 = vrot.lane.b32.xlu0 %v338, 88
      %v504 = vpop.permute.xlu0 %503
      %vm505 = vcmask 719872
      %v506 = vsel %vm505, %v484, %v486
      %v507 = vsel %vm505, %v486, %v488
      %v508 = vsel %vm505, %v488, %v490
      %v509 = vsel %vm505, %v490, %v492
      %v510 = vsel %vm505, %v492, %v494
      %v511 = vsel %vm505, %v494, %v496
      %v512 = vsel %vm505, %v496, %v498
      %v513 = vsel %vm505, %v498, %v500
      %v514 = vsel %vm505, %v500, %v502
      %v515 = vsel %vm505, %v502, %v504
      %516 = vrot.lane.b32.xlu0 %v328, 52
      %v517 = vpop.permute.xlu0 %516
      %518 = vrot.lane.b32.xlu0 %v329, 52
      %v519 = vpop.permute.xlu0 %518
      %520 = vrot.lane.b32.xlu0 %v330, 52
      %v521 = vpop.permute.xlu0 %520
      %522 = vrot.lane.b32.xlu0 %v331, 52
      %v523 = vpop.permute.xlu0 %522
      %524 = vrot.lane.b32.xlu0 %v332, 52
      %v525 = vpop.permute.xlu0 %524
      %526 = vrot.lane.b32.xlu0 %v333, 52
      %v527 = vpop.permute.xlu0 %526
      %528 = vrot.lane.b32.xlu0 %v334, 52
      %v529 = vpop.permute.xlu0 %528
      %530 = vrot.lane.b32.xlu0 %v335, 52
      %v531 = vpop.permute.xlu0 %530
      %532 = vrot.lane.b32.xlu0 %v336, 52
      %v533 = vpop.permute.xlu0 %532
      %534 = vrot.lane.b32.xlu0 %v337, 52
      %v535 = vpop.permute.xlu0 %534
      %536 = vrot.lane.b32.xlu0 %v338, 52
      %v537 = vpop.permute.xlu0 %536
      %vm538 = vcmask 424960
      %v539 = vsel %vm538, %v517, %v519
      %v540 = vsel %vm538, %v519, %v521
      %v541 = vsel %vm538, %v521, %v523
      %v542 = vsel %vm538, %v523, %v525
      %v543 = vsel %vm538, %v525, %v527
      %v544 = vsel %vm538, %v527, %v529
      %v545 = vsel %vm538, %v529, %v531
      %v546 = vsel %vm538, %v531, %v533
      %v547 = vsel %vm538, %v533, %v535
      %v548 = vsel %vm538, %v535, %v537
      %549 = vrot.lane.b32.xlu0 %v328, 51
      %v550 = vpop.permute.xlu0 %549
      %551 = vrot.lane.b32.xlu0 %v329, 51
      %v552 = vpop.permute.xlu0 %551
      %553 = vrot.lane.b32.xlu0 %v330, 51
      %v554 = vpop.permute.xlu0 %553
      %555 = vrot.lane.b32.xlu0 %v331, 51
      %v556 = vpop.permute.xlu0 %555
      %557 = vrot.lane.b32.xlu0 %v332, 51
      %v558 = vpop.permute.xlu0 %557
      %559 = vrot.lane.b32.xlu0 %v333, 51
      %v560 = vpop.permute.xlu0 %559
      %561 = vrot.lane.b32.xlu0 %v334, 51
      %v562 = vpop.permute.xlu0 %561
      %563 = vrot.lane.b32.xlu0 %v335, 51
      %v564 = vpop.permute.xlu0 %563
      %565 = vrot.lane.b32.xlu0 %v336, 51
      %v566 = vpop.permute.xlu0 %565
      %567 = vrot.lane.b32.xlu0 %v337, 51
      %v568 = vpop.permute.xlu0 %567
      %569 = vrot.lane.b32.xlu0 %v338, 51
      %v570 = vpop.permute.xlu0 %569
      %vm571 = vcmask 416768
      %v572 = vsel %vm571, %v550, %v552
      %v573 = vsel %vm571, %v552, %v554
      %v574 = vsel %vm571, %v554, %v556
      %v575 = vsel %vm571, %v556, %v558
      %v576 = vsel %vm571, %v558, %v560
      %v577 = vsel %vm571, %v560, %v562
      %v578 = vsel %vm571, %v562, %v564
      %v579 = vsel %vm571, %v564, %v566
      %v580 = vsel %vm571, %v566, %v568
      %v581 = vsel %vm571, %v568, %v570
      %583 = vrot.lane.b32.xlu0 %v328, 50
      %v584 = vpop.permute.xlu0 %583
      %585 = vrot.lane.b32.xlu0 %v329, 50
      %v586 = vpop.permute.xlu0 %585
      %587 = vrot.lane.b32.xlu0 %v330, 50
      %v588 = vpop.permute.xlu0 %587
      %589 = vrot.lane.b32.xlu0 %v331, 50
      %v590 = vpop.permute.xlu0 %589
      %591 = vrot.lane.b32.xlu0 %v332, 50
      %v592 = vpop.permute.xlu0 %591
      %593 = vrot.lane.b32.xlu0 %v333, 50
      %v594 = vpop.permute.xlu0 %593
      %595 = vrot.lane.b32.xlu0 %v334, 50
      %v596 = vpop.permute.xlu0 %595
      %597 = vrot.lane.b32.xlu0 %v335, 50
      %v598 = vpop.permute.xlu0 %597
      %599 = vrot.lane.b32.xlu0 %v336, 50
      %v600 = vpop.permute.xlu0 %599
      %601 = vrot.lane.b32.xlu0 %v337, 50
      %v602 = vpop.permute.xlu0 %601
      %603 = vrot.lane.b32.xlu0 %v338, 50
      %v604 = vpop.permute.xlu0 %603
      %605 = vrot.lane.b32.xlu0 %v339, 50
      %v606 = vpop.permute.xlu0 %605
      %vm607 = vcmask 408576
      %v608 = vsel %vm607, %v584, %v586
      %v609 = vsel %vm607, %v586, %v588
      %v610 = vsel %vm607, %v588, %v590
      %v611 = vsel %vm607, %v590, %v592
      %v612 = vsel %vm607, %v592, %v594
      %v613 = vsel %vm607, %v594, %v596
      %v614 = vsel %vm607, %v596, %v598
      %v615 = vsel %vm607, %v598, %v600
      %v616 = vsel %vm607, %v600, %v602
      %v617 = vsel %vm607, %v602, %v604
      %v618 = vsel %vm607, %v604, %v606
      %v619 = vld [vmem:[%s1] sm:$0xff]
      %v620 = vld [vmem:[%s1 + $0x8] sm:$0x33]
      %v621 = vld [vmem:[%s2] sm:$0xff]
      %v622 = vld [vmem:[%s2 + $0x8] sm:$0xf]
      %624 = vset.pattern.permute.xlu0 0
      %625 = vperm.xlu0 %624, %v621
      %v626 = vpop.permute.xlu0 %625
      %629 = vset.pattern.permute.xlu0 0
      %630 = vperm.xlu0 %629, %v622
      %v631 = vpop.permute.xlu0 %630
      %v635 = vunpack.c.l.b16 %v619
      %v636 = vunpack.c.h.b16 %v619
      %v637 = vunpack.c.l.b16 %v620
      %v638 = vunpack.c.h.b16 %v620
      %v639 = vpack.c.b16 %v637, %v635
      %v640 = vpack.c.b16 %v638, %v636
      %643 = vrot.lane.b32.xlu0 %v374, 89
      %v644 = vpop.permute.xlu0 %643
      %645 = vrot.lane.b32.xlu0 %v375, 89
      %v646 = vpop.permute.xlu0 %645
      %647 = vrot.lane.b32.xlu0 %v376, 89
      %v648 = vpop.permute.xlu0 %647
      %649 = vrot.lane.b32.xlu0 %v377, 89
      %v650 = vpop.permute.xlu0 %649
      %651 = vrot.lane.b32.xlu0 %v378, 89
      %v652 = vpop.permute.xlu0 %651
      %653 = vrot.lane.b32.xlu0 %v379, 89
      %v654 = vpop.permute.xlu0 %653
      %655 = vrot.lane.b32.xlu0 %v380, 89
      %v656 = vpop.permute.xlu0 %655
      %657 = vrot.lane.b32.xlu0 %v381, 89
      %v658 = vpop.permute.xlu0 %657
      %659 = vrot.lane.b32.xlu0 %v382, 89
      %v660 = vpop.permute.xlu0 %659
      %661 = vrot.lane.b32.xlu0 %v383, 89
      %v662 = vpop.permute.xlu0 %661
      %663 = vrot.lane.b32.xlu0 %v372, 89
      %v664 = vpop.permute.xlu0 %663
      %665 = vrot.lane.b32.xlu0 %v407, 89
      %v666 = vpop.permute.xlu0 %665
      %667 = vrot.lane.b32.xlu0 %v408, 89
      %v668 = vpop.permute.xlu0 %667
      %669 = vrot.lane.b32.xlu0 %v409, 89
      %v670 = vpop.permute.xlu0 %669
      %671 = vrot.lane.b32.xlu0 %v410, 89
      %v672 = vpop.permute.xlu0 %671
      %673 = vrot.lane.b32.xlu0 %v411, 89
      %v674 = vpop.permute.xlu0 %673
      %675 = vrot.lane.b32.xlu0 %v412, 89
      %v676 = vpop.permute.xlu0 %675
      %677 = vrot.lane.b32.xlu0 %v413, 89
      %v678 = vpop.permute.xlu0 %677
      %679 = vrot.lane.b32.xlu0 %v414, 89
      %v680 = vpop.permute.xlu0 %679
      %681 = vrot.lane.b32.xlu0 %v415, 89
      %v682 = vpop.permute.xlu0 %681
      %683 = vrot.lane.b32.xlu0 %v416, 89
      %v684 = vpop.permute.xlu0 %683
      %685 = vrot.lane.b32.xlu0 %v405, 89
      %v686 = vpop.permute.xlu0 %685
      %687 = vrot.lane.b32.xlu0 %v440, 89
      %v688 = vpop.permute.xlu0 %687
      %689 = vrot.lane.b32.xlu0 %v441, 89
      %v690 = vpop.permute.xlu0 %689
      %691 = vrot.lane.b32.xlu0 %v442, 89
      %v692 = vpop.permute.xlu0 %691
      %693 = vrot.lane.b32.xlu0 %v443, 89
      %v694 = vpop.permute.xlu0 %693
      %695 = vrot.lane.b32.xlu0 %v444, 89
      %v696 = vpop.permute.xlu0 %695
      %697 = vrot.lane.b32.xlu0 %v445, 89
      %v698 = vpop.permute.xlu0 %697
      %699 = vrot.lane.b32.xlu0 %v446, 89
      %v700 = vpop.permute.xlu0 %699
      %701 = vrot.lane.b32.xlu0 %v447, 89
      %v702 = vpop.permute.xlu0 %701
      %703 = vrot.lane.b32.xlu0 %v448, 89
      %v704 = vpop.permute.xlu0 %703
      %705 = vrot.lane.b32.xlu0 %v449, 89
      %v706 = vpop.permute.xlu0 %705
      %707 = vrot.lane.b32.xlu0 %v438, 89
      %v708 = vpop.permute.xlu0 %707
      %709 = vrot.lane.b32.xlu0 %v473, 89
      %v710 = vpop.permute.xlu0 %709
      %711 = vrot.lane.b32.xlu0 %v474, 89
      %v712 = vpop.permute.xlu0 %711
      %713 = vrot.lane.b32.xlu0 %v475, 89
      %v714 = vpop.permute.xlu0 %713
      %715 = vrot.lane.b32.xlu0 %v476, 89
      %v716 = vpop.permute.xlu0 %715
      %717 = vrot.lane.b32.xlu0 %v477, 89
      %v718 = vpop.permute.xlu0 %717
      %719 = vrot.lane.b32.xlu0 %v478, 89
      %v720 = vpop.permute.xlu0 %719
      %721 = vrot.lane.b32.xlu0 %v479, 89
      %v722 = vpop.permute.xlu0 %721
      %723 = vrot.lane.b32.xlu0 %v480, 89
      %v724 = vpop.permute.xlu0 %723
      %725 = vrot.lane.b32.xlu0 %v481, 89
      %v726 = vpop.permute.xlu0 %725
      %727 = vrot.lane.b32.xlu0 %v482, 89
      %v728 = vpop.permute.xlu0 %727
      %729 = vrot.lane.b32.xlu0 %v471, 89
      %v730 = vpop.permute.xlu0 %729
      %731 = vrot.lane.b32.xlu0 %v506, 89
      %v732 = vpop.permute.xlu0 %731
      %733 = vrot.lane.b32.xlu0 %v507, 89
      %v734 = vpop.permute.xlu0 %733
      %735 = vrot.lane.b32.xlu0 %v508, 89
      %v736 = vpop.permute.xlu0 %735
      %737 = vrot.lane.b32.xlu0 %v509, 89
      %v738 = vpop.permute.xlu0 %737
      %739 = vrot.lane.b32.xlu0 %v510, 89
      %v740 = vpop.permute.xlu0 %739
      %741 = vrot.lane.b32.xlu0 %v511, 89
      %v742 = vpop.permute.xlu0 %741
      %743 = vrot.lane.b32.xlu0 %v512, 89
      %v744 = vpop.permute.xlu0 %743
      %745 = vrot.lane.b32.xlu0 %v513, 89
      %v746 = vpop.permute.xlu0 %745
      %747 = vrot.lane.b32.xlu0 %v514, 89
      %v748 = vpop.permute.xlu0 %747
      %749 = vrot.lane.b32.xlu0 %v515, 89
      %v750 = vpop.permute.xlu0 %749
      %751 = vrot.lane.b32.xlu0 %v504, 89
      %v752 = vpop.permute.xlu0 %751
      %753 = vrot.lane.b32.xlu0 %v539, 89
      %v754 = vpop.permute.xlu0 %753
      %755 = vrot.lane.b32.xlu0 %v540, 89
      %v756 = vpop.permute.xlu0 %755
      %757 = vrot.lane.b32.xlu0 %v541, 89
      %v758 = vpop.permute.xlu0 %757
      %759 = vrot.lane.b32.xlu0 %v542, 89
      %v760 = vpop.permute.xlu0 %759
      %761 = vrot.lane.b32.xlu0 %v543, 89
      %v762 = vpop.permute.xlu0 %761
      %763 = vrot.lane.b32.xlu0 %v544, 89
      %v764 = vpop.permute.xlu0 %763
      %765 = vrot.lane.b32.xlu0 %v545, 89
      %v766 = vpop.permute.xlu0 %765
      %767 = vrot.lane.b32.xlu0 %v546, 89
      %v768 = vpop.permute.xlu0 %767
      %769 = vrot.lane.b32.xlu0 %v547, 89
      %v770 = vpop.permute.xlu0 %769
      %771 = vrot.lane.b32.xlu0 %v548, 89
      %v772 = vpop.permute.xlu0 %771
      %773 = vrot.lane.b32.xlu0 %v537, 89
      %v774 = vpop.permute.xlu0 %773
      %775 = vrot.lane.b32.xlu0 %v572, 89
      %v776 = vpop.permute.xlu0 %775
      %777 = vrot.lane.b32.xlu0 %v573, 89
      %v778 = vpop.permute.xlu0 %777
      %779 = vrot.lane.b32.xlu0 %v574, 89
      %v780 = vpop.permute.xlu0 %779
      %781 = vrot.lane.b32.xlu0 %v575, 89
      %v782 = vpop.permute.xlu0 %781
      %783 = vrot.lane.b32.xlu0 %v576, 89
      %v784 = vpop.permute.xlu0 %783
      %785 = vrot.lane.b32.xlu0 %v577, 89
      %v786 = vpop.permute.xlu0 %785
      %787 = vrot.lane.b32.xlu0 %v578, 89
      %v788 = vpop.permute.xlu0 %787
      %789 = vrot.lane.b32.xlu0 %v579, 89
      %v790 = vpop.permute.xlu0 %789
      %791 = vrot.lane.b32.xlu0 %v580, 89
      %v792 = vpop.permute.xlu0 %791
      %793 = vrot.lane.b32.xlu0 %v581, 89
      %v794 = vpop.permute.xlu0 %793
      %795 = vrot.lane.b32.xlu0 %v570, 89
      %v796 = vpop.permute.xlu0 %795
      %797 = vrot.lane.b32.xlu0 %v608, 89
      %v798 = vpop.permute.xlu0 %797
      %799 = vrot.lane.b32.xlu0 %v609, 89
      %v800 = vpop.permute.xlu0 %799
      %801 = vrot.lane.b32.xlu0 %v610, 89
      %v802 = vpop.permute.xlu0 %801
      %803 = vrot.lane.b32.xlu0 %v611, 89
      %v804 = vpop.permute.xlu0 %803
      %805 = vrot.lane.b32.xlu0 %v612, 89
      %v806 = vpop.permute.xlu0 %805
      %807 = vrot.lane.b32.xlu0 %v613, 89
      %v808 = vpop.permute.xlu0 %807
      %809 = vrot.lane.b32.xlu0 %v614, 89
      %v810 = vpop.permute.xlu0 %809
      %811 = vrot.lane.b32.xlu0 %v615, 89
      %v812 = vpop.permute.xlu0 %811
      %813 = vrot.lane.b32.xlu0 %v616, 89
      %v814 = vpop.permute.xlu0 %813
      %815 = vrot.lane.b32.xlu0 %v617, 89
      %v816 = vpop.permute.xlu0 %815
      %817 = vrot.lane.b32.xlu0 %v618, 89
      %v818 = vpop.permute.xlu0 %817
      %v819 = vsel %vm439, %v644, %v646
      %v820 = vsel %vm439, %v646, %v648
      %v821 = vsel %vm439, %v648, %v650
      %v822 = vsel %vm439, %v650, %v652
      %v823 = vsel %vm439, %v652, %v654
      %v824 = vsel %vm439, %v654, %v656
      %v825 = vsel %vm439, %v656, %v658
      %v826 = vsel %vm439, %v658, %v660
      %v827 = vsel %vm439, %v660, %v662
      %v828 = vsel %vm439, %v662, %v664
      %v829 = vsel %vm439, %v666, %v668
      %v830 = vsel %vm439, %v668, %v670
      %v831 = vsel %vm439, %v670, %v672
      %v832 = vsel %vm439, %v672, %v674
      %v833 = vsel %vm439, %v674, %v676
      %v834 = vsel %vm439, %v676, %v678
      %v835 = vsel %vm439, %v678, %v680
      %v836 = vsel %vm439, %v680, %v682
      %v837 = vsel %vm439, %v682, %v684
      %v838 = vsel %vm439, %v684, %v686
      %v839 = vsel %vm439, %v688, %v690
      %v840 = vsel %vm439, %v690, %v692
      %v841 = vsel %vm439, %v692, %v694
      %v842 = vsel %vm439, %v694, %v696
      %v843 = vsel %vm439, %v696, %v698
      %v844 = vsel %vm439, %v698, %v700
      %v845 = vsel %vm439, %v700, %v702
      %v846 = vsel %vm439, %v702, %v704
      %v847 = vsel %vm439, %v704, %v706
      %v848 = vsel %vm439, %v706, %v708
      %v849 = vsel %vm439, %v710, %v712
      %v850 = vsel %vm439, %v712, %v714
      %v851 = vsel %vm439, %v714, %v716
      %v852 = vsel %vm439, %v716, %v718
      %v853 = vsel %vm439, %v718, %v720
      %v854 = vsel %vm439, %v720, %v722
      %v855 = vsel %vm439, %v722, %v724
      %v856 = vsel %vm439, %v724, %v726
      %v857 = vsel %vm439, %v726, %v728
      %v858 = vsel %vm439, %v728, %v730
      %v859 = vsel %vm439, %v732, %v734
      %v860 = vsel %vm439, %v734, %v736
      %v861 = vsel %vm439, %v736, %v738
      %v862 = vsel %vm439, %v738, %v740
      %v863 = vsel %vm439, %v740, %v742
      %v864 = vsel %vm439, %v742, %v744
      %v865 = vsel %vm439, %v744, %v746
      %v866 = vsel %vm439, %v746, %v748
      %v867 = vsel %vm439, %v748, %v750
      %v868 = vsel %vm439, %v750, %v752
      %v869 = vsel %vm439, %v754, %v756
      %v870 = vsel %vm439, %v756, %v758
      %v871 = vsel %vm439, %v758, %v760
      %v872 = vsel %vm439, %v760, %v762
      %v873 = vsel %vm439, %v762, %v764
      %v874 = vsel %vm439, %v764, %v766
      %v875 = vsel %vm439, %v766, %v768
      %v876 = vsel %vm439, %v768, %v770
      %v877 = vsel %vm439, %v770, %v772
      %v878 = vsel %vm439, %v772, %v774
      %v879 = vsel %vm439, %v776, %v778
      %v880 = vsel %vm439, %v778, %v780
      %v881 = vsel %vm439, %v780, %v782
      %v882 = vsel %vm439, %v782, %v784
      %v883 = vsel %vm439, %v784, %v786
      %v884 = vsel %vm439, %v786, %v788
      %v885 = vsel %vm439, %v788, %v790
      %v886 = vsel %vm439, %v790, %v792
      %v887 = vsel %vm439, %v792, %v794
      %v888 = vsel %vm439, %v794, %v796
      %v889 = vsel %vm439, %v798, %v800
      %v890 = vsel %vm439, %v800, %v802
      %v891 = vsel %vm439, %v802, %v804
      %v892 = vsel %vm439, %v804, %v806
      %v893 = vsel %vm439, %v806, %v808
      %v894 = vsel %vm439, %v808, %v810
      %v895 = vsel %vm439, %v810, %v812
      %v896 = vsel %vm439, %v812, %v814
      %v897 = vsel %vm439, %v814, %v816
      %v898 = vsel %vm439, %v816, %v818
      %998 = vmatprep.subr.bf16.mxu0 %v441
      %999 = vmatpush1.bf16.msra.mxu0 %v440
      %1000 = vmatprep.subr.bf16.mxu0 %v820
      %1001 = vmatpush1.bf16.msra.mxu0 %v819
      %1002 = vmatprep.subr.bf16.mxu0 %v830
      %1003 = vmatpush1.bf16.msra.mxu0 %v829
      %1004 = vmatprep.subr.bf16.mxu0 %v840
      %1005 = vmatpush1.bf16.msra.mxu0 %v839
      %1006 = vmatprep.subr.bf16.mxu0 %v820
      %1007 = vmatpush1.bf16.msra.mxu0 %v819
      %1008 = vmatprep.subr.bf16.mxu0 %v850
      %1009 = vmatpush1.bf16.msra.mxu0 %v849
      %1010 = vmatprep.subr.bf16.mxu0 %v840
      %1011 = vmatpush1.bf16.msra.mxu0 %v839
      %1012 = vmatprep.subr.bf16.mxu0 %v860
      %1013 = vmatpush1.bf16.msra.mxu0 %v859
      %1014 = vmatprep.subr.bf16.mxu0 %v830
      %1015 = vmatpush1.bf16.msra.mxu0 %v829
      %1016 = vmatprep.subr.bf16.mxu0 %v840
      %1017 = vmatpush1.bf16.msra.mxu0 %v839
      %1018 = vmatprep.subr.bf16.mxu0 %v870
      %1019 = vmatpush1.bf16.msra.mxu0 %v869
      %1020 = vmatprep.subr.bf16.mxu0 %v880
      %1021 = vmatpush1.bf16.msra.mxu0 %v879
      %1022 = vmatprep.subr.bf16.mxu0 %v840
      %1023 = vmatpush1.bf16.msra.mxu0 %v839
      %1024 = vmatprep.subr.bf16.mxu0 %v860
      %1025 = vmatpush1.bf16.msra.mxu0 %v859
      %1026 = vmatprep.subr.bf16.mxu0 %v880
      %1027 = vmatpush1.bf16.msra.mxu0 %v879
      %1028 = vmatprep.subr.bf16.mxu0 %v890
      %1029 = vmatpush1.bf16.msra.mxu0 %v889
      %1030 = vmatprep.mubr.bf16.mxu0 %v640
      %1031 = vmatmul.mubr.bf16.gmra.mrb[0].mxu0 %v639
      %v1032 = vpop.f32.mrb[0].mxu0
      %v1033 = vadd.f32 %v626, %v1032
      %v1034 = vpop.f32.mrb[0].mxu0
      %v1035 = vadd.f32 %v626, %v1034
      %v1036 = vpop.f32.mrb[0].mxu0
      %v1037 = vadd.f32 %v631, %v1036
      %v1038 = vpop.f32.mrb[0].mxu0
      %v1039 = vadd.f32 %v631, %v1038
      %1040 = vdwg.mxu0
      %1041 = vmatprep.subr.bf16.mxu0 %v443
      %1042 = vmatpush1.bf16.msra.mxu0 %v442
      %1043 = vmatprep.subr.bf16.mxu0 %v822
      %1044 = vmatpush1.bf16.msra.mxu0 %v821
      %1045 = vmatprep.subr.bf16.mxu0 %v832
      %1046 = vmatpush1.bf16.msra.mxu0 %v831
      %1047 = vmatprep.subr.bf16.mxu0 %v842
      %1048 = vmatpush1.bf16.msra.mxu0 %v841
      %1049 = vmatprep.subr.bf16.mxu0 %v822
      %1050 = vmatpush1.bf16.msra.mxu0 %v821
      %1051 = vmatprep.subr.bf16.mxu0 %v852
      %1052 = vmatpush1.bf16.msra.mxu0 %v851
      %1053 = vmatprep.subr.bf16.mxu0 %v842
      %1054 = vmatpush1.bf16.msra.mxu0 %v841
      %1055 = vmatprep.subr.bf16.mxu0 %v862
      %1056 = vmatpush1.bf16.msra.mxu0 %v861
      %1057 = vmatprep.subr.bf16.mxu0 %v832
      %1058 = vmatpush1.bf16.msra.mxu0 %v831
      %1059 = vmatprep.subr.bf16.mxu0 %v842
      %1060 = vmatpush1.bf16.msra.mxu0 %v841
      %1061 = vmatprep.subr.bf16.mxu0 %v872
      %1062 = vmatpush1.bf16.msra.mxu0 %v871
      %1063 = vmatprep.subr.bf16.mxu0 %v882
      %1064 = vmatpush1.bf16.msra.mxu0 %v881
      %1065 = vmatprep.subr.bf16.mxu0 %v842
      %1066 = vmatpush1.bf16.msra.mxu0 %v841
      %1067 = vmatprep.subr.bf16.mxu0 %v862
      %1068 = vmatpush1.bf16.msra.mxu0 %v861
      %1069 = vmatprep.subr.bf16.mxu0 %v882
      %1070 = vmatpush1.bf16.msra.mxu0 %v881
      %1071 = vmatprep.subr.bf16.mxu0 %v892
      %1072 = vmatpush1.bf16.msra.mxu0 %v891
      %1073 = vmatprep.mubr.bf16.mxu0 %v640
      %1074 = vmatmul.mubr.bf16.gmra.mrb[0].mxu0 %v639
      %v1075 = vpop.f32.mrb[0].mxu0
      %v1076 = vadd.f32 %v626, %v1075
      %v1077 = vpop.f32.mrb[0].mxu0
      %v1078 = vadd.f32 %v626, %v1077
      %v1079 = vpop.f32.mrb[0].mxu0
      %v1080 = vadd.f32 %v631, %v1079
      %v1081 = vpop.f32.mrb[0].mxu0
      %v1082 = vadd.f32 %v631, %v1081
      %1083 = vdwg.mxu0
      %1084 = vmatprep.subr.bf16.mxu0 %v445
      %1085 = vmatpush1.bf16.msra.mxu0 %v444
      %1086 = vmatprep.subr.bf16.mxu0 %v824
      %1087 = vmatpush1.bf16.msra.mxu0 %v823
      %1088 = vmatprep.subr.bf16.mxu0 %v834
      %1089 = vmatpush1.bf16.msra.mxu0 %v833
      %1090 = vmatprep.subr.bf16.mxu0 %v844
      %1091 = vmatpush1.bf16.msra.mxu0 %v843
      %1092 = vmatprep.subr.bf16.mxu0 %v824
      %1093 = vmatpush1.bf16.msra.mxu0 %v823
      %1094 = vmatprep.subr.bf16.mxu0 %v854
      %1095 = vmatpush1.bf16.msra.mxu0 %v853
      %1096 = vmatprep.subr.bf16.mxu0 %v844
      %1097 = vmatpush1.bf16.msra.mxu0 %v843
      %1098 = vmatprep.subr.bf16.mxu0 %v864
      %1099 = vmatpush1.bf16.msra.mxu0 %v863
      %1100 = vmatprep.subr.bf16.mxu0 %v834
      %1101 = vmatpush1.bf16.msra.mxu0 %v833
      %1102 = vmatprep.subr.bf16.mxu0 %v844
      %1103 = vmatpush1.bf16.msra.mxu0 %v843
      %1104 = vmatprep.subr.bf16.mxu0 %v874
      %1105 = vmatpush1.bf16.msra.mxu0 %v873
      %1106 = vmatprep.subr.bf16.mxu0 %v884
      %1107 = vmatpush1.bf16.msra.mxu0 %v883
      %1108 = vmatprep.subr.bf16.mxu0 %v844
      %1109 = vmatpush1.bf16.msra.mxu0 %v843
      %1110 = vmatprep.subr.bf16.mxu0 %v864
      %1111 = vmatpush1.bf16.msra.mxu0 %v863
      %1112 = vmatprep.subr.bf16.mxu0 %v884
      %1113 = vmatpush1.bf16.msra.mxu0 %v883
      %1114 = vmatprep.subr.bf16.mxu0 %v894
      %1115 = vmatpush1.bf16.msra.mxu0 %v893
      %1116 = vmatprep.mubr.bf16.mxu0 %v640
      %1117 = vmatmul.mubr.bf16.gmra.mrb[0].mxu0 %v639
      %v1118 = vpop.f32.mrb[0].mxu0
      %v1119 = vadd.f32 %v626, %v1118
      %v1120 = vpop.f32.mrb[0].mxu0
      %v1121 = vadd.f32 %v626, %v1120
      %v1122 = vpop.f32.mrb[0].mxu0
      %v1123 = vadd.f32 %v631, %v1122
      %v1124 = vpop.f32.mrb[0].mxu0
      %v1125 = vadd.f32 %v631, %v1124
      %1126 = vdwg.mxu0
      %1127 = vmatprep.subr.bf16.mxu0 %v447
      %1128 = vmatpush1.bf16.msra.mxu0 %v446
      %1129 = vmatprep.subr.bf16.mxu0 %v826
      %1130 = vmatpush1.bf16.msra.mxu0 %v825
      %1131 = vmatprep.subr.bf16.mxu0 %v836
      %1132 = vmatpush1.bf16.msra.mxu0 %v835
      %1133 = vmatprep.subr.bf16.mxu0 %v846
      %1134 = vmatpush1.bf16.msra.mxu0 %v845
      %1135 = vmatprep.subr.bf16.mxu0 %v826
      %1136 = vmatpush1.bf16.msra.mxu0 %v825
      %1137 = vmatprep.subr.bf16.mxu0 %v856
      %1138 = vmatpush1.bf16.msra.mxu0 %v855
      %1139 = vmatprep.subr.bf16.mxu0 %v846
      %1140 = vmatpush1.bf16.msra.mxu0 %v845
      %1141 = vmatprep.subr.bf16.mxu0 %v866
      %1142 = vmatpush1.bf16.msra.mxu0 %v865
      %1143 = vmatprep.subr.bf16.mxu0 %v836
      %1144 = vmatpush1.bf16.msra.mxu0 %v835
      %1145 = vmatprep.subr.bf16.mxu0 %v846
      %1146 = vmatpush1.bf16.msra.mxu0 %v845
      %1147 = vmatprep.subr.bf16.mxu0 %v876
      %1148 = vmatpush1.bf16.msra.mxu0 %v875
      %1149 = vmatprep.subr.bf16.mxu0 %v886
      %1150 = vmatpush1.bf16.msra.mxu0 %v885
      %1151 = vmatprep.subr.bf16.mxu0 %v846
      %1152 = vmatpush1.bf16.msra.mxu0 %v845
      %1153 = vmatprep.subr.bf16.mxu0 %v866
      %1154 = vmatpush1.bf16.msra.mxu0 %v865
      %1155 = vmatprep.subr.bf16.mxu0 %v886
      %1156 = vmatpush1.bf16.msra.mxu0 %v885
      %1157 = vmatprep.subr.bf16.mxu0 %v896
      %1158 = vmatpush1.bf16.msra.mxu0 %v895
      %1159 = vmatprep.mubr.bf16.mxu0 %v640
      %1160 = vmatmul.mubr.bf16.gmra.mrb[0].mxu0 %v639
      %v1161 = vpop.f32.mrb[0].mxu0
      %v1162 = vadd.f32 %v626, %v1161
      %v1163 = vpop.f32.mrb[0].mxu0
      %v1164 = vadd.f32 %v626, %v1163
      %v1165 = vpop.f32.mrb[0].mxu0
      %v1166 = vadd.f32 %v631, %v1165
      %v1167 = vpop.f32.mrb[0].mxu0
      %v1168 = vadd.f32 %v631, %v1167
      %1169 = vdwg.mxu0
      %1170 = vmatprep.subr.bf16.mxu0 %v449
      %1171 = vmatpush1.bf16.msra.mxu0 %v448
      %1172 = vmatprep.subr.bf16.mxu0 %v828
      %1173 = vmatpush1.bf16.msra.mxu0 %v827
      %1174 = vmatprep.subr.bf16.mxu0 %v838
      %1175 = vmatpush1.bf16.msra.mxu0 %v837
      %1176 = vmatprep.subr.bf16.mxu0 %v848
      %1177 = vmatpush1.bf16.msra.mxu0 %v847
      %1178 = vmatprep.subr.bf16.mxu0 %v828
      %1179 = vmatpush1.bf16.msra.mxu0 %v827
      %1180 = vmatprep.subr.bf16.mxu0 %v858
      %1181 = vmatpush1.bf16.msra.mxu0 %v857
      %1182 = vmatprep.subr.bf16.mxu0 %v848
      %1183 = vmatpush1.bf16.msra.mxu0 %v847
      %1184 = vmatprep.subr.bf16.mxu0 %v868
      %1185 = vmatpush1.bf16.msra.mxu0 %v867
      %1186 = vmatprep.subr.bf16.mxu0 %v838
      %1187 = vmatpush1.bf16.msra.mxu0 %v837
      %1188 = vmatprep.subr.bf16.mxu0 %v848
      %1189 = vmatpush1.bf16.msra.mxu0 %v847
      %1190 = vmatprep.subr.bf16.mxu0 %v878
      %1191 = vmatpush1.bf16.msra.mxu0 %v877
      %1192 = vmatprep.subr.bf16.mxu0 %v888
      %1193 = vmatpush1.bf16.msra.mxu0 %v887
      %1194 = vmatprep.subr.bf16.mxu0 %v848
      %1195 = vmatpush1.bf16.msra.mxu0 %v847
      %1196 = vmatprep.subr.bf16.mxu0 %v868
      %1197 = vmatpush1.bf16.msra.mxu0 %v867
      %1198 = vmatprep.subr.bf16.mxu0 %v888
      %1199 = vmatpush1.bf16.msra.mxu0 %v887
      %1200 = vmatprep.subr.bf16.mxu0 %v898
      %1201 = vmatpush1.bf16.msra.mxu0 %v897
      %1202 = vmatprep.mubr.bf16.mxu0 %v640
      %1203 = vmatmul.mubr.bf16.gmra.mrb[0].mxu0 %v639
      %v1204 = vpop.f32.mrb[0].mxu0
      %v1205 = vadd.f32 %v626, %v1204
      %v1206 = vpop.f32.mrb[0].mxu0
      %v1207 = vadd.f32 %v626, %v1206
      %v1208 = vpop.f32.mrb[0].mxu0
      %v1209 = vadd.f32 %v631, %v1208
      %v1210 = vpop.f32.mrb[0].mxu0
      %v1211 = vadd.f32 %v631, %v1210
      %1212 = vdwg.mxu0
      %1213 = vmatprep.subr.bf16.mxu0 0
      %1214 = vmatpush1.bf16.msra.mxu0 %v438
      %1215 = vmatprep.subr.bf16.mxu0 0
      %1216 = vmatpush1.bf16.msra.mxu0 %v664
      %1217 = vmatprep.subr.bf16.mxu0 0
      %1218 = vmatpush1.bf16.msra.mxu0 %v686
      %1219 = vmatprep.subr.bf16.mxu0 0
      %1220 = vmatpush1.bf16.msra.mxu0 %v708
      %1221 = vmatprep.subr.bf16.mxu0 0
      %1222 = vmatpush1.bf16.msra.mxu0 %v664
      %1223 = vmatprep.subr.bf16.mxu0 0
      %1224 = vmatpush1.bf16.msra.mxu0 %v730
      %1225 = vmatprep.subr.bf16.mxu0 0
      %1226 = vmatpush1.bf16.msra.mxu0 %v708
      %1227 = vmatprep.subr.bf16.mxu0 0
      %1228 = vmatpush1.bf16.msra.mxu0 %v752
      %1229 = vmatprep.subr.bf16.mxu0 0
      %1230 = vmatpush1.bf16.msra.mxu0 %v686
      %1231 = vmatprep.subr.bf16.mxu0 0
      %1232 = vmatpush1.bf16.msra.mxu0 %v708
      %1233 = vmatprep.subr.bf16.mxu0 0
      %1234 = vmatpush1.bf16.msra.mxu0 %v774
      %1235 = vmatprep.subr.bf16.mxu0 0
      %1236 = vmatpush1.bf16.msra.mxu0 %v796
      %1237 = vmatprep.subr.bf16.mxu0 0
      %1238 = vmatpush1.bf16.msra.mxu0 %v708
      %1239 = vmatprep.subr.bf16.mxu0 0
      %1240 = vmatpush1.bf16.msra.mxu0 %v752
      %1241 = vmatprep.subr.bf16.mxu0 0
      %1242 = vmatpush1.bf16.msra.mxu0 %v796
      %1243 = vmatprep.subr.bf16.mxu0 0
      %1244 = vmatpush1.bf16.msra.mxu0 %v818
      %1245 = vmatprep.mubr.bf16.mxu0 %v640
      %1246 = vmatmul.mubr.bf16.gmra.mrb[0].mxu0 %v639
      %v1247 = vpop.f32.mrb[0].mxu0
      %v1248 = vadd.f32 %v626, %v1247
      %v1249 = vpop.f32.mrb[0].mxu0
      %v1250 = vpop.f32.mrb[0].mxu0
      %v1251 = vadd.f32 %v631, %v1250
      %v1252 = vpop.f32.mrb[0].mxu0
      %1253 = vdwg.mxu0
      %1254 = vst [vmem:[%s170] sm:$0xff] %v1033
      %1255 = vst [vmem:[%s170 + $0x8] sm:$0xff] %v1035
      %1256 = vst [vmem:[%s170 + $0x10] sm:$0xff] %v1076
      %1257 = vst [vmem:[%s170 + $0x18] sm:$0xff] %v1078
      %1258 = vst [vmem:[%s170 + $0x20] sm:$0xff] %v1119
      %1259 = vst [vmem:[%s170 + $0x28] sm:$0xff] %v1121
      %1260 = vst [vmem:[%s170 + $0x30] sm:$0xff] %v1162
      %1261 = vst [vmem:[%s170 + $0x38] sm:$0xff] %v1164
      %1262 = vst [vmem:[%s170 + $0x40] sm:$0xff] %v1205
      %1263 = vst [vmem:[%s170 + $0x48] sm:$0xff] %v1207
      %vm1264 = vcmask 97280
      %1265 = vst.msk [vmem:[%s170 + $0x50] sm:$0xff] %vm1264, %v1248
      %1266 = vst [vmem:[%s170 + $0x58] sm:$0xf] %v1037
      %1267 = vst [vmem:[%s170 + $0x60] sm:$0xf] %v1039
      %1268 = vst [vmem:[%s170 + $0x68] sm:$0xf] %v1080
      %1269 = vst [vmem:[%s170 + $0x70] sm:$0xf] %v1082
      %1270 = vst [vmem:[%s170 + $0x78] sm:$0xf] %v1123
      %1271 = vst [vmem:[%s170 + $0x80] sm:$0xf] %v1125
      %1272 = vst [vmem:[%s170 + $0x88] sm:$0xf] %v1166
      %1273 = vst [vmem:[%s170 + $0x90] sm:$0xf] %v1168
      %1274 = vst [vmem:[%s170 + $0x98] sm:$0xf] %v1209
      %1275 = vst [vmem:[%s170 + $0xa0] sm:$0xf] %v1211
      %vm1276 = vcmask 93184
      %1277 = vst.msk [vmem:[%s170 + $0xa8] sm:$0xf] %vm1276, %v1251
      %p1278 = scmp.lt.s32.totalorder %s14, 1
      %s1279 = scalar_select %p1278, %s14, 1
      %s1280 = smul.addr %s1279, 22
      %s1281 = smul.addr %s1280, 8
      %s1282 = scalar_lea.vmem %s3, %s1281
      // Predicated region
      $region33: #{decoder_forward.7} parent=31 // pred_check
        %p1283 = pneg %p100
      $region34: #{decoder_forward.7} parent=31 // pred_check_branch
        %1285 = sbr.rel (%p1283) target = $region36
      $region35: #{decoder_forward.7} parent=31 // pred_region
        _
      $region36: #{decoder_forward.7} parent=31 // pred_fallthru
        _
    $region32: #{decoder_forward.7} parent=5 // pred_fallthru
      _
    %p1286 = scmp.le.s32.totalorder 2, %s9
    // Predicated region
    $region37: #{decoder_forward.7} parent=5 // pred_check
      %p1287 = pneg %p1286
    $region38: #{decoder_forward.7} parent=5 // pred_check_branch
      %1289 = sbr.rel (%p1287) target = $region40
    $region39: #{decoder_forward.7} parent=5 // pred_region
      %s1290 = ssub.s32 %s9, 2
      // Predicated region
      $region41: #{decoder_forward.7} parent=39 // pred_check
        %p1291 = pneg %p106
      $region42: #{decoder_forward.7} parent=39 // pred_check_branch
        %1293 = sbr.rel (%p1291) target = $region44
      $region43: #{decoder_forward.7} parent=39 // pred_region
        %p1294 = scmp.lt.s32.totalorder %s15, 1
        %s1295 = scalar_select %p1294, %s15, 1
        %s1296 = smul.addr %s1295, 22
        %s1297 = smul.addr %s1296, 8
        %s1298 = scalar_lea.vmem %s3, %s1297
      $region44: #{decoder_forward.7} parent=39 // pred_fallthru
        _
    $region40: #{decoder_forward.7} parent=5 // pred_fallthru
      _
  $region6: #{decoder_forward.7} parent=0 // loop_footer
    %s13 = sadd.s32 1, %s9
  $region7: #{decoder_forward.7} parent=0 // loop_footer_branch
    %8 = sbr.rel target = $region3
  $region8: #{decoder_forward.7} parent=0 // loop_exit
    _

</llo_original>
